<compile_context>
chip_gen: v6e
topology: v6e:2x2x1
jax: 0.10.0
libtpu: 0.0.40
codegen_flags: <defaults>
</compile_context>

<pallas_src>
import jax
import jax.numpy as jnp
from jax import lax
from jax.experimental import pallas as pl
from jax.experimental.pallas import tpu as pltpu


_LANES = 128


# --------------------------------------------------------------------------------------
# Kernels
# --------------------------------------------------------------------------------------
def _proj_kernel(x_ref, w_ref, z_ref):
    """Row tile of the layer-0 projection:  Z0_wide = X @ W0_wide  (one wide dot)."""
    z_ref[...] = jnp.dot(x_ref[...], w_ref[...],
                         preferred_element_type=jnp.float32).astype(z_ref.dtype)


def _gconv_proj_kernel(a_ref, z_ref, b_ref, w_next_ref, out_ref, acc_ref):
    """K-tiled gconv 0 fused with the layer-1 projection.

    grid = (row_tiles, k_tiles).  a_ref is an int8 (tile_m, tile_k) block of the
    node-major interleaved adjacency; z_ref is the matching (tile_k, H0) block of the
    interleaved Z0 (dequant scale already folded into Z0 via W0_wide)."""
    k = pl.program_id(1)

    @pl.when(k == 0)
    def _():
        acc_ref[...] = jnp.zeros_like(acc_ref)

    acc_ref[...] += jnp.dot(a_ref[...].astype(z_ref.dtype), z_ref[...],
                            preferred_element_type=jnp.float32)

    @pl.when(k == pl.num_programs(1) - 1)
    def _():
        h0 = jnp.maximum(acc_ref[...] + b_ref[...], 0.0).astype(w_next_ref.dtype)
        # TODO(synk): nn.Dropout(p=0.5) is identity in eval mode; training-mode dropout
        #             would need pltpu.prng_seed / prng_random_bits here.
        out_ref[...] = jnp.dot(h0, w_next_ref[...],
                               preferred_element_type=jnp.float32).astype(out_ref.dtype)


def _gconv_cls_kernel(a_ref, z_ref, b_ref, w2p_ref, b2p_ref, out_ref, acc_ref):
    """K-tiled gconv 1 fused with the lane-padded classifier + stable 2-class softmax."""
    k = pl.program_id(1)

    @pl.when(k == 0)
    def _():
        acc_ref[...] = jnp.zeros_like(acc_ref)

    acc_ref[...] += jnp.dot(a_ref[...].astype(z_ref.dtype), z_ref[...],
                            preferred_element_type=jnp.float32)

    @pl.when(k == pl.num_programs(1) - 1)
    def _():
        h1 = jnp.maximum(acc_ref[...] + b_ref[...], 0.0).astype(w2p_ref.dtype)
        # W2/b2 are zero-padded to 128 lanes -> lanes 0,1 hold logits, lanes >= 2 are 0.
        logits = jnp.dot(h1, w2p_ref[...],
                         preferred_element_type=jnp.float32) + b2p_ref[...]
        l0 = logits[:, 0:1]
        l1 = logits[:, 1:2]
        d = jnp.clip(l1 - l0, -30.0, 30.0)          # stable sigmoid form of softmax
        p1 = 1.0 / (1.0 + jnp.exp(-d))
        p0 = 1.0 - p1
        lane = lax.broadcasted_iota(jnp.int32, logits.shape, 1)
        out_ref[...] = (logits + jnp.where(lane == 2, p0, 0.0)
                        + jnp.where(lane == 3, p1, 0.0))


def _fused_kernel(x_ref, a_ref, w0w_ref, b0_ref, w1w_ref, b1_ref, w2p_ref, b2p_ref,
                  out_ref):
    """Whole forward in one kernel (small-graph path, everything resident in VMEM).

    a_ref is slice-major int8: a[n, s*Np + i] = hp_graph[n, i, s]; the per-edge chunks
    are contiguous 128-aligned lane slices, so the gconv is E deep (Np-wide) dots."""
    npad = x_ref.shape[0]
    n_edge = a_ref.shape[1] // npad
    h0_dim = b0_ref.shape[1]
    h1_dim = b1_ref.shape[1]
    cdt = w0w_ref.dtype

    # layer-0 projections for all edges as ONE wide dot (scale folded into W0_wide)
    z0w = jnp.dot(x_ref[...], w0w_ref[...],
                  preferred_element_type=jnp.float32).astype(cdt)

    acc0 = jnp.zeros((npad, h0_dim), jnp.float32)
    for s in range(n_edge):
        a_s = a_ref[:, s * npad:(s + 1) * npad].astype(cdt)
        acc0 = acc0 + jnp.dot(a_s, z0w[:, s * h0_dim:(s + 1) * h0_dim],
                              preferred_element_type=jnp.float32)
    h0 = jnp.maximum(acc0 + b0_ref[...], 0.0).astype(cdt)
    # TODO(synk): nn.Dropout(p=0.5) is identity in eval mode (no RNG in the kernel).

    z1w = jnp.dot(h0, w1w_ref[...], preferred_element_type=jnp.float32).astype(cdt)

    acc1 = jnp.zeros((npad, h1_dim), jnp.float32)
    for s in range(n_edge):
        a_s = a_ref[:, s * npad:(s + 1) * npad].astype(cdt)
        acc1 = acc1 + jnp.dot(a_s, z1w[:, s * h1_dim:(s + 1) * h1_dim],
                              preferred_element_type=jnp.float32)
    h1 = jnp.maximum(acc1 + b1_ref[...], 0.0).astype(cdt)

    logits = jnp.dot(h1, w2p_ref[...], preferred_element_type=jnp.float32) + b2p_ref[...]
    l0 = logits[:, 0:1]
    l1 = logits[:, 1:2]
    d = jnp.clip(l1 - l0, -30.0, 30.0)
    p1 = 1.0 / (1.0 + jnp.exp(-d))
    p0 = 1.0 - p1
    lane = lax.broadcasted_iota(jnp.int32, logits.shape, 1)
    out_ref[...] = (logits + jnp.where(lane == 2, p0, 0.0)
                    + jnp.where(lane == 3, p1, 0.0))


# --------------------------------------------------------------------------------------
# Helpers
# --------------------------------------------------------------------------------------
def _round_up(x, m):
    return (x + m - 1) // m * m


def _chip_vmem_cap():
    try:
        info = pltpu.get_tpu_info()
        return int(getattr(info, "vmem_capacity_bytes", 64 << 20))
    except Exception:
        return 64 << 20          # conservative: v7x per-TensorCore VMEM


def _pad_bytes(shape, dtype):
    itemsize = jnp.dtype(dtype).itemsize
    sub = {4: 8, 2: 16, 1: 32}.get(itemsize, 8)
    dims = (1,) * max(0, 2 - len(shape)) + tuple(shape)
    lead = 1
    for d in dims[:-2]:
        lead *= d
    return lead * _round_up(dims[-2], sub) * _round_up(dims[-1], _LANES) * itemsize


def _vmem_limit(block_defs):
    """block_defs: list of (shape, dtype, n_buffers). Resident blocks use 1 buffer."""
    est = sum(nb * _pad_bytes(s, d) for s, d, nb in block_defs)
    cap = _chip_vmem_cap()
    return int(min(cap * 3 // 4, max(32 << 20, est + (8 << 20))))


# --------------------------------------------------------------------------------------
# Builder: one-time layout / quantization prep -> jitted forward(feature)
# --------------------------------------------------------------------------------------
def build_mgcn_forward(hp_graph, w0, b0, w1, b1, w2, b2, *, force_path=None,
                       tile_m=None, compute_dtype=jnp.bfloat16):
    N = int(hp_graph.shape[0])
    E = int(hp_graph.shape[2])
    H0 = int(w0.shape[0])
    F_in = int(w0.shape[1]) // E
    H1 = int(w1.shape[0])
    n_cls = int(w2.shape[0])
    f32 = jnp.float32

    # ---- wide (per-edge stacked) weights, PyTorch Linear layout is (out, in) ----------
    #   W0_wide[k, s*H0 + o] = W0[o, s*F + k]    (so Z0_wide = X @ W0_wide)
    w0w = jnp.asarray(w0, f32).reshape(H0, E, F_in).transpose(2, 1, 0).reshape(F_in, E * H0)
    w1w = jnp.asarray(w1, f32).reshape(H1, E, H0).transpose(2, 1, 0).reshape(H0, E * H1)
    w2p = jnp.zeros((H1, _LANES), f32).at[:, :n_cls].set(jnp.asarray(w2, f32).T)
    b0r = jnp.asarray(b0, f32).reshape(1, H0)
    b1r = jnp.asarray(b1, f32).reshape(1, H1)
    b2p = jnp.zeros((1, _LANES), f32).at[0, :n_cls].set(jnp.asarray(b2, f32))

    if force_path is None:
        fused = (N * N * E) <= (4 << 20)          # int8 A_cat comfortably VMEM-resident
    else:
        fused = (force_path == "fused")

    hp = jnp.asarray(hp_graph, f32)

    if fused:
        Np = _round_up(N, 128)
        hp_p = jnp.pad(hp, ((0, Np - N), (0, Np - N), (0, 0)))
        a_cat = jnp.transpose(hp_p, (0, 2, 1)).reshape(Np, E * Np)   # slice-major
    else:
        if tile_m is None:
            tile_m = 256 if N >= 512 else 128
        Np = _round_up(N, tile_m)
        T = Np // tile_m
        hp_p = jnp.pad(hp, ((0, Np - N), (0, Np - N), (0, 0)))
        a_cat = hp_p.reshape(Np, Np * E)                             # node-major interleaved
        if Np <= 2048:
            ck = Np                                                  # single K step
        else:
            ck = 128
            for cand in (2048, 1024, 512, 256):
                if Np % cand == 0:
                    ck = cand
                    break
        KT = Np // ck
        tile_k = E * ck

    # ---- int8 A_cat with the dequant scale folded into the projection weights ---------
    amax = jnp.maximum(jnp.max(jnp.abs(a_cat)), jnp.float32(1e-30))
    a_scale = amax / 127.0
    a_q = jnp.clip(jnp.round(a_cat / a_scale), -127, 127).astype(jnp.int8)
    w0w_c = (w0w * a_scale).astype(compute_dtype)     # -> Z0 comes out pre-scaled
    w1w_c = (w1w * a_scale).astype(compute_dtype)     # -> Z1 comes out pre-scaled
    w2p_c = w2p.astype(compute_dtype)

    # ----------------------------------------------------------------------------------
    if fused:
        params = pltpu.CompilerParams(vmem_limit_bytes=_vmem_limit([
            ((Np, F_in), compute_dtype, 1),
            ((Np, E * Np), jnp.int8, 1),
            ((Np, Np), compute_dtype, E),            # conservative: dequant chunk temps
            ((F_in, E * H0), compute_dtype, 1),
            ((H0, E * H1), compute_dtype, 1),
            ((H1, _LANES), compute_dtype, 1),
            ((Np, E * H0), compute_dtype, 1),
            ((Np, E * H1), compute_dtype, 1),
            ((Np, H0), f32, 2),
            ((Np, _LANES), f32, 1),
        ]))

        def forward(feature):
            x = jnp.asarray(feature, f32)
            x = jnp.pad(x, ((0, Np - N), (0, 0))).astype(compute_dtype)
            packed = pl.pallas_call(
                _fused_kernel,
                out_shape=jax.ShapeDtypeStruct((Np, _LANES), f32),
                compiler_params=params,
            )(x, a_q, w0w_c, b0r, w1w_c, b1r, w2p_c, b2p)
            return packed[:N, 0:n_cls], packed[:N, n_cls:2 * n_cls]

        return jax.jit(forward)

    # ---------------------------------- tiled path -------------------------------------
    proj_params = pltpu.CompilerParams(
        dimension_semantics=("parallel",),
        vmem_limit_bytes=_vmem_limit([
            ((tile_m, F_in), compute_dtype, 2),
            ((F_in, E * H0), compute_dtype, 1),
            ((tile_m, E * H0), compute_dtype, 2),
        ]))
    g0_params = pltpu.CompilerParams(
        dimension_semantics=("parallel", "arbitrary"),
        vmem_limit_bytes=_vmem_limit([
            ((tile_m, tile_k), jnp.int8, 2),
            ((tile_m, tile_k), compute_dtype, 1),    # dequant temp
            ((tile_k, H0), compute_dtype, 2),
            ((1, H0), f32, 1),
            ((H0, E * H1), compute_dtype, 1),
            ((tile_m, E * H1), compute_dtype, 2),
            ((tile_m, H0), f32, 1),
        ]))
    g1_params = pltpu.CompilerParams(
        dimension_semantics=("parallel", "arbitrary"),
        vmem_limit_bytes=_vmem_limit([
            ((tile_m, tile_k), jnp.int8, 2),
            ((tile_m, tile_k), compute_dtype, 1),
            ((tile_k, H1), compute_dtype, 2),
            ((1, H1), f32, 1),
            ((H1, _LANES), compute_dtype, 1),
            ((1, _LANES), f32, 1),
            ((tile_m, _LANES), f32, 2),
            ((tile_m, H1), f32, 1),
        ]))

    def forward(feature):
        x = jnp.asarray(feature, f32)
        x = jnp.pad(x, ((0, Np - N), (0, 0))).astype(compute_dtype)

        # -- call 1: layer-0 projection as ONE wide matmul per row tile
        z0w = pl.pallas_call(
            _proj_kernel,
            out_shape=jax.ShapeDtypeStruct((Np, E * H0), compute_dtype),
            grid=(T,),
            in_specs=[pl.BlockSpec((tile_m, F_in), lambda i: (i, 0)),
                      pl.BlockSpec((F_in, E * H0), lambda i: (0, 0))],
            out_specs=pl.BlockSpec((tile_m, E * H0), lambda i: (i, 0)),
            compiler_params=proj_params,
        )(x, w0w_c)
        z0 = z0w.reshape(Np * E, H0)       # pure view: row i*E+s <- wide[i, s*H0+o]

        # -- call 2: K-tiled gconv 0 fused with the layer-1 wide projection
        z1w = pl.pallas_call(
            _gconv_proj_kernel,
            out_shape=jax.ShapeDtypeStruct((Np, E * H1), compute_dtype),
            grid=(T, KT),
            in_specs=[pl.BlockSpec((tile_m, tile_k), lambda i, k: (i, k)),
                      pl.BlockSpec((tile_k, H0), lambda i, k: (k, 0)),
                      pl.BlockSpec((1, H0), lambda i, k: (0, 0)),
                      pl.BlockSpec((H0, E * H1), lambda i, k: (0, 0))],
            out_specs=pl.BlockSpec((tile_m, E * H1), lambda i, k: (i, 0)),
            scratch_shapes=[pltpu.VMEM((tile_m, H0), f32)],
            compiler_params=g0_params,
        )(a_q, z0, b0r, w1w_c)
        z1 = z1w.reshape(Np * E, H1)

        # -- call 3: K-tiled gconv 1 + lane-padded classifier + softmax (packed store)
        packed = pl.pallas_call(
            _gconv_cls_kernel,
            out_shape=jax.ShapeDtypeStruct((Np, _LANES), f32),
            grid=(T, KT),
            in_specs=[pl.BlockSpec((tile_m, tile_k), lambda i, k: (i, k)),
                      pl.BlockSpec((tile_k, H1), lambda i, k: (k, 0)),
                      pl.BlockSpec((1, H1), lambda i, k: (0, 0)),
                      pl.BlockSpec((H1, _LANES), lambda i, k: (0, 0)),
                      pl.BlockSpec((1, _LANES), lambda i, k: (0, 0))],
            out_specs=pl.BlockSpec((tile_m, _LANES), lambda i, k: (i, 0)),
            scratch_shapes=[pltpu.VMEM((tile_m, H1), f32)],
            compiler_params=g1_params,
        )(a_q, z1, b1r, w2p_c, b2p)

        return packed[:N, 0:n_cls], packed[:N, n_cls:2 * n_cls]

    return jax.jit(forward)


# --------------------------------------------------------------------------------------
# Pure-JAX reference (PyTorch semantics, dropout = identity / eval mode)
# --------------------------------------------------------------------------------------
def ref_forward(feature, hp_graph, w0, b0, w1, b1, w2, b2):
    def slice_cat(data):                    # (N, K, E) -> (N, E*K), slice-major concat
        n, k, e = data.shape
        return jnp.transpose(data, (0, 2, 1)).reshape(n, e * k)

    t0 = jnp.einsum('nij,ik->nkj', hp_graph, feature)
    h0 = jax.nn.relu(slice_cat(t0) @ w0.T + b0)
    t1 = jnp.einsum('nij,ik->nkj', hp_graph, h0)
    h1 = jax.nn.relu(slice_cat(t1) @ w1.T + b1)
    logits = h1 @ w2.T + b2
    return logits, jax.nn.softmax(logits, axis=1)


if __name__ == "__main__":
    # Small problem consistent with the module: N nodes, n_input features, n_edge slices,
    # hidden_dims = [32, 32].  N deliberately not a tile multiple to exercise padding.
    N, F_IN, E = 200, 32, 3
    H0, H1 = 32, 32

    key = jax.random.PRNGKey(0)
    k1, k2, k3, k4, k5, k6, k7, k8 = jax.random.split(key, 8)

    feature = jax.random.normal(k1, (N, F_IN), dtype=jnp.float32)
    hp_graph = jax.random.uniform(k2, (N, N, E), dtype=jnp.float32) / N

    # PyTorch Linear layout: (out, in)
    w0 = jax.random.normal(k3, (H0, F_IN * E), dtype=jnp.float32) * 0.1
    b0 = jax.random.normal(k4, (H0,), dtype=jnp.float32) * 0.1
    w1 = jax.random.normal(k5, (H1, H0 * E), dtype=jnp.float32) * 0.1
    b1 = jax.random.normal(k6, (H1,), dtype=jnp.float32) * 0.1
    w2 = jax.random.normal(k7, (2, H1), dtype=jnp.float32) * 0.1
    b2 = jax.random.normal(k8, (2,), dtype=jnp.float32) * 0.1

    ref_logits, ref_probs = ref_forward(feature, hp_graph, w0, b0, w1, b1, w2, b2)

    # Exercise BOTH the small-graph fused path and the large-graph K-tiled path.
    for path in ("fused", "tiled"):
        fwd = build_mgcn_forward(hp_graph, w0, b0, w1, b1, w2, b2, force_path=path)
        logits, probs = fwd(feature)
        jax.block_until_ready((logits, probs))

        assert logits.shape == (N, 2) and probs.shape == (N, 2)
        # bf16 MXU operands + int8 adjacency with f32 accumulation -> loose tolerance
        # against the pure-f32 reference.
        assert jnp.allclose(logits, ref_logits, atol=5e-2, rtol=5e-2), (
            "[%s] logits mismatch, max abs diff %e"
            % (path, float(jnp.max(jnp.abs(logits - ref_logits)))))
        assert jnp.allclose(probs, ref_probs, atol=2e-2, rtol=2e-2), (
            "[%s] softmax mismatch, max abs diff %e"
            % (path, float(jnp.max(jnp.abs(probs - ref_probs)))))

    print("KERNEL_OK")
</pallas_src>

<mosaic_0001>
module attributes {stable_mosaic.version = 11 : i64} {
  func.func @_fused_kernel(%arg0: memref<256x32xbf16, #tpu.memory_space<vmem>>, %arg1: memref<256x768xi8, #tpu.memory_space<vmem>>, %arg2: memref<32x96xbf16, #tpu.memory_space<vmem>>, %arg3: memref<1x32xf32, #tpu.memory_space<vmem>>, %arg4: memref<32x96xbf16, #tpu.memory_space<vmem>>, %arg5: memref<1x32xf32, #tpu.memory_space<vmem>>, %arg6: memref<32x128xbf16, #tpu.memory_space<vmem>>, %arg7: memref<1x128xf32, #tpu.memory_space<vmem>>, %arg8: memref<256x128xf32, #tpu.memory_space<vmem>>) attributes {dimension_semantics = [], scalar_prefetch = 0 : i64, scratch_operands = 0 : i64, tpu.core_type = #tpu.core_type<tc>} {
    %c0 = arith.constant 0 : index
    %c0_0 = arith.constant 0 : index
    %0 = vector.load %arg0[%c0, %c0_0] : memref<256x32xbf16, #tpu.memory_space<vmem>>, vector<256x32xbf16>
    %c0_1 = arith.constant 0 : index
    %c0_2 = arith.constant 0 : index
    %1 = vector.load %arg2[%c0_1, %c0_2] : memref<32x96xbf16, #tpu.memory_space<vmem>>, vector<32x96xbf16>
    %cst = arith.constant dense<0.000000e+00> : vector<256x96xf32>
    %2 = tpu.matmul %0, %1, %cst {dimension_numbers = #tpu.dot_dimension_numbers<[1], [0], [0], [1], [0, 0, 1, 1], [], []>} : vector<256x32xbf16>, vector<32x96xbf16>, vector<256x96xf32> -> vector<256x96xf32>
    %3 = arith.truncf %2 : vector<256x96xf32> to vector<256x96xbf16>
    %cst_3 = arith.constant 0.000000e+00 : f32
    %4 = vector.broadcast %cst_3 : f32 to vector<256x32xf32>
    %c0_4 = arith.constant 0 : index
    %c0_5 = arith.constant 0 : index
    %5 = vector.load %arg1[%c0_4, %c0_5] : memref<256x768xi8, #tpu.memory_space<vmem>>, vector<256x256xi8>
    %6 = arith.sitofp %5 : vector<256x256xi8> to vector<256x256xbf16>
    %7 = vector.extract_strided_slice %3 {offsets = [0, 0], sizes = [256, 32], strides = [1, 1]} : vector<256x96xbf16> to vector<256x32xbf16>
    %cst_6 = arith.constant dense<0.000000e+00> : vector<256x32xf32>
    %8 = tpu.matmul %6, %7, %cst_6 {dimension_numbers = #tpu.dot_dimension_numbers<[1], [0], [0], [1], [0, 0, 1, 1], [], []>} : vector<256x256xbf16>, vector<256x32xbf16>, vector<256x32xf32> -> vector<256x32xf32>
    %9 = arith.addf %4, %8 : vector<256x32xf32>
    %c0_7 = arith.constant 0 : index
    %c256 = arith.constant 256 : index
    %10 = vector.load %arg1[%c0_7, %c256] : memref<256x768xi8, #tpu.memory_space<vmem>>, vector<256x256xi8>
    %11 = arith.sitofp %10 : vector<256x256xi8> to vector<256x256xbf16>
    %12 = vector.extract_strided_slice %3 {offsets = [0, 32], sizes = [256, 32], strides = [1, 1]} : vector<256x96xbf16> to vector<256x32xbf16>
    %cst_8 = arith.constant dense<0.000000e+00> : vector<256x32xf32>
    %13 = tpu.matmul %11, %12, %cst_8 {dimension_numbers = #tpu.dot_dimension_numbers<[1], [0], [0], [1], [0, 0, 1, 1], [], []>} : vector<256x256xbf16>, vector<256x32xbf16>, vector<256x32xf32> -> vector<256x32xf32>
    %14 = arith.addf %9, %13 : vector<256x32xf32>
    %c0_9 = arith.constant 0 : index
    %c512 = arith.constant 512 : index
    %15 = vector.load %arg1[%c0_9, %c512] : memref<256x768xi8, #tpu.memory_space<vmem>>, vector<256x256xi8>
    %16 = arith.sitofp %15 : vector<256x256xi8> to vector<256x256xbf16>
    %17 = vector.extract_strided_slice %3 {offsets = [0, 64], sizes = [256, 32], strides = [1, 1]} : vector<256x96xbf16> to vector<256x32xbf16>
    %cst_10 = arith.constant dense<0.000000e+00> : vector<256x32xf32>
    %18 = tpu.matmul %16, %17, %cst_10 {dimension_numbers = #tpu.dot_dimension_numbers<[1], [0], [0], [1], [0, 0, 1, 1], [], []>} : vector<256x256xbf16>, vector<256x32xbf16>, vector<256x32xf32> -> vector<256x32xf32>
    %19 = arith.addf %14, %18 : vector<256x32xf32>
    %c0_11 = arith.constant 0 : index
    %c0_12 = arith.constant 0 : index
    %20 = vector.load %arg3[%c0_11, %c0_12] : memref<1x32xf32, #tpu.memory_space<vmem>>, vector<1x32xf32>
    %21 = vector.broadcast %20 : vector<1x32xf32> to vector<256x32xf32>
    %22 = arith.addf %19, %21 : vector<256x32xf32>
    %cst_13 = arith.constant 0.000000e+00 : f32
    %23 = vector.broadcast %cst_13 : f32 to vector<256x32xf32>
    %24 = arith.maximumf %22, %23 : vector<256x32xf32>
    %25 = arith.truncf %24 : vector<256x32xf32> to vector<256x32xbf16>
    %c0_14 = arith.constant 0 : index
    %c0_15 = arith.constant 0 : index
    %26 = vector.load %arg4[%c0_14, %c0_15] : memref<32x96xbf16, #tpu.memory_space<vmem>>, vector<32x96xbf16>
    %cst_16 = arith.constant dense<0.000000e+00> : vector<256x96xf32>
    %27 = tpu.matmul %25, %26, %cst_16 {dimension_numbers = #tpu.dot_dimension_numbers<[1], [0], [0], [1], [0, 0, 1, 1], [], []>} : vector<256x32xbf16>, vector<32x96xbf16>, vector<256x96xf32> -> vector<256x96xf32>
    %28 = arith.truncf %27 : vector<256x96xf32> to vector<256x96xbf16>
    %cst_17 = arith.constant 0.000000e+00 : f32
    %29 = vector.broadcast %cst_17 : f32 to vector<256x32xf32>
    %c0_18 = arith.constant 0 : index
    %c0_19 = arith.constant 0 : index
    %30 = vector.load %arg1[%c0_18, %c0_19] : memref<256x768xi8, #tpu.memory_space<vmem>>, vector<256x256xi8>
    %31 = arith.sitofp %30 : vector<256x256xi8> to vector<256x256xbf16>
    %32 = vector.extract_strided_slice %28 {offsets = [0, 0], sizes = [256, 32], strides = [1, 1]} : vector<256x96xbf16> to vector<256x32xbf16>
    %cst_20 = arith.constant dense<0.000000e+00> : vector<256x32xf32>
    %33 = tpu.matmul %31, %32, %cst_20 {dimension_numbers = #tpu.dot_dimension_numbers<[1], [0], [0], [1], [0, 0, 1, 1], [], []>} : vector<256x256xbf16>, vector<256x32xbf16>, vector<256x32xf32> -> vector<256x32xf32>
    %34 = arith.addf %29, %33 : vector<256x32xf32>
    %c0_21 = arith.constant 0 : index
    %c256_22 = arith.constant 256 : index
    %35 = vector.load %arg1[%c0_21, %c256_22] : memref<256x768xi8, #tpu.memory_space<vmem>>, vector<256x256xi8>
    %36 = arith.sitofp %35 : vector<256x256xi8> to vector<256x256xbf16>
    %37 = vector.extract_strided_slice %28 {offsets = [0, 32], sizes = [256, 32], strides = [1, 1]} : vector<256x96xbf16> to vector<256x32xbf16>
    %cst_23 = arith.constant dense<0.000000e+00> : vector<256x32xf32>
    %38 = tpu.matmul %36, %37, %cst_23 {dimension_numbers = #tpu.dot_dimension_numbers<[1], [0], [0], [1], [0, 0, 1, 1], [], []>} : vector<256x256xbf16>, vector<256x32xbf16>, vector<256x32xf32> -> vector<256x32xf32>
    %39 = arith.addf %34, %38 : vector<256x32xf32>
    %c0_24 = arith.constant 0 : index
    %c512_25 = arith.constant 512 : index
    %40 = vector.load %arg1[%c0_24, %c512_25] : memref<256x768xi8, #tpu.memory_space<vmem>>, vector<256x256xi8>
    %41 = arith.sitofp %40 : vector<256x256xi8> to vector<256x256xbf16>
    %42 = vector.extract_strided_slice %28 {offsets = [0, 64], sizes = [256, 32], strides = [1, 1]} : vector<256x96xbf16> to vector<256x32xbf16>
    %cst_26 = arith.constant dense<0.000000e+00> : vector<256x32xf32>
    %43 = tpu.matmul %41, %42, %cst_26 {dimension_numbers = #tpu.dot_dimension_numbers<[1], [0], [0], [1], [0, 0, 1, 1], [], []>} : vector<256x256xbf16>, vector<256x32xbf16>, vector<256x32xf32> -> vector<256x32xf32>
    %44 = arith.addf %39, %43 : vector<256x32xf32>
    %c0_27 = arith.constant 0 : index
    %c0_28 = arith.constant 0 : index
    %45 = vector.load %arg5[%c0_27, %c0_28] : memref<1x32xf32, #tpu.memory_space<vmem>>, vector<1x32xf32>
    %46 = vector.broadcast %45 : vector<1x32xf32> to vector<256x32xf32>
    %47 = arith.addf %44, %46 : vector<256x32xf32>
    %cst_29 = arith.constant 0.000000e+00 : f32
    %48 = vector.broadcast %cst_29 : f32 to vector<256x32xf32>
    %49 = arith.maximumf %47, %48 : vector<256x32xf32>
    %50 = arith.truncf %49 : vector<256x32xf32> to vector<256x32xbf16>
    %c0_30 = arith.constant 0 : index
    %c0_31 = arith.constant 0 : index
    %51 = vector.load %arg6[%c0_30, %c0_31] : memref<32x128xbf16, #tpu.memory_space<vmem>>, vector<32x128xbf16>
    %cst_32 = arith.constant dense<0.000000e+00> : vector<256x128xf32>
    %52 = tpu.matmul %50, %51, %cst_32 {dimension_numbers = #tpu.dot_dimension_numbers<[1], [0], [0], [1], [0, 0, 1, 1], [], []>} : vector<256x32xbf16>, vector<32x128xbf16>, vector<256x128xf32> -> vector<256x128xf32>
    %c0_33 = arith.constant 0 : index
    %c0_34 = arith.constant 0 : index
    %53 = vector.load %arg7[%c0_33, %c0_34] : memref<1x128xf32, #tpu.memory_space<vmem>>, vector<1x128xf32>
    %54 = vector.broadcast %53 : vector<1x128xf32> to vector<256x128xf32>
    %55 = arith.addf %52, %54 : vector<256x128xf32>
    %56 = vector.extract_strided_slice %55 {offsets = [0, 0], sizes = [256, 1], strides = [1, 1]} : vector<256x128xf32> to vector<256x1xf32>
    %57 = vector.extract_strided_slice %55 {offsets = [0, 1], sizes = [256, 1], strides = [1, 1]} : vector<256x128xf32> to vector<256x1xf32>
    %58 = arith.subf %57, %56 : vector<256x1xf32>
    %cst_35 = arith.constant -3.000000e+01 : f32
    %cst_36 = arith.constant 3.000000e+01 : f32
    %59 = vector.broadcast %cst_35 : f32 to vector<256x1xf32>
    %60 = arith.maximumf %59, %58 : vector<256x1xf32>
    %61 = vector.broadcast %cst_36 : f32 to vector<256x1xf32>
    %62 = arith.minimumf %61, %60 : vector<256x1xf32>
    %cst_37 = arith.constant 0.000000e+00 : f32
    %63 = vector.broadcast %cst_37 : f32 to vector<256x1xf32>
    %64 = arith.subf %63, %62 : vector<256x1xf32>
    %65 = math.exp %64 : vector<256x1xf32>
    %cst_38 = arith.constant 1.000000e+00 : f32
    %66 = vector.broadcast %cst_38 : f32 to vector<256x1xf32>
    %67 = arith.addf %66, %65 : vector<256x1xf32>
    %cst_39 = arith.constant 1.000000e+00 : f32
    %68 = vector.broadcast %cst_39 : f32 to vector<256x1xf32>
    %69 = arith.divf %68, %67 : vector<256x1xf32>
    %cst_40 = arith.constant 1.000000e+00 : f32
    %70 = vector.broadcast %cst_40 : f32 to vector<256x1xf32>
    %71 = arith.subf %70, %69 : vector<256x1xf32>
    %72 = tpu.iota {dimensions = array<i32: 1>} : vector<256x128xi32>
    %c2_i32 = arith.constant 2 : i32
    %73 = vector.broadcast %c2_i32 : i32 to vector<256x128xi32>
    %74 = arith.cmpi eq, %72, %73 : vector<256x128xi32>
    %cst_41 = arith.constant 0.000000e+00 : f32
    %75 = vector.shape_cast %71 : vector<256x1xf32> to vector<256x1xf32>
    %76 = vector.broadcast %75 : vector<256x1xf32> to vector<256x128xf32>
    %77 = vector.broadcast %cst_41 : f32 to vector<256x128xf32>
    %78 = arith.select %74, %76, %77 : vector<256x128xi1>, vector<256x128xf32>
    %79 = arith.addf %55, %78 : vector<256x128xf32>
    %c3_i32 = arith.constant 3 : i32
    %80 = vector.broadcast %c3_i32 : i32 to vector<256x128xi32>
    %81 = arith.cmpi eq, %72, %80 : vector<256x128xi32>
    %cst_42 = arith.constant 0.000000e+00 : f32
    %82 = vector.shape_cast %69 : vector<256x1xf32> to vector<256x1xf32>
    %83 = vector.broadcast %82 : vector<256x1xf32> to vector<256x128xf32>
    %84 = vector.broadcast %cst_42 : f32 to vector<256x128xf32>
    %85 = arith.select %81, %83, %84 : vector<256x128xi1>, vector<256x128xf32>
    %86 = arith.addf %79, %85 : vector<256x128xf32>
    %c0_43 = arith.constant 0 : index
    %c0_44 = arith.constant 0 : index
    %87 = vector.load %arg8[%c0_43, %c0_44] : memref<256x128xf32, #tpu.memory_space<vmem>>, vector<256x128xf32>
    tpu.vector_store %arg8[%c0_43, %c0_44], %86 {strides = array<i32>} : memref<256x128xf32, #tpu.memory_space<vmem>>, vector<256x128xf32>,
    return
  }
}

</mosaic_0001>

<llo_original>
// kernel: forward.1
$region0: #{forward.1}
  #allocation0 [shape = 'u32[]', space=smem, size = 0x4, offset = 0x4, fixed_abs, tag = 'smem constant byte address 0x4 - core index']
  #allocation1 [shape = 'u32[144,128]{1,0:T(1,128)}', space=vmem, size = 0x12000, scoped, tag = 'internal scratch']
  %s0 = inlined_call_operand.vmem [shape: bf16[256,32], index: 0, kind: input, shape index: {}]
  %s1 = inlined_call_operand.vmem [shape: s8[256,768], index: 1, kind: input, shape index: {}]
  %s2 = inlined_call_operand.vmem [shape: bf16[32,96], index: 2, kind: input, shape index: {}]
  %s3 = inlined_call_operand.vmem [shape: f32[1,32], index: 3, kind: input, shape index: {}]
  %s4 = inlined_call_operand.vmem [shape: bf16[32,96], index: 4, kind: input, shape index: {}]
  %s5 = inlined_call_operand.vmem [shape: f32[1,32], index: 5, kind: input, shape index: {}]
  %s6 = inlined_call_operand.vmem [shape: bf16[32,128], index: 6, kind: input, shape index: {}]
  %s7 = inlined_call_operand.vmem [shape: f32[1,128], index: 7, kind: input, shape index: {}]
  %s8 = inlined_call_operand.vmem [shape: f32[256,128], index: 8, kind: output, shape index: {}]
  %s9 = sld [smem:[#allocation0]]
  $region42: #{forward.1} parent=0
    _
  %s11 = ssub.s32 1, %s9
  %s12 = scalar_select 0, %s11, %s9
  // Predicated region
  $region2: #{forward.1} parent=0 // pred_check
    _
  $region3: #{forward.1} parent=0 // pred_check_branch
    %14 = sbr.rel (0) target = $region5
  $region4: #{forward.1} parent=0 // pred_region
    _
  $region5: #{forward.1} parent=0 // pred_fallthru
    _
  // Predicated region
  $region6: #{forward.1} parent=0 // pred_check
    _
  $region7: #{forward.1} parent=0 // pred_check_branch
    %16 = sbr.rel (0) target = $region9
  $region8: #{forward.1} parent=0 // pred_region
    _
  $region9: #{forward.1} parent=0 // pred_fallthru
    _
  // Predicated region
  $region10: #{forward.1} parent=0 // pred_check
    _
  $region11: #{forward.1} parent=0 // pred_check_branch
    %18 = sbr.rel (0) target = $region13
  $region12: #{forward.1} parent=0 // pred_region
    _
  $region13: #{forward.1} parent=0 // pred_fallthru
    _
  // Predicated region
  $region14: #{forward.1} parent=0 // pred_check
    _
  $region15: #{forward.1} parent=0 // pred_check_branch
    %20 = sbr.rel (0) target = $region17
  $region16: #{forward.1} parent=0 // pred_region
    _
  $region17: #{forward.1} parent=0 // pred_fallthru
    _
  // Predicated region
  $region18: #{forward.1} parent=0 // pred_check
    _
  $region19: #{forward.1} parent=0 // pred_check_branch
    %22 = sbr.rel (0) target = $region21
  $region20: #{forward.1} parent=0 // pred_region
    _
  $region21: #{forward.1} parent=0 // pred_fallthru
    _
  // Predicated region
  $region22: #{forward.1} parent=0 // pred_check
    _
  $region23: #{forward.1} parent=0 // pred_check_branch
    %24 = sbr.rel (0) target = $region25
  $region24: #{forward.1} parent=0 // pred_region
    _
  $region25: #{forward.1} parent=0 // pred_fallthru
    _
  // Predicated region
  $region26: #{forward.1} parent=0 // pred_check
    _
  $region27: #{forward.1} parent=0 // pred_check_branch
    %26 = sbr.rel (0) target = $region29
  $region28: #{forward.1} parent=0 // pred_region
    _
  $region29: #{forward.1} parent=0 // pred_fallthru
    _
  // Predicated region
  $region30: #{forward.1} parent=0 // pred_check
    _
  $region31: #{forward.1} parent=0 // pred_check_branch
    %28 = sbr.rel (0) target = $region33
  $region32: #{forward.1} parent=0 // pred_region
    _
  $region33: #{forward.1} parent=0 // pred_fallthru
    _
  %v30 = vld [vmem:[%s0] sm:$0xf]
  %v31 = vld [vmem:[%s0 + $0x4] sm:$0xf]
  %v32 = vld [vmem:[%s0 + $0x8] sm:$0xf]
  %v33 = vld [vmem:[%s0 + $0xc] sm:$0xf]
  %v34 = vld [vmem:[%s0 + $0x10] sm:$0xf]
  %v35 = vld [vmem:[%s0 + $0x14] sm:$0xf]
  %v36 = vld [vmem:[%s0 + $0x18] sm:$0xf]
  %v37 = vld [vmem:[%s0 + $0x1c] sm:$0xf]
  %v38 = vld [vmem:[%s0 + $0x20] sm:$0xf]
  %v39 = vld [vmem:[%s0 + $0x24] sm:$0xf]
  %v40 = vld [vmem:[%s0 + $0x28] sm:$0xf]
  %v41 = vld [vmem:[%s0 + $0x2c] sm:$0xf]
  %v42 = vld [vmem:[%s0 + $0x30] sm:$0xf]
  %v43 = vld [vmem:[%s0 + $0x34] sm:$0xf]
  %v44 = vld [vmem:[%s0 + $0x38] sm:$0xf]
  %v45 = vld [vmem:[%s0 + $0x3c] sm:$0xf]
  %v46 = vld [vmem:[%s0 + $0x40] sm:$0xf]
  %v47 = vld [vmem:[%s0 + $0x44] sm:$0xf]
  %v48 = vld [vmem:[%s0 + $0x48] sm:$0xf]
  %v49 = vld [vmem:[%s0 + $0x4c] sm:$0xf]
  %v50 = vld [vmem:[%s0 + $0x50] sm:$0xf]
  %v51 = vld [vmem:[%s0 + $0x54] sm:$0xf]
  %v52 = vld [vmem:[%s0 + $0x58] sm:$0xf]
  %v53 = vld [vmem:[%s0 + $0x5c] sm:$0xf]
  %v54 = vld [vmem:[%s0 + $0x60] sm:$0xf]
  %v55 = vld [vmem:[%s0 + $0x64] sm:$0xf]
  %v56 = vld [vmem:[%s0 + $0x68] sm:$0xf]
  %v57 = vld [vmem:[%s0 + $0x6c] sm:$0xf]
  %v58 = vld [vmem:[%s0 + $0x70] sm:$0xf]
  %v59 = vld [vmem:[%s0 + $0x74] sm:$0xf]
  %v60 = vld [vmem:[%s0 + $0x78] sm:$0xf]
  %v61 = vld [vmem:[%s0 + $0x7c] sm:$0xf]
  %v62 = vld [vmem:[%s2] sm:$0xf]
  %v63 = vld [vmem:[%s2 + $0x4] sm:$0xf]
  %v64 = vld [vmem:[%s2 + $0x8] sm:$0xf]
  %v65 = vld [vmem:[%s2 + $0xc] sm:$0xf]
  %v98 = vunpack.c.l.b16 %v30
  %v99 = vunpack.c.l.b16 %v31
  %v100 = vunpack.c.l.b16 %v32
  %v101 = vunpack.c.l.b16 %v33
  %v102 = vunpack.c.l.b16 %v34
  %v103 = vunpack.c.l.b16 %v35
  %v104 = vunpack.c.l.b16 %v36
  %v105 = vunpack.c.l.b16 %v37
  %v106 = vunpack.c.l.b16 %v38
  %v107 = vunpack.c.l.b16 %v39
  %v108 = vunpack.c.l.b16 %v40
  %v109 = vunpack.c.l.b16 %v41
  %v110 = vunpack.c.l.b16 %v42
  %v111 = vunpack.c.l.b16 %v43
  %v112 = vunpack.c.l.b16 %v44
  %v113 = vunpack.c.l.b16 %v45
  %v114 = vunpack.c.l.b16 %v46
  %v115 = vunpack.c.l.b16 %v47
  %v116 = vunpack.c.l.b16 %v48
  %v117 = vunpack.c.l.b16 %v49
  %v118 = vunpack.c.l.b16 %v50
  %v119 = vunpack.c.l.b16 %v51
  %v120 = vunpack.c.l.b16 %v52
  %v121 = vunpack.c.l.b16 %v53
  %v122 = vunpack.c.l.b16 %v54
  %v123 = vunpack.c.l.b16 %v55
  %v124 = vunpack.c.l.b16 %v56
  %v125 = vunpack.c.l.b16 %v57
  %v126 = vunpack.c.l.b16 %v58
  %v127 = vunpack.c.l.b16 %v59
  %v128 = vunpack.c.l.b16 %v60
  %v129 = vunpack.c.l.b16 %v61
  %v130 = vpack.c.b16 %v99, %v98
  %v131 = vpack.c.b16 %v101, %v100
  %v132 = vpack.c.b16 %v103, %v102
  %v133 = vpack.c.b16 %v105, %v104
  %v134 = vpack.c.b16 %v107, %v106
  %v135 = vpack.c.b16 %v109, %v108
  %v136 = vpack.c.b16 %v111, %v110
  %v137 = vpack.c.b16 %v113, %v112
  %v138 = vpack.c.b16 %v115, %v114
  %v139 = vpack.c.b16 %v117, %v116
  %v140 = vpack.c.b16 %v119, %v118
  %v141 = vpack.c.b16 %v121, %v120
  %v142 = vpack.c.b16 %v123, %v122
  %v143 = vpack.c.b16 %v125, %v124
  %v144 = vpack.c.b16 %v127, %v126
  %v145 = vpack.c.b16 %v129, %v128
  %v150 = vunpack.c.l.b16 %v62
  %v151 = vunpack.c.l.b16 %v63
  %v152 = vunpack.c.l.b16 %v64
  %v153 = vunpack.c.l.b16 %v65
  %v154 = vpack.c.b16 %v151, %v150
  %v155 = vpack.c.b16 %v153, %v152
  %vm158 = vcmask 261120
  %v160 = vsel %vm158, %v130, 0
  %v163 = vsel %vm158, %v131, 0
  %v166 = vsel %vm158, %v132, 0
  %v169 = vsel %vm158, %v133, 0
  %v172 = vsel %vm158, %v134, 0
  %v175 = vsel %vm158, %v135, 0
  %v178 = vsel %vm158, %v136, 0
  %v181 = vsel %vm158, %v137, 0
  %v184 = vsel %vm158, %v138, 0
  %v187 = vsel %vm158, %v139, 0
  %v190 = vsel %vm158, %v140, 0
  %v193 = vsel %vm158, %v141, 0
  %v196 = vsel %vm158, %v142, 0
  %v199 = vsel %vm158, %v143, 0
  %v202 = vsel %vm158, %v144, 0
  %v205 = vsel %vm158, %v145, 0
  %207 = vmatprep.subr.bf16.mxu0 0
  %208 = vmatpush1.bf16.msra.mxu0 0
  %209 = vmatprep.subr.bf16.mxu0 0
  %210 = vmatpush1.bf16.msra.mxu0 0
  %211 = vmatprep.subr.bf16.mxu0 0
  %212 = vmatpush1.bf16.msra.mxu0 0
  %213 = vmatprep.subr.bf16.mxu0 0
  %214 = vmatpush1.bf16.msra.mxu0 0
  %215 = vmatprep.subr.bf16.mxu0 0
  %216 = vmatpush1.bf16.msra.mxu0 0
  %217 = vmatprep.subr.bf16.mxu0 0
  %218 = vmatpush1.bf16.msra.mxu0 0
  %219 = vmatprep.subr.bf16.mxu0 0
  %220 = vmatpush1.bf16.msra.mxu0 %v155
  %221 = vmatprep.subr.bf16.mxu0 0
  %222 = vmatpush1.bf16.msra.mxu0 %v154
  %223 = vmatprep.subr.bf16.mxu0 0
  %224 = vmatpush2.bf16.msra.mxu0 0
  %225 = vmatprep.subr.bf16.mxu0 0
  %226 = vmatpush2.bf16.msra.mxu0 0
  %227 = vmatprep.subr.bf16.mxu0 0
  %228 = vmatpush2.bf16.msra.mxu0 0
  %229 = vmatprep.subr.bf16.mxu0 0
  %230 = vmatpush2.bf16.msra.mxu0 0
  %231 = vmatprep.subr.bf16.mxu0 0
  %232 = vmatpush2.bf16.msra.mxu0 0
  %233 = vmatprep.subr.bf16.mxu0 0
  %234 = vmatpush2.bf16.msra.mxu0 0
  %235 = vmatprep.subr.bf16.mxu0 0
  %236 = vmatpush2.bf16.msra.mxu0 0
  %237 = vmatprep.subr.bf16.mxu0 0
  %238 = vmatpush2.bf16.msra.mxu0 0
  %239 = vmatprep.mubr.bf16.mxu0 0
  %240 = vmatmul.mubr.bf16.gmra.mxu0 %v160
  %v241 = vpop.f32.mrf.mxu0
  %v242 = vadd.f32 0.0, %v241
  %v243 = vpop.f32.mrf.mxu0
  %v244 = vpop.f32.mrf.mxu0
  %v245 = vadd.f32 0.0, %v244
  %v246 = vpop.f32.mrf.mxu0
  %247 = vmatprep.mubr.bf16.mxu0 0
  %248 = vmatmul.mubr.bf16.gmra.mxu0 %v163
  %v249 = vpop.f32.mrf.mxu0
  %v250 = vadd.f32 0.0, %v249
  %v251 = vpop.f32.mrf.mxu0
  %v252 = vpop.f32.mrf.mxu0
  %v253 = vadd.f32 0.0, %v252
  %v254 = vpop.f32.mrf.mxu0
  %255 = vmatprep.mubr.bf16.mxu0 0
  %256 = vmatmul.mubr.bf16.gmra.mxu0 %v166
  %v257 = vpop.f32.mrf.mxu0
  %v258 = vadd.f32 0.0, %v257
  %v259 = vpop.f32.mrf.mxu0
  %v260 = vpop.f32.mrf.mxu0
  %v261 = vadd.f32 0.0, %v260
  %v262 = vpop.f32.mrf.mxu0
  %263 = vmatprep.mubr.bf16.mxu0 0
  %264 = vmatmul.mubr.bf16.gmra.mxu0 %v169
  %v265 = vpop.f32.mrf.mxu0
  %v266 = vadd.f32 0.0, %v265
  %v267 = vpop.f32.mrf.mxu0
  %v268 = vpop.f32.mrf.mxu0
  %v269 = vadd.f32 0.0, %v268
  %v270 = vpop.f32.mrf.mxu0
  %271 = vmatprep.mubr.bf16.mxu0 0
  %272 = vmatmul.mubr.bf16.gmra.mxu0 %v172
  %v273 = vpop.f32.mrf.mxu0
  %v274 = vadd.f32 0.0, %v273
  %v275 = vpop.f32.mrf.mxu0
  %v276 = vpop.f32.mrf.mxu0
  %v277 = vadd.f32 0.0, %v276
  %v278 = vpop.f32.mrf.mxu0
  %279 = vmatprep.mubr.bf16.mxu0 0
  %280 = vmatmul.mubr.bf16.gmra.mxu0 %v175
  %v281 = vpop.f32.mrf.mxu0
  %v282 = vadd.f32 0.0, %v281
  %v283 = vpop.f32.mrf.mxu0
  %v284 = vpop.f32.mrf.mxu0
  %v285 = vadd.f32 0.0, %v284
  %v286 = vpop.f32.mrf.mxu0
  %287 = vmatprep.mubr.bf16.mxu0 0
  %288 = vmatmul.mubr.bf16.gmra.mxu0 %v178
  %v289 = vpop.f32.mrf.mxu0
  %v290 = vadd.f32 0.0, %v289
  %v291 = vpop.f32.mrf.mxu0
  %v292 = vpop.f32.mrf.mxu0
  %v293 = vadd.f32 0.0, %v292
  %v294 = vpop.f32.mrf.mxu0
  %295 = vmatprep.mubr.bf16.mxu0 0
  %296 = vmatmul.mubr.bf16.gmra.mxu0 %v181
  %v297 = vpop.f32.mrf.mxu0
  %v298 = vadd.f32 0.0, %v297
  %v299 = vpop.f32.mrf.mxu0
  %v300 = vpop.f32.mrf.mxu0
  %v301 = vadd.f32 0.0, %v300
  %v302 = vpop.f32.mrf.mxu0
  %303 = vmatprep.mubr.bf16.mxu0 0
  %304 = vmatmul.mubr.bf16.gmra.mxu0 %v184
  %v305 = vpop.f32.mrf.mxu0
  %v306 = vadd.f32 0.0, %v305
  %v307 = vpop.f32.mrf.mxu0
  %v308 = vpop.f32.mrf.mxu0
  %v309 = vadd.f32 0.0, %v308
  %v310 = vpop.f32.mrf.mxu0
  %311 = vmatprep.mubr.bf16.mxu0 0
  %312 = vmatmul.mubr.bf16.gmra.mxu0 %v187
  %v313 = vpop.f32.mrf.mxu0
  %v314 = vadd.f32 0.0, %v313
  %v315 = vpop.f32.mrf.mxu0
  %v316 = vpop.f32.mrf.mxu0
  %v317 = vadd.f32 0.0, %v316
  %v318 = vpop.f32.mrf.mxu0
  %319 = vmatprep.mubr.bf16.mxu0 0
  %320 = vmatmul.mubr.bf16.gmra.mxu0 %v190
  %v321 = vpop.f32.mrf.mxu0
  %v322 = vadd.f32 0.0, %v321
  %v323 = vpop.f32.mrf.mxu0
  %v324 = vpop.f32.mrf.mxu0
  %v325 = vadd.f32 0.0, %v324
  %v326 = vpop.f32.mrf.mxu0
  %327 = vmatprep.mubr.bf16.mxu0 0
  %328 = vmatmul.mubr.bf16.gmra.mxu0 %v193
  %v329 = vpop.f32.mrf.mxu0
  %v330 = vadd.f32 0.0, %v329
  %v331 = vpop.f32.mrf.mxu0
  %v332 = vpop.f32.mrf.mxu0
  %v333 = vadd.f32 0.0, %v332
  %v334 = vpop.f32.mrf.mxu0
  %335 = vmatprep.mubr.bf16.mxu0 0
  %336 = vmatmul.mubr.bf16.gmra.mxu0 %v196
  %v337 = vpop.f32.mrf.mxu0
  %v338 = vadd.f32 0.0, %v337
  %v339 = vpop.f32.mrf.mxu0
  %v340 = vpop.f32.mrf.mxu0
  %v341 = vadd.f32 0.0, %v340
  %v342 = vpop.f32.mrf.mxu0
  %343 = vmatprep.mubr.bf16.mxu0 0
  %344 = vmatmul.mubr.bf16.gmra.mxu0 %v199
  %v345 = vpop.f32.mrf.mxu0
  %v346 = vadd.f32 0.0, %v345
  %v347 = vpop.f32.mrf.mxu0
  %v348 = vpop.f32.mrf.mxu0
  %v349 = vadd.f32 0.0, %v348
  %v350 = vpop.f32.mrf.mxu0
  %351 = vmatprep.mubr.bf16.mxu0 0
  %352 = vmatmul.mubr.bf16.gmra.mxu0 %v202
  %v353 = vpop.f32.mrf.mxu0
  %v354 = vadd.f32 0.0, %v353
  %v355 = vpop.f32.mrf.mxu0
  %v356 = vpop.f32.mrf.mxu0
  %v357 = vadd.f32 0.0, %v356
  %v358 = vpop.f32.mrf.mxu0
  %359 = vmatprep.mubr.bf16.mxu0 0
  %360 = vmatmul.mubr.bf16.gmra.mxu0 %v205
  %v361 = vpop.f32.mrf.mxu0
  %v362 = vadd.f32 0.0, %v361
  %v363 = vpop.f32.mrf.mxu0
  %v364 = vpop.f32.mrf.mxu0
  %v365 = vadd.f32 0.0, %v364
  %v366 = vpop.f32.mrf.mxu0
  %367 = vdwg.mxu0
  %v368 = vpack.c.bf16 %v245, %v242
  %v369 = vpack.c.bf16 %v253, %v250
  %v370 = vpack.c.bf16 %v261, %v258
  %v371 = vpack.c.bf16 %v269, %v266
  %v372 = vpack.c.bf16 %v277, %v274
  %v373 = vpack.c.bf16 %v285, %v282
  %v374 = vpack.c.bf16 %v293, %v290
  %v375 = vpack.c.bf16 %v301, %v298
  %v376 = vpack.c.bf16 %v309, %v306
  %v377 = vpack.c.bf16 %v317, %v314
  %v378 = vpack.c.bf16 %v325, %v322
  %v379 = vpack.c.bf16 %v333, %v330
  %v380 = vpack.c.bf16 %v341, %v338
  %v381 = vpack.c.bf16 %v349, %v346
  %v382 = vpack.c.bf16 %v357, %v354
  %v383 = vpack.c.bf16 %v365, %v362
  %v384 = vld [vmem:[%s1] sm:$0xff]
  %v385 = vld [vmem:[%s1 + $0x8] sm:$0xff]
  %v386 = vld [vmem:[%s1 + $0x30] sm:$0xff]
  %v387 = vld [vmem:[%s1 + $0x38] sm:$0xff]
  %v388 = vld [vmem:[%s1 + $0x60] sm:$0xff]
  %v389 = vld [vmem:[%s1 + $0x68] sm:$0xff]
  %v390 = vld [vmem:[%s1 + $0x90] sm:$0xff]
  %v391 = vld [vmem:[%s1 + $0x98] sm:$0xff]
  %v392 = vld [vmem:[%s1 + $0xc0] sm:$0xff]
  %v393 = vld [vmem:[%s1 + $0xc8] sm:$0xff]
  %v394 = vld [vmem:[%s1 + $0xf0] sm:$0xff]
  %v395 = vld [vmem:[%s1 + $0xf8] sm:$0xff]
  %v396 = vld [vmem:[%s1 + $0x120] sm:$0xff]
  %v397 = vld [vmem:[%s1 + $0x128] sm:$0xff]
  %v398 = vld [vmem:[%s1 + $0x150] sm:$0xff]
  %v399 = vld [vmem:[%s1 + $0x158] sm:$0xff]
  %v400 = vunpack.c.l.s8.bf16 %v384
  %v401 = vunpack.c.l.s8.bf16 %v385
  %v402 = vunpack.c.h.s8.bf16 %v384
  %v403 = vunpack.c.h.s8.bf16 %v385
  %v404 = vunpack.c.l.s8.bf16 %v386
  %v405 = vunpack.c.l.s8.bf16 %v387
  %v406 = vunpack.c.h.s8.bf16 %v386
  %v407 = vunpack.c.h.s8.bf16 %v387
  %v408 = vunpack.c.l.s8.bf16 %v388
  %v409 = vunpack.c.l.s8.bf16 %v389
  %v410 = vunpack.c.h.s8.bf16 %v388
  %v411 = vunpack.c.h.s8.bf16 %v389
  %v412 = vunpack.c.l.s8.bf16 %v390
  %v413 = vunpack.c.l.s8.bf16 %v391
  %v414 = vunpack.c.h.s8.bf16 %v390
  %v415 = vunpack.c.h.s8.bf16 %v391
  %v416 = vunpack.c.l.s8.bf16 %v392
  %v417 = vunpack.c.l.s8.bf16 %v393
  %v418 = vunpack.c.h.s8.bf16 %v392
  %v419 = vunpack.c.h.s8.bf16 %v393
  %v420 = vunpack.c.l.s8.bf16 %v394
  %v421 = vunpack.c.l.s8.bf16 %v395
  %v422 = vunpack.c.h.s8.bf16 %v394
  %v423 = vunpack.c.h.s8.bf16 %v395
  %v424 = vunpack.c.l.s8.bf16 %v396
  %v425 = vunpack.c.l.s8.bf16 %v397
  %v426 = vunpack.c.h.s8.bf16 %v396
  %v427 = vunpack.c.h.s8.bf16 %v397
  %v428 = vunpack.c.l.s8.bf16 %v398
  %v429 = vunpack.c.l.s8.bf16 %v399
  %v430 = vunpack.c.h.s8.bf16 %v398
  %v431 = vunpack.c.h.s8.bf16 %v399
  %v432 = vld [vmem:[%s1 + $0x10] sm:$0xff]
  %v433 = vld [vmem:[%s1 + $0x18] sm:$0xff]
  %v434 = vld [vmem:[%s1 + $0x40] sm:$0xff]
  %v435 = vld [vmem:[%s1 + $0x48] sm:$0xff]
  %v436 = vld [vmem:[%s1 + $0x70] sm:$0xff]
  %v437 = vld [vmem:[%s1 + $0x78] sm:$0xff]
  %v438 = vld [vmem:[%s1 + $0xa0] sm:$0xff]
  %v439 = vld [vmem:[%s1 + $0xa8] sm:$0xff]
  %v440 = vld [vmem:[%s1 + $0xd0] sm:$0xff]
  %v441 = vld [vmem:[%s1 + $0xd8] sm:$0xff]
  %v442 = vld [vmem:[%s1 + $0x100] sm:$0xff]
  %v443 = vld [vmem:[%s1 + $0x108] sm:$0xff]
  %v444 = vld [vmem:[%s1 + $0x130] sm:$0xff]
  %v445 = vld [vmem:[%s1 + $0x138] sm:$0xff]
  %v446 = vld [vmem:[%s1 + $0x160] sm:$0xff]
  %v447 = vld [vmem:[%s1 + $0x168] sm:$0xff]
  %v448 = vunpack.c.l.s8.bf16 %v432
  %v449 = vunpack.c.l.s8.bf16 %v433
  %v450 = vunpack.c.h.s8.bf16 %v432
  %v451 = vunpack.c.h.s8.bf16 %v433
  %v452 = vunpack.c.l.s8.bf16 %v434
  %v453 = vunpack.c.l.s8.bf16 %v435
  %v454 = vunpack.c.h.s8.bf16 %v434
  %v455 = vunpack.c.h.s8.bf16 %v435
  %v456 = vunpack.c.l.s8.bf16 %v436
  %v457 = vunpack.c.l.s8.bf16 %v437
  %v458 = vunpack.c.h.s8.bf16 %v436
  %v459 = vunpack.c.h.s8.bf16 %v437
  %v460 = vunpack.c.l.s8.bf16 %v438
  %v461 = vunpack.c.l.s8.bf16 %v439
  %v462 = vunpack.c.h.s8.bf16 %v438
  %v463 = vunpack.c.h.s8.bf16 %v439
  %v464 = vunpack.c.l.s8.bf16 %v440
  %v465 = vunpack.c.l.s8.bf16 %v441
  %v466 = vunpack.c.h.s8.bf16 %v440
  %v467 = vunpack.c.h.s8.bf16 %v441
  %v468 = vunpack.c.l.s8.bf16 %v442
  %v469 = vunpack.c.l.s8.bf16 %v443
  %v470 = vunpack.c.h.s8.bf16 %v442
  %v471 = vunpack.c.h.s8.bf16 %v443
  %v472 = vunpack.c.l.s8.bf16 %v444
  %v473 = vunpack.c.l.s8.bf16 %v445
  %v474 = vunpack.c.h.s8.bf16 %v444
  %v475 = vunpack.c.h.s8.bf16 %v445
  %v476 = vunpack.c.l.s8.bf16 %v446
  %v477 = vunpack.c.l.s8.bf16 %v447
  %v478 = vunpack.c.h.s8.bf16 %v446
  %v479 = vunpack.c.h.s8.bf16 %v447
  %496 = vrot.lane.b32.xlu0 %v368, 96
  %v497 = vpop.permute.xlu0 %496
  %498 = vrot.lane.b32.xlu0 %v369, 96
  %v499 = vpop.permute.xlu0 %498
  %500 = vrot.lane.b32.xlu0 %v370, 96
  %v501 = vpop.permute.xlu0 %500
  %502 = vrot.lane.b32.xlu0 %v371, 96
  %v503 = vpop.permute.xlu0 %502
  %504 = vrot.lane.b32.xlu0 %v372, 96
  %v505 = vpop.permute.xlu0 %504
  %506 = vrot.lane.b32.xlu0 %v373, 96
  %v507 = vpop.permute.xlu0 %506
  %508 = vrot.lane.b32.xlu0 %v374, 96
  %v509 = vpop.permute.xlu0 %508
  %510 = vrot.lane.b32.xlu0 %v375, 96
  %v511 = vpop.permute.xlu0 %510
  %512 = vrot.lane.b32.xlu0 %v376, 96
  %v513 = vpop.permute.xlu0 %512
  %514 = vrot.lane.b32.xlu0 %v377, 96
  %v515 = vpop.permute.xlu0 %514
  %516 = vrot.lane.b32.xlu0 %v378, 96
  %v517 = vpop.permute.xlu0 %516
  %518 = vrot.lane.b32.xlu0 %v379, 96
  %v519 = vpop.permute.xlu0 %518
  %520 = vrot.lane.b32.xlu0 %v380, 96
  %v521 = vpop.permute.xlu0 %520
  %522 = vrot.lane.b32.xlu0 %v381, 96
  %v523 = vpop.permute.xlu0 %522
  %524 = vrot.lane.b32.xlu0 %v382, 96
  %v525 = vpop.permute.xlu0 %524
  %526 = vrot.lane.b32.xlu0 %v383, 96
  %v527 = vpop.permute.xlu0 %526
  %544 = vmatprep.subr.bf16.mxu0 0
  %545 = vmatpush1.bf16.msra.mxu0 %v511
  %546 = vmatprep.subr.bf16.mxu0 0
  %547 = vmatpush1.bf16.msra.mxu0 %v509
  %548 = vmatprep.subr.bf16.mxu0 0
  %549 = vmatpush1.bf16.msra.mxu0 %v507
  %550 = vmatprep.subr.bf16.mxu0 0
  %551 = vmatpush1.bf16.msra.mxu0 %v505
  %552 = vmatprep.subr.bf16.mxu0 0
  %553 = vmatpush1.bf16.msra.mxu0 %v503
  %554 = vmatprep.subr.bf16.mxu0 0
  %555 = vmatpush1.bf16.msra.mxu0 %v501
  %556 = vmatprep.subr.bf16.mxu0 0
  %557 = vmatpush1.bf16.msra.mxu0 %v499
  %558 = vmatprep.subr.bf16.mxu0 0
  %559 = vmatpush1.bf16.msra.mxu0 %v497
  %560 = vmatprep.subr.bf16.mxu0 0
  %561 = vmatpush2.bf16.msra.mxu0 %v527
  %562 = vmatprep.subr.bf16.mxu0 0
  %563 = vmatpush2.bf16.msra.mxu0 %v525
  %564 = vmatprep.subr.bf16.mxu0 0
  %565 = vmatpush2.bf16.msra.mxu0 %v523
  %566 = vmatprep.subr.bf16.mxu0 0
  %567 = vmatpush2.bf16.msra.mxu0 %v521
  %568 = vmatprep.subr.bf16.mxu0 0
  %569 = vmatpush2.bf16.msra.mxu0 %v519
  %570 = vmatprep.subr.bf16.mxu0 0
  %571 = vmatpush2.bf16.msra.mxu0 %v517
  %572 = vmatprep.subr.bf16.mxu0 0
  %573 = vmatpush2.bf16.msra.mxu0 %v515
  %574 = vmatprep.subr.bf16.mxu0 0
  %575 = vmatpush2.bf16.msra.mxu0 %v513
  %576 = vmatprep.mubr.bf16.mxu0 %v449
  %577 = vmatmul.mubr.bf16.gmra.mxu0 %v448
  %v578 = vpop.f32.mrf.mxu0
  %v579 = vadd.f32 0.0, %v578
  %v580 = vpop.f32.mrf.mxu0
  %v581 = vpop.f32.mrf.mxu0
  %v582 = vadd.f32 0.0, %v581
  %v583 = vpop.f32.mrf.mxu0
  %584 = vmatprep.mubr.bf16.mxu0 %v451
  %585 = vmatmul.mubr.bf16.gmra.mxu0 %v450
  %v586 = vpop.f32.mrf.mxu0
  %v587 = vadd.f32 0.0, %v586
  %v588 = vpop.f32.mrf.mxu0
  %v589 = vpop.f32.mrf.mxu0
  %v590 = vadd.f32 0.0, %v589
  %v591 = vpop.f32.mrf.mxu0
  %592 = vmatprep.mubr.bf16.mxu0 %v453
  %593 = vmatmul.mubr.bf16.gmra.mxu0 %v452
  %v594 = vpop.f32.mrf.mxu0
  %v595 = vadd.f32 0.0, %v594
  %v596 = vpop.f32.mrf.mxu0
  %v597 = vpop.f32.mrf.mxu0
  %v598 = vadd.f32 0.0, %v597
  %v599 = vpop.f32.mrf.mxu0
  %600 = vmatprep.mubr.bf16.mxu0 %v455
  %601 = vmatmul.mubr.bf16.gmra.mxu0 %v454
  %v602 = vpop.f32.mrf.mxu0
  %v603 = vadd.f32 0.0, %v602
  %v604 = vpop.f32.mrf.mxu0
  %v605 = vpop.f32.mrf.mxu0
  %v606 = vadd.f32 0.0, %v605
  %v607 = vpop.f32.mrf.mxu0
  %608 = vmatprep.mubr.bf16.mxu0 %v457
  %609 = vmatmul.mubr.bf16.gmra.mxu0 %v456
  %v610 = vpop.f32.mrf.mxu0
  %v611 = vadd.f32 0.0, %v610
  %v612 = vpop.f32.mrf.mxu0
  %v613 = vpop.f32.mrf.mxu0
  %v614 = vadd.f32 0.0, %v613
  %v615 = vpop.f32.mrf.mxu0
  %616 = vmatprep.mubr.bf16.mxu0 %v459
  %617 = vmatmul.mubr.bf16.gmra.mxu0 %v458
  %v618 = vpop.f32.mrf.mxu0
  %v619 = vadd.f32 0.0, %v618
  %v620 = vpop.f32.mrf.mxu0
  %v621 = vpop.f32.mrf.mxu0
  %v622 = vadd.f32 0.0, %v621
  %v623 = vpop.f32.mrf.mxu0
  %624 = vmatprep.mubr.bf16.mxu0 %v461
  %625 = vmatmul.mubr.bf16.gmra.mxu0 %v460
  %v626 = vpop.f32.mrf.mxu0
  %v627 = vadd.f32 0.0, %v626
  %v628 = vpop.f32.mrf.mxu0
  %v629 = vpop.f32.mrf.mxu0
  %v630 = vadd.f32 0.0, %v629
  %v631 = vpop.f32.mrf.mxu0
  %632 = vmatprep.mubr.bf16.mxu0 %v463
  %633 = vmatmul.mubr.bf16.gmra.mxu0 %v462
  %v634 = vpop.f32.mrf.mxu0
  %v635 = vadd.f32 0.0, %v634
  %v636 = vpop.f32.mrf.mxu0
  %v637 = vpop.f32.mrf.mxu0
  %v638 = vadd.f32 0.0, %v637
  %v639 = vpop.f32.mrf.mxu0
  %640 = vmatprep.mubr.bf16.mxu0 %v465
  %641 = vmatmul.mubr.bf16.gmra.mxu0 %v464
  %v642 = vpop.f32.mrf.mxu0
  %v643 = vadd.f32 0.0, %v642
  %v644 = vpop.f32.mrf.mxu0
  %v645 = vpop.f32.mrf.mxu0
  %v646 = vadd.f32 0.0, %v645
  %v647 = vpop.f32.mrf.mxu0
  %648 = vmatprep.mubr.bf16.mxu0 %v467
  %649 = vmatmul.mubr.bf16.gmra.mxu0 %v466
  %v650 = vpop.f32.mrf.mxu0
  %v651 = vadd.f32 0.0, %v650
  %v652 = vpop.f32.mrf.mxu0
  %v653 = vpop.f32.mrf.mxu0
  %v654 = vadd.f32 0.0, %v653
  %v655 = vpop.f32.mrf.mxu0
  %656 = vmatprep.mubr.bf16.mxu0 %v469
  %657 = vmatmul.mubr.bf16.gmra.mxu0 %v468
  %v658 = vpop.f32.mrf.mxu0
  %v659 = vadd.f32 0.0, %v658
  %v660 = vpop.f32.mrf.mxu0
  %v661 = vpop.f32.mrf.mxu0
  %v662 = vadd.f32 0.0, %v661
  %v663 = vpop.f32.mrf.mxu0
  %664 = vmatprep.mubr.bf16.mxu0 %v471
  %665 = vmatmul.mubr.bf16.gmra.mxu0 %v470
  %v666 = vpop.f32.mrf.mxu0
  %v667 = vadd.f32 0.0, %v666
  %v668 = vpop.f32.mrf.mxu0
  %v669 = vpop.f32.mrf.mxu0
  %v670 = vadd.f32 0.0, %v669
  %v671 = vpop.f32.mrf.mxu0
  %672 = vmatprep.mubr.bf16.mxu0 %v473
  %673 = vmatmul.mubr.bf16.gmra.mxu0 %v472
  %v674 = vpop.f32.mrf.mxu0
  %v675 = vadd.f32 0.0, %v674
  %v676 = vpop.f32.mrf.mxu0
  %v677 = vpop.f32.mrf.mxu0
  %v678 = vadd.f32 0.0, %v677
  %v679 = vpop.f32.mrf.mxu0
  %680 = vmatprep.mubr.bf16.mxu0 %v475
  %681 = vmatmul.mubr.bf16.gmra.mxu0 %v474
  %v682 = vpop.f32.mrf.mxu0
  %v683 = vadd.f32 0.0, %v682
  %v684 = vpop.f32.mrf.mxu0
  %v685 = vpop.f32.mrf.mxu0
  %v686 = vadd.f32 0.0, %v685
  %v687 = vpop.f32.mrf.mxu0
  %688 = vmatprep.mubr.bf16.mxu0 %v477
  %689 = vmatmul.mubr.bf16.gmra.mxu0 %v476
  %v690 = vpop.f32.mrf.mxu0
  %v691 = vadd.f32 0.0, %v690
  %v692 = vpop.f32.mrf.mxu0
  %v693 = vpop.f32.mrf.mxu0
  %v694 = vadd.f32 0.0, %v693
  %v695 = vpop.f32.mrf.mxu0
  %696 = vmatprep.mubr.bf16.mxu0 %v479
  %697 = vmatmul.mubr.bf16.gmra.mxu0 %v478
  %v698 = vpop.f32.mrf.mxu0
  %v699 = vadd.f32 0.0, %v698
  %v700 = vpop.f32.mrf.mxu0
  %v701 = vpop.f32.mrf.mxu0
  %v702 = vadd.f32 0.0, %v701
  %v703 = vpop.f32.mrf.mxu0
  %704 = vdwg.mxu0
  %705 = vmatprep.subr.bf16.mxu0 0
  %706 = vmatpush1.bf16.msra.mxu0 %v375
  %707 = vmatprep.subr.bf16.mxu0 0
  %708 = vmatpush1.bf16.msra.mxu0 %v374
  %709 = vmatprep.subr.bf16.mxu0 0
  %710 = vmatpush1.bf16.msra.mxu0 %v373
  %711 = vmatprep.subr.bf16.mxu0 0
  %712 = vmatpush1.bf16.msra.mxu0 %v372
  %713 = vmatprep.subr.bf16.mxu0 0
  %714 = vmatpush1.bf16.msra.mxu0 %v371
  %715 = vmatprep.subr.bf16.mxu0 0
  %716 = vmatpush1.bf16.msra.mxu0 %v370
  %717 = vmatprep.subr.bf16.mxu0 0
  %718 = vmatpush1.bf16.msra.mxu0 %v369
  %719 = vmatprep.subr.bf16.mxu0 0
  %720 = vmatpush1.bf16.msra.mxu0 %v368
  %721 = vmatprep.subr.bf16.mxu0 0
  %722 = vmatpush2.bf16.msra.mxu0 %v383
  %723 = vmatprep.subr.bf16.mxu0 0
  %724 = vmatpush2.bf16.msra.mxu0 %v382
  %725 = vmatprep.subr.bf16.mxu0 0
  %726 = vmatpush2.bf16.msra.mxu0 %v381
  %727 = vmatprep.subr.bf16.mxu0 0
  %728 = vmatpush2.bf16.msra.mxu0 %v380
  %729 = vmatprep.subr.bf16.mxu0 0
  %730 = vmatpush2.bf16.msra.mxu0 %v379
  %731 = vmatprep.subr.bf16.mxu0 0
  %732 = vmatpush2.bf16.msra.mxu0 %v378
  %733 = vmatprep.subr.bf16.mxu0 0
  %734 = vmatpush2.bf16.msra.mxu0 %v377
  %735 = vmatprep.subr.bf16.mxu0 0
  %736 = vmatpush2.bf16.msra.mxu0 %v376
  %737 = vmatprep.mubr.bf16.mxu0 %v401
  %738 = vmatmul.mubr.bf16.gmra.mxu0 %v400
  %v739 = vpop.f32.mrf.mxu0
  %v740 = vadd.f32 %v579, %v739
  %v741 = vpop.f32.mrf.mxu0
  %v742 = vpop.f32.mrf.mxu0
  %v743 = vadd.f32 %v582, %v742
  %v744 = vpop.f32.mrf.mxu0
  %745 = vmatprep.mubr.bf16.mxu0 %v403
  %746 = vmatmul.mubr.bf16.gmra.mxu0 %v402
  %v747 = vpop.f32.mrf.mxu0
  %v748 = vadd.f32 %v587, %v747
  %v749 = vpop.f32.mrf.mxu0
  %v750 = vpop.f32.mrf.mxu0
  %v751 = vadd.f32 %v590, %v750
  %v752 = vpop.f32.mrf.mxu0
  %753 = vmatprep.mubr.bf16.mxu0 %v405
  %754 = vmatmul.mubr.bf16.gmra.mxu0 %v404
  %v755 = vpop.f32.mrf.mxu0
  %v756 = vadd.f32 %v595, %v755
  %v757 = vpop.f32.mrf.mxu0
  %v758 = vpop.f32.mrf.mxu0
  %v759 = vadd.f32 %v598, %v758
  %v760 = vpop.f32.mrf.mxu0
  %761 = vmatprep.mubr.bf16.mxu0 %v407
  %762 = vmatmul.mubr.bf16.gmra.mxu0 %v406
  %v763 = vpop.f32.mrf.mxu0
  %v764 = vadd.f32 %v603, %v763
  %v765 = vpop.f32.mrf.mxu0
  %v766 = vpop.f32.mrf.mxu0
  %v767 = vadd.f32 %v606, %v766
  %v768 = vpop.f32.mrf.mxu0
  %769 = vmatprep.mubr.bf16.mxu0 %v409
  %770 = vmatmul.mubr.bf16.gmra.mxu0 %v408
  %v771 = vpop.f32.mrf.mxu0
  %v772 = vadd.f32 %v611, %v771
  %v773 = vpop.f32.mrf.mxu0
  %v774 = vpop.f32.mrf.mxu0
  %v775 = vadd.f32 %v614, %v774
  %v776 = vpop.f32.mrf.mxu0
  %777 = vmatprep.mubr.bf16.mxu0 %v411
  %778 = vmatmul.mubr.bf16.gmra.mxu0 %v410
  %v779 = vpop.f32.mrf.mxu0
  %v780 = vadd.f32 %v619, %v779
  %v781 = vpop.f32.mrf.mxu0
  %v782 = vpop.f32.mrf.mxu0
  %v783 = vadd.f32 %v622, %v782
  %v784 = vpop.f32.mrf.mxu0
  %785 = vmatprep.mubr.bf16.mxu0 %v413
  %786 = vmatmul.mubr.bf16.gmra.mxu0 %v412
  %v787 = vpop.f32.mrf.mxu0
  %v788 = vadd.f32 %v627, %v787
  %v789 = vpop.f32.mrf.mxu0
  %v790 = vpop.f32.mrf.mxu0
  %v791 = vadd.f32 %v630, %v790
  %v792 = vpop.f32.mrf.mxu0
  %793 = vmatprep.mubr.bf16.mxu0 %v415
  %794 = vmatmul.mubr.bf16.gmra.mxu0 %v414
  %v795 = vpop.f32.mrf.mxu0
  %v796 = vadd.f32 %v635, %v795
  %v797 = vpop.f32.mrf.mxu0
  %v798 = vpop.f32.mrf.mxu0
  %v799 = vadd.f32 %v638, %v798
  %v800 = vpop.f32.mrf.mxu0
  %801 = vmatprep.mubr.bf16.mxu0 %v417
  %802 = vmatmul.mubr.bf16.gmra.mxu0 %v416
  %v803 = vpop.f32.mrf.mxu0
  %v804 = vadd.f32 %v643, %v803
  %v805 = vpop.f32.mrf.mxu0
  %v806 = vpop.f32.mrf.mxu0
  %v807 = vadd.f32 %v646, %v806
  %v808 = vpop.f32.mrf.mxu0
  %809 = vmatprep.mubr.bf16.mxu0 %v419
  %810 = vmatmul.mubr.bf16.gmra.mxu0 %v418
  %v811 = vpop.f32.mrf.mxu0
  %v812 = vadd.f32 %v651, %v811
  %v813 = vpop.f32.mrf.mxu0
  %v814 = vpop.f32.mrf.mxu0
  %v815 = vadd.f32 %v654, %v814
  %v816 = vpop.f32.mrf.mxu0
  %817 = vmatprep.mubr.bf16.mxu0 %v421
  %818 = vmatmul.mubr.bf16.gmra.mxu0 %v420
  %v819 = vpop.f32.mrf.mxu0
  %v820 = vadd.f32 %v659, %v819
  %v821 = vpop.f32.mrf.mxu0
  %v822 = vpop.f32.mrf.mxu0
  %v823 = vadd.f32 %v662, %v822
  %v824 = vpop.f32.mrf.mxu0
  %825 = vmatprep.mubr.bf16.mxu0 %v423
  %826 = vmatmul.mubr.bf16.gmra.mxu0 %v422
  %v827 = vpop.f32.mrf.mxu0
  %v828 = vadd.f32 %v667, %v827
  %v829 = vpop.f32.mrf.mxu0
  %v830 = vpop.f32.mrf.mxu0
  %v831 = vadd.f32 %v670, %v830
  %v832 = vpop.f32.mrf.mxu0
  %833 = vmatprep.mubr.bf16.mxu0 %v425
  %834 = vmatmul.mubr.bf16.gmra.mxu0 %v424
  %v835 = vpop.f32.mrf.mxu0
  %v836 = vadd.f32 %v675, %v835
  %v837 = vpop.f32.mrf.mxu0
  %v838 = vpop.f32.mrf.mxu0
  %v839 = vadd.f32 %v678, %v838
  %v840 = vpop.f32.mrf.mxu0
  %841 = vmatprep.mubr.bf16.mxu0 %v427
  %842 = vmatmul.mubr.bf16.gmra.mxu0 %v426
  %v843 = vpop.f32.mrf.mxu0
  %v844 = vadd.f32 %v683, %v843
  %v845 = vpop.f32.mrf.mxu0
  %v846 = vpop.f32.mrf.mxu0
  %v847 = vadd.f32 %v686, %v846
  %v848 = vpop.f32.mrf.mxu0
  %849 = vmatprep.mubr.bf16.mxu0 %v429
  %850 = vmatmul.mubr.bf16.gmra.mxu0 %v428
  %v851 = vpop.f32.mrf.mxu0
  %v852 = vadd.f32 %v691, %v851
  %v853 = vpop.f32.mrf.mxu0
  %v854 = vpop.f32.mrf.mxu0
  %v855 = vadd.f32 %v694, %v854
  %v856 = vpop.f32.mrf.mxu0
  %857 = vmatprep.mubr.bf16.mxu0 %v431
  %858 = vmatmul.mubr.bf16.gmra.mxu0 %v430
  %v859 = vpop.f32.mrf.mxu0
  %v860 = vadd.f32 %v699, %v859
  %v861 = vpop.f32.mrf.mxu0
  %v862 = vpop.f32.mrf.mxu0
  %v863 = vadd.f32 %v702, %v862
  %v864 = vpop.f32.mrf.mxu0
  %865 = vdwg.mxu0
  %v866 = vld [vmem:[%s1 + $0x20] sm:$0xff]
  %v867 = vld [vmem:[%s1 + $0x28] sm:$0xff]
  %v868 = vld [vmem:[%s1 + $0x50] sm:$0xff]
  %v869 = vld [vmem:[%s1 + $0x58] sm:$0xff]
  %v870 = vld [vmem:[%s1 + $0x80] sm:$0xff]
  %v871 = vld [vmem:[%s1 + $0x88] sm:$0xff]
  %v872 = vld [vmem:[%s1 + $0xb0] sm:$0xff]
  %v873 = vld [vmem:[%s1 + $0xb8] sm:$0xff]
  %v874 = vld [vmem:[%s1 + $0xe0] sm:$0xff]
  %v875 = vld [vmem:[%s1 + $0xe8] sm:$0xff]
  %v876 = vld [vmem:[%s1 + $0x110] sm:$0xff]
  %v877 = vld [vmem:[%s1 + $0x118] sm:$0xff]
  %v878 = vld [vmem:[%s1 + $0x140] sm:$0xff]
  %v879 = vld [vmem:[%s1 + $0x148] sm:$0xff]
  %v880 = vld [vmem:[%s1 + $0x170] sm:$0xff]
  %v881 = vld [vmem:[%s1 + $0x178] sm:$0xff]
  %v882 = vunpack.c.l.s8.bf16 %v866
  %v883 = vunpack.c.l.s8.bf16 %v867
  %v884 = vunpack.c.h.s8.bf16 %v866
  %v885 = vunpack.c.h.s8.bf16 %v867
  %v886 = vunpack.c.l.s8.bf16 %v868
  %v887 = vunpack.c.l.s8.bf16 %v869
  %v888 = vunpack.c.h.s8.bf16 %v868
  %v889 = vunpack.c.h.s8.bf16 %v869
  %v890 = vunpack.c.l.s8.bf16 %v870
  %v891 = vunpack.c.l.s8.bf16 %v871
  %v892 = vunpack.c.h.s8.bf16 %v870
  %v893 = vunpack.c.h.s8.bf16 %v871
  %v894 = vunpack.c.l.s8.bf16 %v872
  %v895 = vunpack.c.l.s8.bf16 %v873
  %v896 = vunpack.c.h.s8.bf16 %v872
  %v897 = vunpack.c.h.s8.bf16 %v873
  %v898 = vunpack.c.l.s8.bf16 %v874
  %v899 = vunpack.c.l.s8.bf16 %v875
  %v900 = vunpack.c.h.s8.bf16 %v874
  %v901 = vunpack.c.h.s8.bf16 %v875
  %v902 = vunpack.c.l.s8.bf16 %v876
  %v903 = vunpack.c.l.s8.bf16 %v877
  %v904 = vunpack.c.h.s8.bf16 %v876
  %v905 = vunpack.c.h.s8.bf16 %v877
  %v906 = vunpack.c.l.s8.bf16 %v878
  %v907 = vunpack.c.l.s8.bf16 %v879
  %v908 = vunpack.c.h.s8.bf16 %v878
  %v909 = vunpack.c.h.s8.bf16 %v879
  %v910 = vunpack.c.l.s8.bf16 %v880
  %v911 = vunpack.c.l.s8.bf16 %v881
  %v912 = vunpack.c.h.s8.bf16 %v880
  %v913 = vunpack.c.h.s8.bf16 %v881
  %914 = vrot.lane.b32.xlu0 %v368, 64
  %v915 = vpop.permute.xlu0 %914
  %916 = vrot.lane.b32.xlu0 %v369, 64
  %v917 = vpop.permute.xlu0 %916
  %918 = vrot.lane.b32.xlu0 %v370, 64
  %v919 = vpop.permute.xlu0 %918
  %920 = vrot.lane.b32.xlu0 %v371, 64
  %v921 = vpop.permute.xlu0 %920
  %922 = vrot.lane.b32.xlu0 %v372, 64
  %v923 = vpop.permute.xlu0 %922
  %924 = vrot.lane.b32.xlu0 %v373, 64
  %v925 = vpop.permute.xlu0 %924
  %926 = vrot.lane.b32.xlu0 %v374, 64
  %v927 = vpop.permute.xlu0 %926
  %928 = vrot.lane.b32.xlu0 %v375, 64
  %v929 = vpop.permute.xlu0 %928
  %930 = vrot.lane.b32.xlu0 %v376, 64
  %v931 = vpop.permute.xlu0 %930
  %932 = vrot.lane.b32.xlu0 %v377, 64
  %v933 = vpop.permute.xlu0 %932
  %934 = vrot.lane.b32.xlu0 %v378, 64
  %v935 = vpop.permute.xlu0 %934
  %936 = vrot.lane.b32.xlu0 %v379, 64
  %v937 = vpop.permute.xlu0 %936
  %938 = vrot.lane.b32.xlu0 %v380, 64
  %v939 = vpop.permute.xlu0 %938
  %940 = vrot.lane.b32.xlu0 %v381, 64
  %v941 = vpop.permute.xlu0 %940
  %942 = vrot.lane.b32.xlu0 %v382, 64
  %v943 = vpop.permute.xlu0 %942
  %944 = vrot.lane.b32.xlu0 %v383, 64
  %v945 = vpop.permute.xlu0 %944
  %962 = vmatprep.subr.bf16.mxu0 0
  %963 = vmatpush1.bf16.msra.mxu0 %v929
  %964 = vmatprep.subr.bf16.mxu0 0
  %965 = vmatpush1.bf16.msra.mxu0 %v927
  %966 = vmatprep.subr.bf16.mxu0 0
  %967 = vmatpush1.bf16.msra.mxu0 %v925
  %968 = vmatprep.subr.bf16.mxu0 0
  %969 = vmatpush1.bf16.msra.mxu0 %v923
  %970 = vmatprep.subr.bf16.mxu0 0
  %971 = vmatpush1.bf16.msra.mxu0 %v921
  %972 = vmatprep.subr.bf16.mxu0 0
  %973 = vmatpush1.bf16.msra.mxu0 %v919
  %974 = vmatprep.subr.bf16.mxu0 0
  %975 = vmatpush1.bf16.msra.mxu0 %v917
  %976 = vmatprep.subr.bf16.mxu0 0
  %977 = vmatpush1.bf16.msra.mxu0 %v915
  %978 = vmatprep.subr.bf16.mxu0 0
  %979 = vmatpush2.bf16.msra.mxu0 %v945
  %980 = vmatprep.subr.bf16.mxu0 0
  %981 = vmatpush2.bf16.msra.mxu0 %v943
  %982 = vmatprep.subr.bf16.mxu0 0
  %983 = vmatpush2.bf16.msra.mxu0 %v941
  %984 = vmatprep.subr.bf16.mxu0 0
  %985 = vmatpush2.bf16.msra.mxu0 %v939
  %986 = vmatprep.subr.bf16.mxu0 0
  %987 = vmatpush2.bf16.msra.mxu0 %v937
  %988 = vmatprep.subr.bf16.mxu0 0
  %989 = vmatpush2.bf16.msra.mxu0 %v935
  %990 = vmatprep.subr.bf16.mxu0 0
  %991 = vmatpush2.bf16.msra.mxu0 %v933
  %992 = vmatprep.subr.bf16.mxu0 0
  %993 = vmatpush2.bf16.msra.mxu0 %v931
  %994 = vmatprep.mubr.bf16.mxu0 %v883
  %995 = vmatmul.mubr.bf16.gmra.mxu0 %v882
  %v996 = vpop.f32.mrf.mxu0
  %v997 = vadd.f32 0.0, %v996
  %v998 = vpop.f32.mrf.mxu0
  %v999 = vpop.f32.mrf.mxu0
  %v1000 = vadd.f32 0.0, %v999
  %v1001 = vpop.f32.mrf.mxu0
  %1002 = vmatprep.mubr.bf16.mxu0 %v885
  %1003 = vmatmul.mubr.bf16.gmra.mxu0 %v884
  %v1004 = vpop.f32.mrf.mxu0
  %v1005 = vadd.f32 0.0, %v1004
  %v1006 = vpop.f32.mrf.mxu0
  %v1007 = vpop.f32.mrf.mxu0
  %v1008 = vadd.f32 0.0, %v1007
  %v1009 = vpop.f32.mrf.mxu0
  %1010 = vmatprep.mubr.bf16.mxu0 %v887
  %1011 = vmatmul.mubr.bf16.gmra.mxu0 %v886
  %v1012 = vpop.f32.mrf.mxu0
  %v1013 = vadd.f32 0.0, %v1012
  %v1014 = vpop.f32.mrf.mxu0
  %v1015 = vpop.f32.mrf.mxu0
  %v1016 = vadd.f32 0.0, %v1015
  %v1017 = vpop.f32.mrf.mxu0
  %1018 = vmatprep.mubr.bf16.mxu0 %v889
  %1019 = vmatmul.mubr.bf16.gmra.mxu0 %v888
  %v1020 = vpop.f32.mrf.mxu0
  %v1021 = vadd.f32 0.0, %v1020
  %v1022 = vpop.f32.mrf.mxu0
  %v1023 = vpop.f32.mrf.mxu0
  %v1024 = vadd.f32 0.0, %v1023
  %v1025 = vpop.f32.mrf.mxu0
  %1026 = vmatprep.mubr.bf16.mxu0 %v891
  %1027 = vmatmul.mubr.bf16.gmra.mxu0 %v890
  %v1028 = vpop.f32.mrf.mxu0
  %v1029 = vadd.f32 0.0, %v1028
  %v1030 = vpop.f32.mrf.mxu0
  %v1031 = vpop.f32.mrf.mxu0
  %v1032 = vadd.f32 0.0, %v1031
  %v1033 = vpop.f32.mrf.mxu0
  %1034 = vmatprep.mubr.bf16.mxu0 %v893
  %1035 = vmatmul.mubr.bf16.gmra.mxu0 %v892
  %v1036 = vpop.f32.mrf.mxu0
  %v1037 = vadd.f32 0.0, %v1036
  %v1038 = vpop.f32.mrf.mxu0
  %v1039 = vpop.f32.mrf.mxu0
  %v1040 = vadd.f32 0.0, %v1039
  %v1041 = vpop.f32.mrf.mxu0
  %1042 = vmatprep.mubr.bf16.mxu0 %v895
  %1043 = vmatmul.mubr.bf16.gmra.mxu0 %v894
  %v1044 = vpop.f32.mrf.mxu0
  %v1045 = vadd.f32 0.0, %v1044
  %v1046 = vpop.f32.mrf.mxu0
  %v1047 = vpop.f32.mrf.mxu0
  %v1048 = vadd.f32 0.0, %v1047
  %v1049 = vpop.f32.mrf.mxu0
  %1050 = vmatprep.mubr.bf16.mxu0 %v897
  %1051 = vmatmul.mubr.bf16.gmra.mxu0 %v896
  %v1052 = vpop.f32.mrf.mxu0
  %v1053 = vadd.f32 0.0, %v1052
  %v1054 = vpop.f32.mrf.mxu0
  %v1055 = vpop.f32.mrf.mxu0
  %v1056 = vadd.f32 0.0, %v1055
  %v1057 = vpop.f32.mrf.mxu0
  %1058 = vmatprep.mubr.bf16.mxu0 %v899
  %1059 = vmatmul.mubr.bf16.gmra.mxu0 %v898
  %v1060 = vpop.f32.mrf.mxu0
  %v1061 = vadd.f32 0.0, %v1060
  %v1062 = vpop.f32.mrf.mxu0
  %v1063 = vpop.f32.mrf.mxu0
  %v1064 = vadd.f32 0.0, %v1063
  %v1065 = vpop.f32.mrf.mxu0
  %1066 = vmatprep.mubr.bf16.mxu0 %v901
  %1067 = vmatmul.mubr.bf16.gmra.mxu0 %v900
  %v1068 = vpop.f32.mrf.mxu0
  %v1069 = vadd.f32 0.0, %v1068
  %v1070 = vpop.f32.mrf.mxu0
  %v1071 = vpop.f32.mrf.mxu0
  %v1072 = vadd.f32 0.0, %v1071
  %v1073 = vpop.f32.mrf.mxu0
  %1074 = vmatprep.mubr.bf16.mxu0 %v903
  %1075 = vmatmul.mubr.bf16.gmra.mxu0 %v902
  %v1076 = vpop.f32.mrf.mxu0
  %v1077 = vadd.f32 0.0, %v1076
  %v1078 = vpop.f32.mrf.mxu0
  %v1079 = vpop.f32.mrf.mxu0
  %v1080 = vadd.f32 0.0, %v1079
  %v1081 = vpop.f32.mrf.mxu0
  %1082 = vmatprep.mubr.bf16.mxu0 %v905
  %1083 = vmatmul.mubr.bf16.gmra.mxu0 %v904
  %v1084 = vpop.f32.mrf.mxu0
  %v1085 = vadd.f32 0.0, %v1084
  %v1086 = vpop.f32.mrf.mxu0
  %v1087 = vpop.f32.mrf.mxu0
  %v1088 = vadd.f32 0.0, %v1087
  %v1089 = vpop.f32.mrf.mxu0
  %1090 = vmatprep.mubr.bf16.mxu0 %v907
  %1091 = vmatmul.mubr.bf16.gmra.mxu0 %v906
  %v1092 = vpop.f32.mrf.mxu0
  %v1093 = vadd.f32 0.0, %v1092
  %v1094 = vpop.f32.mrf.mxu0
  %v1095 = vpop.f32.mrf.mxu0
  %v1096 = vadd.f32 0.0, %v1095
  %v1097 = vpop.f32.mrf.mxu0
  %1098 = vmatprep.mubr.bf16.mxu0 %v909
  %1099 = vmatmul.mubr.bf16.gmra.mxu0 %v908
  %v1100 = vpop.f32.mrf.mxu0
  %v1101 = vadd.f32 0.0, %v1100
  %v1102 = vpop.f32.mrf.mxu0
  %v1103 = vpop.f32.mrf.mxu0
  %v1104 = vadd.f32 0.0, %v1103
  %v1105 = vpop.f32.mrf.mxu0
  %1106 = vmatprep.mubr.bf16.mxu0 %v911
  %1107 = vmatmul.mubr.bf16.gmra.mxu0 %v910
  %v1108 = vpop.f32.mrf.mxu0
  %v1109 = vadd.f32 0.0, %v1108
  %v1110 = vpop.f32.mrf.mxu0
  %v1111 = vpop.f32.mrf.mxu0
  %v1112 = vadd.f32 0.0, %v1111
  %v1113 = vpop.f32.mrf.mxu0
  %1114 = vmatprep.mubr.bf16.mxu0 %v913
  %1115 = vmatmul.mubr.bf16.gmra.mxu0 %v912
  %v1116 = vpop.f32.mrf.mxu0
  %v1117 = vadd.f32 0.0, %v1116
  %v1118 = vpop.f32.mrf.mxu0
  %v1119 = vpop.f32.mrf.mxu0
  %v1120 = vadd.f32 0.0, %v1119
  %v1121 = vpop.f32.mrf.mxu0
  %1122 = vdwg.mxu0
  %v1123 = vadd.f32 %v740, %v997
  %v1124 = vadd.f32 %v743, %v1000
  %v1125 = vadd.f32 %v748, %v1005
  %v1126 = vadd.f32 %v751, %v1008
  %v1127 = vadd.f32 %v756, %v1013
  %v1128 = vadd.f32 %v759, %v1016
  %v1129 = vadd.f32 %v764, %v1021
  %v1130 = vadd.f32 %v767, %v1024
  %v1131 = vadd.f32 %v772, %v1029
  %v1132 = vadd.f32 %v775, %v1032
  %v1133 = vadd.f32 %v780, %v1037
  %v1134 = vadd.f32 %v783, %v1040
  %v1135 = vadd.f32 %v788, %v1045
  %v1136 = vadd.f32 %v791, %v1048
  %v1137 = vadd.f32 %v796, %v1053
  %v1138 = vadd.f32 %v799, %v1056
  %v1139 = vadd.f32 %v804, %v1061
  %v1140 = vadd.f32 %v807, %v1064
  %v1141 = vadd.f32 %v812, %v1069
  %v1142 = vadd.f32 %v815, %v1072
  %v1143 = vadd.f32 %v820, %v1077
  %v1144 = vadd.f32 %v823, %v1080
  %v1145 = vadd.f32 %v828, %v1085
  %v1146 = vadd.f32 %v831, %v1088
  %v1147 = vadd.f32 %v836, %v1093
  %v1148 = vadd.f32 %v839, %v1096
  %v1149 = vadd.f32 %v844, %v1101
  %v1150 = vadd.f32 %v847, %v1104
  %v1151 = vadd.f32 %v852, %v1109
  %v1152 = vadd.f32 %v855, %v1112
  %v1153 = vadd.f32 %v860, %v1117
  %v1154 = vadd.f32 %v863, %v1120
  %v1155 = vld [vmem:[%s3] sm:$0x1]
  %v1157 = vlaneseq
  %v1158 = vshrl.u32 %v1157, 7
  %v1159 = vsub.s32 0, %v1158
  %v1160 = vrot.slane %v1155, %v1159
  %v1162 = vadd.f32 %v1123, %v1160
  %v1163 = vadd.f32 %v1124, %v1160
  %v1164 = vadd.f32 %v1125, %v1160
  %v1165 = vadd.f32 %v1126, %v1160
  %v1166 = vadd.f32 %v1127, %v1160
  %v1167 = vadd.f32 %v1128, %v1160
  %v1168 = vadd.f32 %v1129, %v1160
  %v1169 = vadd.f32 %v1130, %v1160
  %v1170 = vadd.f32 %v1131, %v1160
  %v1171 = vadd.f32 %v1132, %v1160
  %v1172 = vadd.f32 %v1133, %v1160
  %v1173 = vadd.f32 %v1134, %v1160
  %v1174 = vadd.f32 %v1135, %v1160
  %v1175 = vadd.f32 %v1136, %v1160
  %v1176 = vadd.f32 %v1137, %v1160
  %v1177 = vadd.f32 %v1138, %v1160
  %v1178 = vadd.f32 %v1139, %v1160
  %v1179 = vadd.f32 %v1140, %v1160
  %v1180 = vadd.f32 %v1141, %v1160
  %v1181 = vadd.f32 %v1142, %v1160
  %v1182 = vadd.f32 %v1143, %v1160
  %v1183 = vadd.f32 %v1144, %v1160
  %v1184 = vadd.f32 %v1145, %v1160
  %v1185 = vadd.f32 %v1146, %v1160
  %v1186 = vadd.f32 %v1147, %v1160
  %v1187 = vadd.f32 %v1148, %v1160
  %v1188 = vadd.f32 %v1149, %v1160
  %v1189 = vadd.f32 %v1150, %v1160
  %v1190 = vadd.f32 %v1151, %v1160
  %v1191 = vadd.f32 %v1152, %v1160
  %v1192 = vadd.f32 %v1153, %v1160
  %v1193 = vadd.f32 %v1154, %v1160
  %v1194 = vmax.f32 %v1162, 0.0
  %v1195 = vmax.f32 %v1163, 0.0
  %v1196 = vmax.f32 %v1164, 0.0
  %v1197 = vmax.f32 %v1165, 0.0
  %v1198 = vmax.f32 %v1166, 0.0
  %v1199 = vmax.f32 %v1167, 0.0
  %v1200 = vmax.f32 %v1168, 0.0
  %v1201 = vmax.f32 %v1169, 0.0
  %v1202 = vmax.f32 %v1170, 0.0
  %v1203 = vmax.f32 %v1171, 0.0
  %v1204 = vmax.f32 %v1172, 0.0
  %v1205 = vmax.f32 %v1173, 0.0
  %v1206 = vmax.f32 %v1174, 0.0
  %v1207 = vmax.f32 %v1175, 0.0
  %v1208 = vmax.f32 %v1176, 0.0
  %v1209 = vmax.f32 %v1177, 0.0
  %v1210 = vmax.f32 %v1178, 0.0
  %v1211 = vmax.f32 %v1179, 0.0
  %v1212 = vmax.f32 %v1180, 0.0
  %v1213 = vmax.f32 %v1181, 0.0
  %v1214 = vmax.f32 %v1182, 0.0
  %v1215 = vmax.f32 %v1183, 0.0
  %v1216 = vmax.f32 %v1184, 0.0
  %v1217 = vmax.f32 %v1185, 0.0
  %v1218 = vmax.f32 %v1186, 0.0
  %v1219 = vmax.f32 %v1187, 0.0
  %v1220 = vmax.f32 %v1188, 0.0
  %v1221 = vmax.f32 %v1189, 0.0
  %v1222 = vmax.f32 %v1190, 0.0
  %v1223 = vmax.f32 %v1191, 0.0
  %v1224 = vmax.f32 %v1192, 0.0
  %v1225 = vmax.f32 %v1193, 0.0
  %v1226 = vpack.c.bf16 %v1195, %v1194
  %v1227 = vpack.c.bf16 %v1197, %v1196
  %v1228 = vpack.c.bf16 %v1199, %v1198
  %v1229 = vpack.c.bf16 %v1201, %v1200
  %v1230 = vpack.c.bf16 %v1203, %v1202
  %v1231 = vpack.c.bf16 %v1205, %v1204
  %v1232 = vpack.c.bf16 %v1207, %v1206
  %v1233 = vpack.c.bf16 %v1209, %v1208
  %v1234 = vpack.c.bf16 %v1211, %v1210
  %v1235 = vpack.c.bf16 %v1213, %v1212
  %v1236 = vpack.c.bf16 %v1215, %v1214
  %v1237 = vpack.c.bf16 %v1217, %v1216
  %v1238 = vpack.c.bf16 %v1219, %v1218
  %v1239 = vpack.c.bf16 %v1221, %v1220
  %v1240 = vpack.c.bf16 %v1223, %v1222
  %v1241 = vpack.c.bf16 %v1225, %v1224
  %v1242 = vld [vmem:[%s4] sm:$0xf]
  %v1243 = vld [vmem:[%s4 + $0x4] sm:$0xf]
  %v1244 = vld [vmem:[%s4 + $0x8] sm:$0xf]
  %v1245 = vld [vmem:[%s4 + $0xc] sm:$0xf]
  %v1250 = vunpack.c.l.b16 %v1242
  %v1251 = vunpack.c.l.b16 %v1243
  %v1252 = vunpack.c.l.b16 %v1244
  %v1253 = vunpack.c.l.b16 %v1245
  %v1254 = vpack.c.b16 %v1251, %v1250
  %v1255 = vpack.c.b16 %v1253, %v1252
  %v1259 = vsel %vm158, %v1226, 0
  %v1262 = vsel %vm158, %v1227, 0
  %v1265 = vsel %vm158, %v1228, 0
  %v1268 = vsel %vm158, %v1229, 0
  %v1271 = vsel %vm158, %v1230, 0
  %v1274 = vsel %vm158, %v1231, 0
  %v1277 = vsel %vm158, %v1232, 0
  %v1280 = vsel %vm158, %v1233, 0
  %v1283 = vsel %vm158, %v1234, 0
  %v1286 = vsel %vm158, %v1235, 0
  %v1289 = vsel %vm158, %v1236, 0
  %v1292 = vsel %vm158, %v1237, 0
  %v1295 = vsel %vm158, %v1238, 0
  %v1298 = vsel %vm158, %v1239, 0
  %v1301 = vsel %vm158, %v1240, 0
  %v1304 = vsel %vm158, %v1241, 0
  %1306 = vmatprep.subr.bf16.mxu0 0
  %1307 = vmatpush1.bf16.msra.mxu0 0
  %1308 = vmatprep.subr.bf16.mxu0 0
  %1309 = vmatpush1.bf16.msra.mxu0 0
  %1310 = vmatprep.subr.bf16.mxu0 0
  %1311 = vmatpush1.bf16.msra.mxu0 0
  %1312 = vmatprep.subr.bf16.mxu0 0
  %1313 = vmatpush1.bf16.msra.mxu0 0
  %1314 = vmatprep.subr.bf16.mxu0 0
  %1315 = vmatpush1.bf16.msra.mxu0 0
  %1316 = vmatprep.subr.bf16.mxu0 0
  %1317 = vmatpush1.bf16.msra.mxu0 0
  %1318 = vmatprep.subr.bf16.mxu0 0
  %1319 = vmatpush1.bf16.msra.mxu0 %v1255
  %1320 = vmatprep.subr.bf16.mxu0 0
  %1321 = vmatpush1.bf16.msra.mxu0 %v1254
  %1322 = vmatprep.subr.bf16.mxu0 0
  %1323 = vmatpush2.bf16.msra.mxu0 0
  %1324 = vmatprep.subr.bf16.mxu0 0
  %1325 = vmatpush2.bf16.msra.mxu0 0
  %1326 = vmatprep.subr.bf16.mxu0 0
  %1327 = vmatpush2.bf16.msra.mxu0 0
  %1328 = vmatprep.subr.bf16.mxu0 0
  %1329 = vmatpush2.bf16.msra.mxu0 0
  %1330 = vmatprep.subr.bf16.mxu0 0
  %1331 = vmatpush2.bf16.msra.mxu0 0
  %1332 = vmatprep.subr.bf16.mxu0 0
  %1333 = vmatpush2.bf16.msra.mxu0 0
  %1334 = vmatprep.subr.bf16.mxu0 0
  %1335 = vmatpush2.bf16.msra.mxu0 0
  %1336 = vmatprep.subr.bf16.mxu0 0
  %1337 = vmatpush2.bf16.msra.mxu0 0
  %1338 = vmatprep.mubr.bf16.mxu0 0
  %1339 = vmatmul.mubr.bf16.gmra.mxu0 %v1259
  %v1340 = vpop.f32.mrf.mxu0
  %v1341 = vadd.f32 0.0, %v1340
  %v1342 = vpop.f32.mrf.mxu0
  %v1343 = vpop.f32.mrf.mxu0
  %v1344 = vadd.f32 0.0, %v1343
  %v1345 = vpop.f32.mrf.mxu0
  %1346 = vmatprep.mubr.bf16.mxu0 0
  %1347 = vmatmul.mubr.bf16.gmra.mxu0 %v1262
  %v1348 = vpop.f32.mrf.mxu0
  %v1349 = vadd.f32 0.0, %v1348
  %v1350 = vpop.f32.mrf.mxu0
  %v1351 = vpop.f32.mrf.mxu0
  %v1352 = vadd.f32 0.0, %v1351
  %v1353 = vpop.f32.mrf.mxu0
  %1354 = vmatprep.mubr.bf16.mxu0 0
  %1355 = vmatmul.mubr.bf16.gmra.mxu0 %v1265
  %v1356 = vpop.f32.mrf.mxu0
  %v1357 = vadd.f32 0.0, %v1356
  %v1358 = vpop.f32.mrf.mxu0
  %v1359 = vpop.f32.mrf.mxu0
  %v1360 = vadd.f32 0.0, %v1359
  %v1361 = vpop.f32.mrf.mxu0
  %1362 = vmatprep.mubr.bf16.mxu0 0
  %1363 = vmatmul.mubr.bf16.gmra.mxu0 %v1268
  %v1364 = vpop.f32.mrf.mxu0
  %v1365 = vadd.f32 0.0, %v1364
  %v1366 = vpop.f32.mrf.mxu0
  %v1367 = vpop.f32.mrf.mxu0
  %v1368 = vadd.f32 0.0, %v1367
  %v1369 = vpop.f32.mrf.mxu0
  %1370 = vmatprep.mubr.bf16.mxu0 0
  %1371 = vmatmul.mubr.bf16.gmra.mxu0 %v1271
  %v1372 = vpop.f32.mrf.mxu0
  %v1373 = vadd.f32 0.0, %v1372
  %v1374 = vpop.f32.mrf.mxu0
  %v1375 = vpop.f32.mrf.mxu0
  %v1376 = vadd.f32 0.0, %v1375
  %v1377 = vpop.f32.mrf.mxu0
  %1378 = vmatprep.mubr.bf16.mxu0 0
  %1379 = vmatmul.mubr.bf16.gmra.mxu0 %v1274
  %v1380 = vpop.f32.mrf.mxu0
  %v1381 = vadd.f32 0.0, %v1380
  %v1382 = vpop.f32.mrf.mxu0
  %v1383 = vpop.f32.mrf.mxu0
  %v1384 = vadd.f32 0.0, %v1383
  %v1385 = vpop.f32.mrf.mxu0
  %1386 = vmatprep.mubr.bf16.mxu0 0
  %1387 = vmatmul.mubr.bf16.gmra.mxu0 %v1277
  %v1388 = vpop.f32.mrf.mxu0
  %v1389 = vadd.f32 0.0, %v1388
  %v1390 = vpop.f32.mrf.mxu0
  %v1391 = vpop.f32.mrf.mxu0
  %v1392 = vadd.f32 0.0, %v1391
  %v1393 = vpop.f32.mrf.mxu0
  %1394 = vmatprep.mubr.bf16.mxu0 0
  %1395 = vmatmul.mubr.bf16.gmra.mxu0 %v1280
  %v1396 = vpop.f32.mrf.mxu0
  %v1397 = vadd.f32 0.0, %v1396
  %v1398 = vpop.f32.mrf.mxu0
  %v1399 = vpop.f32.mrf.mxu0
  %v1400 = vadd.f32 0.0, %v1399
  %v1401 = vpop.f32.mrf.mxu0
  %1402 = vmatprep.mubr.bf16.mxu0 0
  %1403 = vmatmul.mubr.bf16.gmra.mxu0 %v1283
  %v1404 = vpop.f32.mrf.mxu0
  %v1405 = vadd.f32 0.0, %v1404
  %v1406 = vpop.f32.mrf.mxu0
  %v1407 = vpop.f32.mrf.mxu0
  %v1408 = vadd.f32 0.0, %v1407
  %v1409 = vpop.f32.mrf.mxu0
  %1410 = vmatprep.mubr.bf16.mxu0 0
  %1411 = vmatmul.mubr.bf16.gmra.mxu0 %v1286
  %v1412 = vpop.f32.mrf.mxu0
  %v1413 = vadd.f32 0.0, %v1412
  %v1414 = vpop.f32.mrf.mxu0
  %v1415 = vpop.f32.mrf.mxu0
  %v1416 = vadd.f32 0.0, %v1415
  %v1417 = vpop.f32.mrf.mxu0
  %1418 = vmatprep.mubr.bf16.mxu0 0
  %1419 = vmatmul.mubr.bf16.gmra.mxu0 %v1289
  %v1420 = vpop.f32.mrf.mxu0
  %v1421 = vadd.f32 0.0, %v1420
  %v1422 = vpop.f32.mrf.mxu0
  %v1423 = vpop.f32.mrf.mxu0
  %v1424 = vadd.f32 0.0, %v1423
  %v1425 = vpop.f32.mrf.mxu0
  %1426 = vmatprep.mubr.bf16.mxu0 0
  %1427 = vmatmul.mubr.bf16.gmra.mxu0 %v1292
  %v1428 = vpop.f32.mrf.mxu0
  %v1429 = vadd.f32 0.0, %v1428
  %v1430 = vpop.f32.mrf.mxu0
  %v1431 = vpop.f32.mrf.mxu0
  %v1432 = vadd.f32 0.0, %v1431
  %v1433 = vpop.f32.mrf.mxu0
  %1434 = vmatprep.mubr.bf16.mxu0 0
  %1435 = vmatmul.mubr.bf16.gmra.mxu0 %v1295
  %v1436 = vpop.f32.mrf.mxu0
  %v1437 = vadd.f32 0.0, %v1436
  %v1438 = vpop.f32.mrf.mxu0
  %v1439 = vpop.f32.mrf.mxu0
  %v1440 = vadd.f32 0.0, %v1439
  %v1441 = vpop.f32.mrf.mxu0
  %1442 = vmatprep.mubr.bf16.mxu0 0
  %1443 = vmatmul.mubr.bf16.gmra.mxu0 %v1298
  %v1444 = vpop.f32.mrf.mxu0
  %v1445 = vadd.f32 0.0, %v1444
  %v1446 = vpop.f32.mrf.mxu0
  %v1447 = vpop.f32.mrf.mxu0
  %v1448 = vadd.f32 0.0, %v1447
  %v1449 = vpop.f32.mrf.mxu0
  %1450 = vmatprep.mubr.bf16.mxu0 0
  %1451 = vmatmul.mubr.bf16.gmra.mxu0 %v1301
  %v1452 = vpop.f32.mrf.mxu0
  %v1453 = vadd.f32 0.0, %v1452
  %v1454 = vpop.f32.mrf.mxu0
  %v1455 = vpop.f32.mrf.mxu0
  %v1456 = vadd.f32 0.0, %v1455
  %v1457 = vpop.f32.mrf.mxu0
  %1458 = vmatprep.mubr.bf16.mxu0 0
  %1459 = vmatmul.mubr.bf16.gmra.mxu0 %v1304
  %v1460 = vpop.f32.mrf.mxu0
  %v1461 = vadd.f32 0.0, %v1460
  %v1462 = vpop.f32.mrf.mxu0
  %v1463 = vpop.f32.mrf.mxu0
  %v1464 = vadd.f32 0.0, %v1463
  %v1465 = vpop.f32.mrf.mxu0
  %1466 = vdwg.mxu0
  %v1467 = vpack.c.bf16 %v1344, %v1341
  %v1468 = vpack.c.bf16 %v1352, %v1349
  %v1469 = vpack.c.bf16 %v1360, %v1357
  %v1470 = vpack.c.bf16 %v1368, %v1365
  %v1471 = vpack.c.bf16 %v1376, %v1373
  %v1472 = vpack.c.bf16 %v1384, %v1381
  %v1473 = vpack.c.bf16 %v1392, %v1389
  %v1474 = vpack.c.bf16 %v1400, %v1397
  %v1475 = vpack.c.bf16 %v1408, %v1405
  %v1476 = vpack.c.bf16 %v1416, %v1413
  %v1477 = vpack.c.bf16 %v1424, %v1421
  %v1478 = vpack.c.bf16 %v1432, %v1429
  %v1479 = vpack.c.bf16 %v1440, %v1437
  %v1480 = vpack.c.bf16 %v1448, %v1445
  %v1481 = vpack.c.bf16 %v1456, %v1453
  %v1482 = vpack.c.bf16 %v1464, %v1461
  %1499 = vrot.lane.b32.xlu0 %v1467, 96
  %v1500 = vpop.permute.xlu0 %1499
  %1501 = vrot.lane.b32.xlu0 %v1468, 96
  %v1502 = vpop.permute.xlu0 %1501
  %1503 = vrot.lane.b32.xlu0 %v1469, 96
  %v1504 = vpop.permute.xlu0 %1503
  %1505 = vrot.lane.b32.xlu0 %v1470, 96
  %v1506 = vpop.permute.xlu0 %1505
  %1507 = vrot.lane.b32.xlu0 %v1471, 96
  %v1508 = vpop.permute.xlu0 %1507
  %1509 = vrot.lane.b32.xlu0 %v1472, 96
  %v1510 = vpop.permute.xlu0 %1509
  %1511 = vrot.lane.b32.xlu0 %v1473, 96
  %v1512 = vpop.permute.xlu0 %1511
  %1513 = vrot.lane.b32.xlu0 %v1474, 96
  %v1514 = vpop.permute.xlu0 %1513
  %1515 = vrot.lane.b32.xlu0 %v1475, 96
  %v1516 = vpop.permute.xlu0 %1515
  %1517 = vrot.lane.b32.xlu0 %v1476, 96
  %v1518 = vpop.permute.xlu0 %1517
  %1519 = vrot.lane.b32.xlu0 %v1477, 96
  %v1520 = vpop.permute.xlu0 %1519
  %1521 = vrot.lane.b32.xlu0 %v1478, 96
  %v1522 = vpop.permute.xlu0 %1521
  %1523 = vrot.lane.b32.xlu0 %v1479, 96
  %v1524 = vpop.permute.xlu0 %1523
  %1525 = vrot.lane.b32.xlu0 %v1480, 96
  %v1526 = vpop.permute.xlu0 %1525
  %1527 = vrot.lane.b32.xlu0 %v1481, 96
  %v1528 = vpop.permute.xlu0 %1527
  %1529 = vrot.lane.b32.xlu0 %v1482, 96
  %v1530 = vpop.permute.xlu0 %1529
  %1547 = vmatprep.subr.bf16.mxu0 0
  %1548 = vmatpush1.bf16.msra.mxu0 %v1514
  %1549 = vmatprep.subr.bf16.mxu0 0
  %1550 = vmatpush1.bf16.msra.mxu0 %v1512
  %1551 = vmatprep.subr.bf16.mxu0 0
  %1552 = vmatpush1.bf16.msra.mxu0 %v1510
  %1553 = vmatprep.subr.bf16.mxu0 0
  %1554 = vmatpush1.bf16.msra.mxu0 %v1508
  %1555 = vmatprep.subr.bf16.mxu0 0
  %1556 = vmatpush1.bf16.msra.mxu0 %v1506
  %1557 = vmatprep.subr.bf16.mxu0 0
  %1558 = vmatpush1.bf16.msra.mxu0 %v1504
  %1559 = vmatprep.subr.bf16.mxu0 0
  %1560 = vmatpush1.bf16.msra.mxu0 %v1502
  %1561 = vmatprep.subr.bf16.mxu0 0
  %1562 = vmatpush1.bf16.msra.mxu0 %v1500
  %1563 = vmatprep.subr.bf16.mxu0 0
  %1564 = vmatpush2.bf16.msra.mxu0 %v1530
  %1565 = vmatprep.subr.bf16.mxu0 0
  %1566 = vmatpush2.bf16.msra.mxu0 %v1528
  %1567 = vmatprep.subr.bf16.mxu0 0
  %1568 = vmatpush2.bf16.msra.mxu0 %v1526
  %1569 = vmatprep.subr.bf16.mxu0 0
  %1570 = vmatpush2.bf16.msra.mxu0 %v1524
  %1571 = vmatprep.subr.bf16.mxu0 0
  %1572 = vmatpush2.bf16.msra.mxu0 %v1522
  %1573 = vmatprep.subr.bf16.mxu0 0
  %1574 = vmatpush2.bf16.msra.mxu0 %v1520
  %1575 = vmatprep.subr.bf16.mxu0 0
  %1576 = vmatpush2.bf16.msra.mxu0 %v1518
  %1577 = vmatprep.subr.bf16.mxu0 0
  %1578 = vmatpush2.bf16.msra.mxu0 %v1516
  %1579 = vmatprep.mubr.bf16.mxu0 %v449
  %1580 = vmatmul.mubr.bf16.gmra.mxu0 %v448
  %v1581 = vpop.f32.mrf.mxu0
  %v1582 = vadd.f32 0.0, %v1581
  %v1583 = vpop.f32.mrf.mxu0
  %v1584 = vpop.f32.mrf.mxu0
  %v1585 = vadd.f32 0.0, %v1584
  %v1586 = vpop.f32.mrf.mxu0
  %1587 = vmatprep.mubr.bf16.mxu0 %v451
  %1588 = vmatmul.mubr.bf16.gmra.mxu0 %v450
  %v1589 = vpop.f32.mrf.mxu0
  %v1590 = vadd.f32 0.0, %v1589
  %v1591 = vpop.f32.mrf.mxu0
  %v1592 = vpop.f32.mrf.mxu0
  %v1593 = vadd.f32 0.0, %v1592
  %v1594 = vpop.f32.mrf.mxu0
  %1595 = vmatprep.mubr.bf16.mxu0 %v453
  %1596 = vmatmul.mubr.bf16.gmra.mxu0 %v452
  %v1597 = vpop.f32.mrf.mxu0
  %v1598 = vadd.f32 0.0, %v1597
  %v1599 = vpop.f32.mrf.mxu0
  %v1600 = vpop.f32.mrf.mxu0
  %v1601 = vadd.f32 0.0, %v1600
  %v1602 = vpop.f32.mrf.mxu0
  %1603 = vmatprep.mubr.bf16.mxu0 %v455
  %1604 = vmatmul.mubr.bf16.gmra.mxu0 %v454
  %v1605 = vpop.f32.mrf.mxu0
  %v1606 = vadd.f32 0.0, %v1605
  %v1607 = vpop.f32.mrf.mxu0
  %v1608 = vpop.f32.mrf.mxu0
  %v1609 = vadd.f32 0.0, %v1608
  %v1610 = vpop.f32.mrf.mxu0
  %1611 = vmatprep.mubr.bf16.mxu0 %v457
  %1612 = vmatmul.mubr.bf16.gmra.mxu0 %v456
  %v1613 = vpop.f32.mrf.mxu0
  %v1614 = vadd.f32 0.0, %v1613
  %v1615 = vpop.f32.mrf.mxu0
  %v1616 = vpop.f32.mrf.mxu0
  %v1617 = vadd.f32 0.0, %v1616
  %v1618 = vpop.f32.mrf.mxu0
  %1619 = vmatprep.mubr.bf16.mxu0 %v459
  %1620 = vmatmul.mubr.bf16.gmra.mxu0 %v458
  %v1621 = vpop.f32.mrf.mxu0
  %v1622 = vadd.f32 0.0, %v1621
  %v1623 = vpop.f32.mrf.mxu0
  %v1624 = vpop.f32.mrf.mxu0
  %v1625 = vadd.f32 0.0, %v1624
  %v1626 = vpop.f32.mrf.mxu0
  %1627 = vmatprep.mubr.bf16.mxu0 %v461
  %1628 = vmatmul.mubr.bf16.gmra.mxu0 %v460
  %v1629 = vpop.f32.mrf.mxu0
  %v1630 = vadd.f32 0.0, %v1629
  %v1631 = vpop.f32.mrf.mxu0
  %v1632 = vpop.f32.mrf.mxu0
  %v1633 = vadd.f32 0.0, %v1632
  %v1634 = vpop.f32.mrf.mxu0
  %1635 = vmatprep.mubr.bf16.mxu0 %v463
  %1636 = vmatmul.mubr.bf16.gmra.mxu0 %v462
  %v1637 = vpop.f32.mrf.mxu0
  %v1638 = vadd.f32 0.0, %v1637
  %v1639 = vpop.f32.mrf.mxu0
  %v1640 = vpop.f32.mrf.mxu0
  %v1641 = vadd.f32 0.0, %v1640
  %v1642 = vpop.f32.mrf.mxu0
  %1643 = vmatprep.mubr.bf16.mxu0 %v465
  %1644 = vmatmul.mubr.bf16.gmra.mxu0 %v464
  %v1645 = vpop.f32.mrf.mxu0
  %v1646 = vadd.f32 0.0, %v1645
  %v1647 = vpop.f32.mrf.mxu0
  %v1648 = vpop.f32.mrf.mxu0
  %v1649 = vadd.f32 0.0, %v1648
  %v1650 = vpop.f32.mrf.mxu0
  %1651 = vmatprep.mubr.bf16.mxu0 %v467
  %1652 = vmatmul.mubr.bf16.gmra.mxu0 %v466
  %v1653 = vpop.f32.mrf.mxu0
  %v1654 = vadd.f32 0.0, %v1653
  %v1655 = vpop.f32.mrf.mxu0
  %v1656 = vpop.f32.mrf.mxu0
  %v1657 = vadd.f32 0.0, %v1656
  %v1658 = vpop.f32.mrf.mxu0
  %1659 = vmatprep.mubr.bf16.mxu0 %v469
  %1660 = vmatmul.mubr.bf16.gmra.mxu0 %v468
  %v1661 = vpop.f32.mrf.mxu0
  %v1662 = vadd.f32 0.0, %v1661
  %v1663 = vpop.f32.mrf.mxu0
  %v1664 = vpop.f32.mrf.mxu0
  %v1665 = vadd.f32 0.0, %v1664
  %v1666 = vpop.f32.mrf.mxu0
  %1667 = vmatprep.mubr.bf16.mxu0 %v471
  %1668 = vmatmul.mubr.bf16.gmra.mxu0 %v470
  %v1669 = vpop.f32.mrf.mxu0
  %v1670 = vadd.f32 0.0, %v1669
  %v1671 = vpop.f32.mrf.mxu0
  %v1672 = vpop.f32.mrf.mxu0
  %v1673 = vadd.f32 0.0, %v1672
  %v1674 = vpop.f32.mrf.mxu0
  %1675 = vmatprep.mubr.bf16.mxu0 %v473
  %1676 = vmatmul.mubr.bf16.gmra.mxu0 %v472
  %v1677 = vpop.f32.mrf.mxu0
  %v1678 = vadd.f32 0.0, %v1677
  %v1679 = vpop.f32.mrf.mxu0
  %v1680 = vpop.f32.mrf.mxu0
  %v1681 = vadd.f32 0.0, %v1680
  %v1682 = vpop.f32.mrf.mxu0
  %1683 = vmatprep.mubr.bf16.mxu0 %v475
  %1684 = vmatmul.mubr.bf16.gmra.mxu0 %v474
  %v1685 = vpop.f32.mrf.mxu0
  %v1686 = vadd.f32 0.0, %v1685
  %v1687 = vpop.f32.mrf.mxu0
  %v1688 = vpop.f32.mrf.mxu0
  %v1689 = vadd.f32 0.0, %v1688
  %v1690 = vpop.f32.mrf.mxu0
  %1691 = vmatprep.mubr.bf16.mxu0 %v477
  %1692 = vmatmul.mubr.bf16.gmra.mxu0 %v476
  %v1693 = vpop.f32.mrf.mxu0
  %v1694 = vadd.f32 0.0, %v1693
  %v1695 = vpop.f32.mrf.mxu0
  %v1696 = vpop.f32.mrf.mxu0
  %v1697 = vadd.f32 0.0, %v1696
  %v1698 = vpop.f32.mrf.mxu0
  %1699 = vmatprep.mubr.bf16.mxu0 %v479
  %1700 = vmatmul.mubr.bf16.gmra.mxu0 %v478
  %v1701 = vpop.f32.mrf.mxu0
  %v1702 = vadd.f32 0.0, %v1701
  %v1703 = vpop.f32.mrf.mxu0
  %v1704 = vpop.f32.mrf.mxu0
  %v1705 = vadd.f32 0.0, %v1704
  %v1706 = vpop.f32.mrf.mxu0
  %1707 = vdwg.mxu0
  %1708 = vmatprep.subr.bf16.mxu0 0
  %1709 = vmatpush1.bf16.msra.mxu0 %v1474
  %1710 = vmatprep.subr.bf16.mxu0 0
  %1711 = vmatpush1.bf16.msra.mxu0 %v1473
  %1712 = vmatprep.subr.bf16.mxu0 0
  %1713 = vmatpush1.bf16.msra.mxu0 %v1472
  %1714 = vmatprep.subr.bf16.mxu0 0
  %1715 = vmatpush1.bf16.msra.mxu0 %v1471
  %1716 = vmatprep.subr.bf16.mxu0 0
  %1717 = vmatpush1.bf16.msra.mxu0 %v1470
  %1718 = vmatprep.subr.bf16.mxu0 0
  %1719 = vmatpush1.bf16.msra.mxu0 %v1469
  %1720 = vmatprep.subr.bf16.mxu0 0
  %1721 = vmatpush1.bf16.msra.mxu0 %v1468
  %1722 = vmatprep.subr.bf16.mxu0 0
  %1723 = vmatpush1.bf16.msra.mxu0 %v1467
  %1724 = vmatprep.subr.bf16.mxu0 0
  %1725 = vmatpush2.bf16.msra.mxu0 %v1482
  %1726 = vmatprep.subr.bf16.mxu0 0
  %1727 = vmatpush2.bf16.msra.mxu0 %v1481
  %1728 = vmatprep.subr.bf16.mxu0 0
  %1729 = vmatpush2.bf16.msra.mxu0 %v1480
  %1730 = vmatprep.subr.bf16.mxu0 0
  %1731 = vmatpush2.bf16.msra.mxu0 %v1479
  %1732 = vmatprep.subr.bf16.mxu0 0
  %1733 = vmatpush2.bf16.msra.mxu0 %v1478
  %1734 = vmatprep.subr.bf16.mxu0 0
  %1735 = vmatpush2.bf16.msra.mxu0 %v1477
  %1736 = vmatprep.subr.bf16.mxu0 0
  %1737 = vmatpush2.bf16.msra.mxu0 %v1476
  %1738 = vmatprep.subr.bf16.mxu0 0
  %1739 = vmatpush2.bf16.msra.mxu0 %v1475
  %1740 = vmatprep.mubr.bf16.mxu0 %v401
  %1741 = vmatmul.mubr.bf16.gmra.mxu0 %v400
  %v1742 = vpop.f32.mrf.mxu0
  %v1743 = vadd.f32 %v1582, %v1742
  %v1744 = vpop.f32.mrf.mxu0
  %v1745 = vpop.f32.mrf.mxu0
  %v1746 = vadd.f32 %v1585, %v1745
  %v1747 = vpop.f32.mrf.mxu0
  %1748 = vmatprep.mubr.bf16.mxu0 %v403
  %1749 = vmatmul.mubr.bf16.gmra.mxu0 %v402
  %v1750 = vpop.f32.mrf.mxu0
  %v1751 = vadd.f32 %v1590, %v1750
  %v1752 = vpop.f32.mrf.mxu0
  %v1753 = vpop.f32.mrf.mxu0
  %v1754 = vadd.f32 %v1593, %v1753
  %v1755 = vpop.f32.mrf.mxu0
  %1756 = vmatprep.mubr.bf16.mxu0 %v405
  %1757 = vmatmul.mubr.bf16.gmra.mxu0 %v404
  %v1758 = vpop.f32.mrf.mxu0
  %v1759 = vadd.f32 %v1598, %v1758
  %v1760 = vpop.f32.mrf.mxu0
  %v1761 = vpop.f32.mrf.mxu0
  %v1762 = vadd.f32 %v1601, %v1761
  %v1763 = vpop.f32.mrf.mxu0
  %1764 = vmatprep.mubr.bf16.mxu0 %v407
  %1765 = vmatmul.mubr.bf16.gmra.mxu0 %v406
  %v1766 = vpop.f32.mrf.mxu0
  %v1767 = vadd.f32 %v1606, %v1766
  %v1768 = vpop.f32.mrf.mxu0
  %v1769 = vpop.f32.mrf.mxu0
  %v1770 = vadd.f32 %v1609, %v1769
  %v1771 = vpop.f32.mrf.mxu0
  %1772 = vmatprep.mubr.bf16.mxu0 %v409
  %1773 = vmatmul.mubr.bf16.gmra.mxu0 %v408
  %v1774 = vpop.f32.mrf.mxu0
  %v1775 = vadd.f32 %v1614, %v1774
  %v1776 = vpop.f32.mrf.mxu0
  %v1777 = vpop.f32.mrf.mxu0
  %v1778 = vadd.f32 %v1617, %v1777
  %v1779 = vpop.f32.mrf.mxu0
  %1780 = vmatprep.mubr.bf16.mxu0 %v411
  %1781 = vmatmul.mubr.bf16.gmra.mxu0 %v410
  %v1782 = vpop.f32.mrf.mxu0
  %v1783 = vadd.f32 %v1622, %v1782
  %v1784 = vpop.f32.mrf.mxu0
  %v1785 = vpop.f32.mrf.mxu0
  %v1786 = vadd.f32 %v1625, %v1785
  %v1787 = vpop.f32.mrf.mxu0
  %1788 = vmatprep.mubr.bf16.mxu0 %v413
  %1789 = vmatmul.mubr.bf16.gmra.mxu0 %v412
  %v1790 = vpop.f32.mrf.mxu0
  %v1791 = vadd.f32 %v1630, %v1790
  %v1792 = vpop.f32.mrf.mxu0
  %v1793 = vpop.f32.mrf.mxu0
  %v1794 = vadd.f32 %v1633, %v1793
  %v1795 = vpop.f32.mrf.mxu0
  %1796 = vmatprep.mubr.bf16.mxu0 %v415
  %1797 = vmatmul.mubr.bf16.gmra.mxu0 %v414
  %v1798 = vpop.f32.mrf.mxu0
  %v1799 = vadd.f32 %v1638, %v1798
  %v1800 = vpop.f32.mrf.mxu0
  %v1801 = vpop.f32.mrf.mxu0
  %v1802 = vadd.f32 %v1641, %v1801
  %v1803 = vpop.f32.mrf.mxu0
  %1804 = vmatprep.mubr.bf16.mxu0 %v417
  %1805 = vmatmul.mubr.bf16.gmra.mxu0 %v416
  %v1806 = vpop.f32.mrf.mxu0
  %v1807 = vadd.f32 %v1646, %v1806
  %v1808 = vpop.f32.mrf.mxu0
  %v1809 = vpop.f32.mrf.mxu0
  %v1810 = vadd.f32 %v1649, %v1809
  %v1811 = vpop.f32.mrf.mxu0
  %1812 = vmatprep.mubr.bf16.mxu0 %v419
  %1813 = vmatmul.mubr.bf16.gmra.mxu0 %v418
  %v1814 = vpop.f32.mrf.mxu0
  %v1815 = vadd.f32 %v1654, %v1814
  %v1816 = vpop.f32.mrf.mxu0
  %v1817 = vpop.f32.mrf.mxu0
  %v1818 = vadd.f32 %v1657, %v1817
  %v1819 = vpop.f32.mrf.mxu0
  %1820 = vmatprep.mubr.bf16.mxu0 %v421
  %1821 = vmatmul.mubr.bf16.gmra.mxu0 %v420
  %v1822 = vpop.f32.mrf.mxu0
  %v1823 = vadd.f32 %v1662, %v1822
  %v1824 = vpop.f32.mrf.mxu0
  %v1825 = vpop.f32.mrf.mxu0
  %v1826 = vadd.f32 %v1665, %v1825
  %v1827 = vpop.f32.mrf.mxu0
  %1828 = vmatprep.mubr.bf16.mxu0 %v423
  %1829 = vmatmul.mubr.bf16.gmra.mxu0 %v422
  %v1830 = vpop.f32.mrf.mxu0
  %v1831 = vadd.f32 %v1670, %v1830
  %v1832 = vpop.f32.mrf.mxu0
  %v1833 = vpop.f32.mrf.mxu0
  %v1834 = vadd.f32 %v1673, %v1833
  %v1835 = vpop.f32.mrf.mxu0
  %1836 = vmatprep.mubr.bf16.mxu0 %v425
  %1837 = vmatmul.mubr.bf16.gmra.mxu0 %v424
  %v1838 = vpop.f32.mrf.mxu0
  %v1839 = vadd.f32 %v1678, %v1838
  %v1840 = vpop.f32.mrf.mxu0
  %v1841 = vpop.f32.mrf.mxu0
  %v1842 = vadd.f32 %v1681, %v1841
  %v1843 = vpop.f32.mrf.mxu0
  %1844 = vmatprep.mubr.bf16.mxu0 %v427
  %1845 = vmatmul.mubr.bf16.gmra.mxu0 %v426
  %v1846 = vpop.f32.mrf.mxu0
  %v1847 = vadd.f32 %v1686, %v1846
  %v1848 = vpop.f32.mrf.mxu0
  %v1849 = vpop.f32.mrf.mxu0
  %v1850 = vadd.f32 %v1689, %v1849
  %v1851 = vpop.f32.mrf.mxu0
  %1852 = vmatprep.mubr.bf16.mxu0 %v429
  %1853 = vmatmul.mubr.bf16.gmra.mxu0 %v428
  %v1854 = vpop.f32.mrf.mxu0
  %v1855 = vadd.f32 %v1694, %v1854
  %v1856 = vpop.f32.mrf.mxu0
  %v1857 = vpop.f32.mrf.mxu0
  %v1858 = vadd.f32 %v1697, %v1857
  %v1859 = vpop.f32.mrf.mxu0
  %1860 = vmatprep.mubr.bf16.mxu0 %v431
  %1861 = vmatmul.mubr.bf16.gmra.mxu0 %v430
  %v1862 = vpop.f32.mrf.mxu0
  %v1863 = vadd.f32 %v1702, %v1862
  %v1864 = vpop.f32.mrf.mxu0
  %v1865 = vpop.f32.mrf.mxu0
  %v1866 = vadd.f32 %v1705, %v1865
  %v1867 = vpop.f32.mrf.mxu0
  %1868 = vdwg.mxu0
  %1869 = vrot.lane.b32.xlu0 %v1467, 64
  %v1870 = vpop.permute.xlu0 %1869
  %1871 = vrot.lane.b32.xlu0 %v1468, 64
  %v1872 = vpop.permute.xlu0 %1871
  %1873 = vrot.lane.b32.xlu0 %v1469, 64
  %v1874 = vpop.permute.xlu0 %1873
  %1875 = vrot.lane.b32.xlu0 %v1470, 64
  %v1876 = vpop.permute.xlu0 %1875
  %1877 = vrot.lane.b32.xlu0 %v1471, 64
  %v1878 = vpop.permute.xlu0 %1877
  %1879 = vrot.lane.b32.xlu0 %v1472, 64
  %v1880 = vpop.permute.xlu0 %1879
  %1881 = vrot.lane.b32.xlu0 %v1473, 64
  %v1882 = vpop.permute.xlu0 %1881
  %1883 = vrot.lane.b32.xlu0 %v1474, 64
  %v1884 = vpop.permute.xlu0 %1883
  %1885 = vrot.lane.b32.xlu0 %v1475, 64
  %v1886 = vpop.permute.xlu0 %1885
  %1887 = vrot.lane.b32.xlu0 %v1476, 64
  %v1888 = vpop.permute.xlu0 %1887
  %1889 = vrot.lane.b32.xlu0 %v1477, 64
  %v1890 = vpop.permute.xlu0 %1889
  %1891 = vrot.lane.b32.xlu0 %v1478, 64
  %v1892 = vpop.permute.xlu0 %1891
  %1893 = vrot.lane.b32.xlu0 %v1479, 64
  %v1894 = vpop.permute.xlu0 %1893
  %1895 = vrot.lane.b32.xlu0 %v1480, 64
  %v1896 = vpop.permute.xlu0 %1895
  %1897 = vrot.lane.b32.xlu0 %v1481, 64
  %v1898 = vpop.permute.xlu0 %1897
  %1899 = vrot.lane.b32.xlu0 %v1482, 64
  %v1900 = vpop.permute.xlu0 %1899
  %1917 = vmatprep.subr.bf16.mxu0 0
  %1918 = vmatpush1.bf16.msra.mxu0 %v1884
  %1919 = vmatprep.subr.bf16.mxu0 0
  %1920 = vmatpush1.bf16.msra.mxu0 %v1882
  %1921 = vmatprep.subr.bf16.mxu0 0
  %1922 = vmatpush1.bf16.msra.mxu0 %v1880
  %1923 = vmatprep.subr.bf16.mxu0 0
  %1924 = vmatpush1.bf16.msra.mxu0 %v1878
  %1925 = vmatprep.subr.bf16.mxu0 0
  %1926 = vmatpush1.bf16.msra.mxu0 %v1876
  %1927 = vmatprep.subr.bf16.mxu0 0
  %1928 = vmatpush1.bf16.msra.mxu0 %v1874
  %1929 = vmatprep.subr.bf16.mxu0 0
  %1930 = vmatpush1.bf16.msra.mxu0 %v1872
  %1931 = vmatprep.subr.bf16.mxu0 0
  %1932 = vmatpush1.bf16.msra.mxu0 %v1870
  %1933 = vmatprep.subr.bf16.mxu0 0
  %1934 = vmatpush2.bf16.msra.mxu0 %v1900
  %1935 = vmatprep.subr.bf16.mxu0 0
  %1936 = vmatpush2.bf16.msra.mxu0 %v1898
  %1937 = vmatprep.subr.bf16.mxu0 0
  %1938 = vmatpush2.bf16.msra.mxu0 %v1896
  %1939 = vmatprep.subr.bf16.mxu0 0
  %1940 = vmatpush2.bf16.msra.mxu0 %v1894
  %1941 = vmatprep.subr.bf16.mxu0 0
  %1942 = vmatpush2.bf16.msra.mxu0 %v1892
  %1943 = vmatprep.subr.bf16.mxu0 0
  %1944 = vmatpush2.bf16.msra.mxu0 %v1890
  %1945 = vmatprep.subr.bf16.mxu0 0
  %1946 = vmatpush2.bf16.msra.mxu0 %v1888
  %1947 = vmatprep.subr.bf16.mxu0 0
  %1948 = vmatpush2.bf16.msra.mxu0 %v1886
  %1949 = vmatprep.mubr.bf16.mxu0 %v883
  %1950 = vmatmul.mubr.bf16.gmra.mxu0 %v882
  %v1951 = vpop.f32.mrf.mxu0
  %v1952 = vadd.f32 0.0, %v1951
  %v1953 = vpop.f32.mrf.mxu0
  %v1954 = vpop.f32.mrf.mxu0
  %v1955 = vadd.f32 0.0, %v1954
  %v1956 = vpop.f32.mrf.mxu0
  %1957 = vmatprep.mubr.bf16.mxu0 %v885
  %1958 = vmatmul.mubr.bf16.gmra.mxu0 %v884
  %v1959 = vpop.f32.mrf.mxu0
  %v1960 = vadd.f32 0.0, %v1959
  %v1961 = vpop.f32.mrf.mxu0
  %v1962 = vpop.f32.mrf.mxu0
  %v1963 = vadd.f32 0.0, %v1962
  %v1964 = vpop.f32.mrf.mxu0
  %1965 = vmatprep.mubr.bf16.mxu0 %v887
  %1966 = vmatmul.mubr.bf16.gmra.mxu0 %v886
  %v1967 = vpop.f32.mrf.mxu0
  %v1968 = vadd.f32 0.0, %v1967
  %v1969 = vpop.f32.mrf.mxu0
  %v1970 = vpop.f32.mrf.mxu0
  %v1971 = vadd.f32 0.0, %v1970
  %v1972 = vpop.f32.mrf.mxu0
  %1973 = vmatprep.mubr.bf16.mxu0 %v889
  %1974 = vmatmul.mubr.bf16.gmra.mxu0 %v888
  %v1975 = vpop.f32.mrf.mxu0
  %v1976 = vadd.f32 0.0, %v1975
  %v1977 = vpop.f32.mrf.mxu0
  %v1978 = vpop.f32.mrf.mxu0
  %v1979 = vadd.f32 0.0, %v1978
  %v1980 = vpop.f32.mrf.mxu0
  %1981 = vmatprep.mubr.bf16.mxu0 %v891
  %1982 = vmatmul.mubr.bf16.gmra.mxu0 %v890
  %v1983 = vpop.f32.mrf.mxu0
  %v1984 = vadd.f32 0.0, %v1983
  %v1985 = vpop.f32.mrf.mxu0
  %v1986 = vpop.f32.mrf.mxu0
  %v1987 = vadd.f32 0.0, %v1986
  %v1988 = vpop.f32.mrf.mxu0
  %1989 = vmatprep.mubr.bf16.mxu0 %v893
  %1990 = vmatmul.mubr.bf16.gmra.mxu0 %v892
  %v1991 = vpop.f32.mrf.mxu0
  %v1992 = vadd.f32 0.0, %v1991
  %v1993 = vpop.f32.mrf.mxu0
  %v1994 = vpop.f32.mrf.mxu0
  %v1995 = vadd.f32 0.0, %v1994
  %v1996 = vpop.f32.mrf.mxu0
  %1997 = vmatprep.mubr.bf16.mxu0 %v895
  %1998 = vmatmul.mubr.bf16.gmra.mxu0 %v894
  %v1999 = vpop.f32.mrf.mxu0
  %v2000 = vadd.f32 0.0, %v1999
  %v2001 = vpop.f32.mrf.mxu0
  %v2002 = vpop.f32.mrf.mxu0
  %v2003 = vadd.f32 0.0, %v2002
  %v2004 = vpop.f32.mrf.mxu0
  %2005 = vmatprep.mubr.bf16.mxu0 %v897
  %2006 = vmatmul.mubr.bf16.gmra.mxu0 %v896
  %v2007 = vpop.f32.mrf.mxu0
  %v2008 = vadd.f32 0.0, %v2007
  %v2009 = vpop.f32.mrf.mxu0
  %v2010 = vpop.f32.mrf.mxu0
  %v2011 = vadd.f32 0.0, %v2010
  %v2012 = vpop.f32.mrf.mxu0
  %2013 = vmatprep.mubr.bf16.mxu0 %v899
  %2014 = vmatmul.mubr.bf16.gmra.mxu0 %v898
  %v2015 = vpop.f32.mrf.mxu0
  %v2016 = vadd.f32 0.0, %v2015
  %v2017 = vpop.f32.mrf.mxu0
  %v2018 = vpop.f32.mrf.mxu0
  %v2019 = vadd.f32 0.0, %v2018
  %v2020 = vpop.f32.mrf.mxu0
  %2021 = vmatprep.mubr.bf16.mxu0 %v901
  %2022 = vmatmul.mubr.bf16.gmra.mxu0 %v900
  %v2023 = vpop.f32.mrf.mxu0
  %v2024 = vadd.f32 0.0, %v2023
  %v2025 = vpop.f32.mrf.mxu0
  %v2026 = vpop.f32.mrf.mxu0
  %v2027 = vadd.f32 0.0, %v2026
  %v2028 = vpop.f32.mrf.mxu0
  %2029 = vmatprep.mubr.bf16.mxu0 %v903
  %2030 = vmatmul.mubr.bf16.gmra.mxu0 %v902
  %v2031 = vpop.f32.mrf.mxu0
  %v2032 = vadd.f32 0.0, %v2031
  %v2033 = vpop.f32.mrf.mxu0
  %v2034 = vpop.f32.mrf.mxu0
  %v2035 = vadd.f32 0.0, %v2034
  %v2036 = vpop.f32.mrf.mxu0
  %2037 = vmatprep.mubr.bf16.mxu0 %v905
  %2038 = vmatmul.mubr.bf16.gmra.mxu0 %v904
  %v2039 = vpop.f32.mrf.mxu0
  %v2040 = vadd.f32 0.0, %v2039
  %v2041 = vpop.f32.mrf.mxu0
  %v2042 = vpop.f32.mrf.mxu0
  %v2043 = vadd.f32 0.0, %v2042
  %v2044 = vpop.f32.mrf.mxu0
  %2045 = vmatprep.mubr.bf16.mxu0 %v907
  %2046 = vmatmul.mubr.bf16.gmra.mxu0 %v906
  %v2047 = vpop.f32.mrf.mxu0
  %v2048 = vadd.f32 0.0, %v2047
  %v2049 = vpop.f32.mrf.mxu0
  %v2050 = vpop.f32.mrf.mxu0
  %v2051 = vadd.f32 0.0, %v2050
  %v2052 = vpop.f32.mrf.mxu0
  %2053 = vmatprep.mubr.bf16.mxu0 %v909
  %2054 = vmatmul.mubr.bf16.gmra.mxu0 %v908
  %v2055 = vpop.f32.mrf.mxu0
  %v2056 = vadd.f32 0.0, %v2055
  %v2057 = vpop.f32.mrf.mxu0
  %v2058 = vpop.f32.mrf.mxu0
  %v2059 = vadd.f32 0.0, %v2058
  %v2060 = vpop.f32.mrf.mxu0
  %2061 = vmatprep.mubr.bf16.mxu0 %v911
  %2062 = vmatmul.mubr.bf16.gmra.mxu0 %v910
  %v2063 = vpop.f32.mrf.mxu0
  %v2064 = vadd.f32 0.0, %v2063
  %v2065 = vpop.f32.mrf.mxu0
  %v2066 = vpop.f32.mrf.mxu0
  %v2067 = vadd.f32 0.0, %v2066
  %v2068 = vpop.f32.mrf.mxu0
  %2069 = vmatprep.mubr.bf16.mxu0 %v913
  %2070 = vmatmul.mubr.bf16.gmra.mxu0 %v912
  %v2071 = vpop.f32.mrf.mxu0
  %v2072 = vadd.f32 0.0, %v2071
  %v2073 = vpop.f32.mrf.mxu0
  %v2074 = vpop.f32.mrf.mxu0
  %v2075 = vadd.f32 0.0, %v2074
  %v2076 = vpop.f32.mrf.mxu0
  %2077 = vdwg.mxu0
  %v2078 = vadd.f32 %v1743, %v1952
  %v2079 = vadd.f32 %v1746, %v1955
  %v2080 = vadd.f32 %v1751, %v1960
  %v2081 = vadd.f32 %v1754, %v1963
  %v2082 = vadd.f32 %v1759, %v1968
  %v2083 = vadd.f32 %v1762, %v1971
  %v2084 = vadd.f32 %v1767, %v1976
  %v2085 = vadd.f32 %v1770, %v1979
  %v2086 = vadd.f32 %v1775, %v1984
  %v2087 = vadd.f32 %v1778, %v1987
  %v2088 = vadd.f32 %v1783, %v1992
  %v2089 = vadd.f32 %v1786, %v1995
  %v2090 = vadd.f32 %v1791, %v2000
  %v2091 = vadd.f32 %v1794, %v2003
  %v2092 = vadd.f32 %v1799, %v2008
  %v2093 = vadd.f32 %v1802, %v2011
  %v2094 = vadd.f32 %v1807, %v2016
  %v2095 = vadd.f32 %v1810, %v2019
  %v2096 = vadd.f32 %v1815, %v2024
  %v2097 = vadd.f32 %v1818, %v2027
  %v2098 = vadd.f32 %v1823, %v2032
  %v2099 = vadd.f32 %v1826, %v2035
  %v2100 = vadd.f32 %v1831, %v2040
  %v2101 = vadd.f32 %v1834, %v2043
  %v2102 = vadd.f32 %v1839, %v2048
  %v2103 = vadd.f32 %v1842, %v2051
  %v2104 = vadd.f32 %v1847, %v2056
  %v2105 = vadd.f32 %v1850, %v2059
  %v2106 = vadd.f32 %v1855, %v2064
  %v2107 = vadd.f32 %v1858, %v2067
  %v2108 = vadd.f32 %v1863, %v2072
  %v2109 = vadd.f32 %v1866, %v2075
  %v2110 = vld [vmem:[%s5] sm:$0x1]
  %v2112 = vlaneseq
  %v2113 = vshrl.u32 %v2112, 7
  %v2114 = vsub.s32 0, %v2113
  %v2115 = vrot.slane %v2110, %v2114
  %v2117 = vadd.f32 %v2078, %v2115
  %v2118 = vadd.f32 %v2079, %v2115
  %v2119 = vadd.f32 %v2080, %v2115
  %v2120 = vadd.f32 %v2081, %v2115
  %v2121 = vadd.f32 %v2082, %v2115
  %v2122 = vadd.f32 %v2083, %v2115
  %v2123 = vadd.f32 %v2084, %v2115
  %v2124 = vadd.f32 %v2085, %v2115
  %v2125 = vadd.f32 %v2086, %v2115
  %v2126 = vadd.f32 %v2087, %v2115
  %v2127 = vadd.f32 %v2088, %v2115
  %v2128 = vadd.f32 %v2089, %v2115
  %v2129 = vadd.f32 %v2090, %v2115
  %v2130 = vadd.f32 %v2091, %v2115
  %v2131 = vadd.f32 %v2092, %v2115
  %v2132 = vadd.f32 %v2093, %v2115
  %v2133 = vadd.f32 %v2094, %v2115
  %v2134 = vadd.f32 %v2095, %v2115
  %v2135 = vadd.f32 %v2096, %v2115
  %v2136 = vadd.f32 %v2097, %v2115
  %v2137 = vadd.f32 %v2098, %v2115
  %v2138 = vadd.f32 %v2099, %v2115
  %v2139 = vadd.f32 %v2100, %v2115
  %v2140 = vadd.f32 %v2101, %v2115
  %v2141 = vadd.f32 %v2102, %v2115
  %v2142 = vadd.f32 %v2103, %v2115
  %v2143 = vadd.f32 %v2104, %v2115
  %v2144 = vadd.f32 %v2105, %v2115
  %v2145 = vadd.f32 %v2106, %v2115
  %v2146 = vadd.f32 %v2107, %v2115
  %v2147 = vadd.f32 %v2108, %v2115
  %v2148 = vadd.f32 %v2109, %v2115
  %v2149 = vmax.f32 %v2117, 0.0
  %v2150 = vmax.f32 %v2118, 0.0
  %v2151 = vmax.f32 %v2119, 0.0
  %v2152 = vmax.f32 %v2120, 0.0
  %v2153 = vmax.f32 %v2121, 0.0
  %v2154 = vmax.f32 %v2122, 0.0
  %v2155 = vmax.f32 %v2123, 0.0
  %v2156 = vmax.f32 %v2124, 0.0
  %v2157 = vmax.f32 %v2125, 0.0
  %v2158 = vmax.f32 %v2126, 0.0
  %v2159 = vmax.f32 %v2127, 0.0
  %v2160 = vmax.f32 %v2128, 0.0
  %v2161 = vmax.f32 %v2129, 0.0
  %v2162 = vmax.f32 %v2130, 0.0
  %v2163 = vmax.f32 %v2131, 0.0
  %v2164 = vmax.f32 %v2132, 0.0
  %v2165 = vmax.f32 %v2133, 0.0
  %v2166 = vmax.f32 %v2134, 0.0
  %v2167 = vmax.f32 %v2135, 0.0
  %v2168 = vmax.f32 %v2136, 0.0
  %v2169 = vmax.f32 %v2137, 0.0
  %v2170 = vmax.f32 %v2138, 0.0
  %v2171 = vmax.f32 %v2139, 0.0
  %v2172 = vmax.f32 %v2140, 0.0
  %v2173 = vmax.f32 %v2141, 0.0
  %v2174 = vmax.f32 %v2142, 0.0
  %v2175 = vmax.f32 %v2143, 0.0
  %v2176 = vmax.f32 %v2144, 0.0
  %v2177 = vmax.f32 %v2145, 0.0
  %v2178 = vmax.f32 %v2146, 0.0
  %v2179 = vmax.f32 %v2147, 0.0
  %v2180 = vmax.f32 %v2148, 0.0
  %v2181 = vpack.c.bf16 %v2150, %v2149
  %v2182 = vpack.c.bf16 %v2152, %v2151
  %v2183 = vpack.c.bf16 %v2154, %v2153
  %v2184 = vpack.c.bf16 %v2156, %v2155
  %v2185 = vpack.c.bf16 %v2158, %v2157
  %v2186 = vpack.c.bf16 %v2160, %v2159
  %v2187 = vpack.c.bf16 %v2162, %v2161
  %v2188 = vpack.c.bf16 %v2164, %v2163
  %v2189 = vpack.c.bf16 %v2166, %v2165
  %v2190 = vpack.c.bf16 %v2168, %v2167
  %v2191 = vpack.c.bf16 %v2170, %v2169
  %v2192 = vpack.c.bf16 %v2172, %v2171
  %v2193 = vpack.c.bf16 %v2174, %v2173
  %v2194 = vpack.c.bf16 %v2176, %v2175
  %v2195 = vpack.c.bf16 %v2178, %v2177
  %v2196 = vpack.c.bf16 %v2180, %v2179
  %v2197 = vld [vmem:[%s6] sm:$0xf]
  %v2198 = vld [vmem:[%s6 + $0x4] sm:$0xf]
  %v2199 = vld [vmem:[%s6 + $0x8] sm:$0xf]
  %v2200 = vld [vmem:[%s6 + $0xc] sm:$0xf]
  %v2201 = vld [vmem:[%s7] sm:$0x1]
  %v2203 = vlaneseq
  %v2204 = vshrl.u32 %v2203, 7
  %v2205 = vsub.s32 0, %v2204
  %v2206 = vrot.slane %v2201, %v2205
  %v2212 = vunpack.c.l.b16 %v2197
  %v2213 = vunpack.c.l.b16 %v2198
  %v2214 = vunpack.c.l.b16 %v2199
  %v2215 = vunpack.c.l.b16 %v2200
  %v2216 = vpack.c.b16 %v2213, %v2212
  %v2217 = vpack.c.b16 %v2215, %v2214
  %v2221 = vsel %vm158, %v2181, 0
  %v2224 = vsel %vm158, %v2182, 0
  %v2227 = vsel %vm158, %v2183, 0
  %v2230 = vsel %vm158, %v2184, 0
  %v2233 = vsel %vm158, %v2185, 0
  %v2236 = vsel %vm158, %v2186, 0
  %v2239 = vsel %vm158, %v2187, 0
  %v2242 = vsel %vm158, %v2188, 0
  %v2245 = vsel %vm158, %v2189, 0
  %v2248 = vsel %vm158, %v2190, 0
  %v2251 = vsel %vm158, %v2191, 0
  %v2254 = vsel %vm158, %v2192, 0
  %v2257 = vsel %vm158, %v2193, 0
  %v2260 = vsel %vm158, %v2194, 0
  %v2263 = vsel %vm158, %v2195, 0
  %v2266 = vsel %vm158, %v2196, 0
  %2268 = vmatprep.subr.bf16.mxu0 0
  %2269 = vmatpush1.bf16.msra.mxu0 0
  %2270 = vmatprep.subr.bf16.mxu0 0
  %2271 = vmatpush1.bf16.msra.mxu0 0
  %2272 = vmatprep.subr.bf16.mxu0 0
  %2273 = vmatpush1.bf16.msra.mxu0 0
  %2274 = vmatprep.subr.bf16.mxu0 0
  %2275 = vmatpush1.bf16.msra.mxu0 0
  %2276 = vmatprep.subr.bf16.mxu0 0
  %2277 = vmatpush1.bf16.msra.mxu0 0
  %2278 = vmatprep.subr.bf16.mxu0 0
  %2279 = vmatpush1.bf16.msra.mxu0 0
  %2280 = vmatprep.subr.bf16.mxu0 0
  %2281 = vmatpush1.bf16.msra.mxu0 %v2217
  %2282 = vmatprep.subr.bf16.mxu0 0
  %2283 = vmatpush1.bf16.msra.mxu0 %v2216
  %2284 = vmatprep.subr.bf16.mxu0 0
  %2285 = vmatpush2.bf16.msra.mxu0 0
  %2286 = vmatprep.subr.bf16.mxu0 0
  %2287 = vmatpush2.bf16.msra.mxu0 0
  %2288 = vmatprep.subr.bf16.mxu0 0
  %2289 = vmatpush2.bf16.msra.mxu0 0
  %2290 = vmatprep.subr.bf16.mxu0 0
  %2291 = vmatpush2.bf16.msra.mxu0 0
  %2292 = vmatprep.subr.bf16.mxu0 0
  %2293 = vmatpush2.bf16.msra.mxu0 0
  %2294 = vmatprep.subr.bf16.mxu0 0
  %2295 = vmatpush2.bf16.msra.mxu0 0
  %2296 = vmatprep.subr.bf16.mxu0 0
  %2297 = vmatpush2.bf16.msra.mxu0 0
  %2298 = vmatprep.subr.bf16.mxu0 0
  %2299 = vmatpush2.bf16.msra.mxu0 0
  %2300 = vmatprep.mubr.bf16.mxu0 0
  %2301 = vmatmul.mubr.bf16.gmra.mxu0 %v2221
  %v2302 = vpop.f32.mrf.mxu0
  %v2303 = vadd.f32 %v2206, %v2302
  %v2304 = vpop.f32.mrf.mxu0
  %v2305 = vpop.f32.mrf.mxu0
  %v2306 = vadd.f32 %v2206, %v2305
  %v2307 = vpop.f32.mrf.mxu0
  %2308 = vmatprep.mubr.bf16.mxu0 0
  %2309 = vmatmul.mubr.bf16.gmra.mxu0 %v2224
  %v2310 = vpop.f32.mrf.mxu0
  %v2311 = vadd.f32 %v2206, %v2310
  %v2312 = vpop.f32.mrf.mxu0
  %v2313 = vpop.f32.mrf.mxu0
  %v2314 = vadd.f32 %v2206, %v2313
  %v2315 = vpop.f32.mrf.mxu0
  %2316 = vmatprep.mubr.bf16.mxu0 0
  %2317 = vmatmul.mubr.bf16.gmra.mxu0 %v2227
  %v2318 = vpop.f32.mrf.mxu0
  %v2319 = vadd.f32 %v2206, %v2318
  %v2320 = vpop.f32.mrf.mxu0
  %v2321 = vpop.f32.mrf.mxu0
  %v2322 = vadd.f32 %v2206, %v2321
  %v2323 = vpop.f32.mrf.mxu0
  %2324 = vmatprep.mubr.bf16.mxu0 0
  %2325 = vmatmul.mubr.bf16.gmra.mxu0 %v2230
  %v2326 = vpop.f32.mrf.mxu0
  %v2327 = vadd.f32 %v2206, %v2326
  %v2328 = vpop.f32.mrf.mxu0
  %v2329 = vpop.f32.mrf.mxu0
  %v2330 = vadd.f32 %v2206, %v2329
  %v2331 = vpop.f32.mrf.mxu0
  %2332 = vmatprep.mubr.bf16.mxu0 0
  %2333 = vmatmul.mubr.bf16.gmra.mxu0 %v2233
  %v2334 = vpop.f32.mrf.mxu0
  %v2335 = vadd.f32 %v2206, %v2334
  %v2336 = vpop.f32.mrf.mxu0
  %v2337 = vpop.f32.mrf.mxu0
  %v2338 = vadd.f32 %v2206, %v2337
  %v2339 = vpop.f32.mrf.mxu0
  %2340 = vmatprep.mubr.bf16.mxu0 0
  %2341 = vmatmul.mubr.bf16.gmra.mxu0 %v2236
  %v2342 = vpop.f32.mrf.mxu0
  %v2343 = vadd.f32 %v2206, %v2342
  %v2344 = vpop.f32.mrf.mxu0
  %v2345 = vpop.f32.mrf.mxu0
  %v2346 = vadd.f32 %v2206, %v2345
  %v2347 = vpop.f32.mrf.mxu0
  %2348 = vmatprep.mubr.bf16.mxu0 0
  %2349 = vmatmul.mubr.bf16.gmra.mxu0 %v2239
  %v2350 = vpop.f32.mrf.mxu0
  %v2351 = vadd.f32 %v2206, %v2350
  %v2352 = vpop.f32.mrf.mxu0
  %v2353 = vpop.f32.mrf.mxu0
  %v2354 = vadd.f32 %v2206, %v2353
  %v2355 = vpop.f32.mrf.mxu0
  %2356 = vmatprep.mubr.bf16.mxu0 0
  %2357 = vmatmul.mubr.bf16.gmra.mxu0 %v2242
  %v2358 = vpop.f32.mrf.mxu0
  %v2359 = vadd.f32 %v2206, %v2358
  %v2360 = vpop.f32.mrf.mxu0
  %v2361 = vpop.f32.mrf.mxu0
  %v2362 = vadd.f32 %v2206, %v2361
  %v2363 = vpop.f32.mrf.mxu0
  %2364 = vmatprep.mubr.bf16.mxu0 0
  %2365 = vmatmul.mubr.bf16.gmra.mxu0 %v2245
  %v2366 = vpop.f32.mrf.mxu0
  %v2367 = vadd.f32 %v2206, %v2366
  %v2368 = vpop.f32.mrf.mxu0
  %v2369 = vpop.f32.mrf.mxu0
  %v2370 = vadd.f32 %v2206, %v2369
  %v2371 = vpop.f32.mrf.mxu0
  %2372 = vmatprep.mubr.bf16.mxu0 0
  %2373 = vmatmul.mubr.bf16.gmra.mxu0 %v2248
  %v2374 = vpop.f32.mrf.mxu0
  %v2375 = vadd.f32 %v2206, %v2374
  %v2376 = vpop.f32.mrf.mxu0
  %v2377 = vpop.f32.mrf.mxu0
  %v2378 = vadd.f32 %v2206, %v2377
  %v2379 = vpop.f32.mrf.mxu0
  %2380 = vmatprep.mubr.bf16.mxu0 0
  %2381 = vmatmul.mubr.bf16.gmra.mxu0 %v2251
  %v2382 = vpop.f32.mrf.mxu0
  %v2383 = vadd.f32 %v2206, %v2382
  %v2384 = vpop.f32.mrf.mxu0
  %v2385 = vpop.f32.mrf.mxu0
  %v2386 = vadd.f32 %v2206, %v2385
  %v2387 = vpop.f32.mrf.mxu0
  %2388 = vmatprep.mubr.bf16.mxu0 0
  %2389 = vmatmul.mubr.bf16.gmra.mxu0 %v2254
  %v2390 = vpop.f32.mrf.mxu0
  %v2391 = vadd.f32 %v2206, %v2390
  %v2392 = vpop.f32.mrf.mxu0
  %v2393 = vpop.f32.mrf.mxu0
  %v2394 = vadd.f32 %v2206, %v2393
  %v2395 = vpop.f32.mrf.mxu0
  %2396 = vmatprep.mubr.bf16.mxu0 0
  %2397 = vmatmul.mubr.bf16.gmra.mxu0 %v2257
  %v2398 = vpop.f32.mrf.mxu0
  %v2399 = vadd.f32 %v2206, %v2398
  %v2400 = vpop.f32.mrf.mxu0
  %v2401 = vpop.f32.mrf.mxu0
  %v2402 = vadd.f32 %v2206, %v2401
  %v2403 = vpop.f32.mrf.mxu0
  %2404 = vmatprep.mubr.bf16.mxu0 0
  %2405 = vmatmul.mubr.bf16.gmra.mxu0 %v2260
  %v2406 = vpop.f32.mrf.mxu0
  %v2407 = vadd.f32 %v2206, %v2406
  %v2408 = vpop.f32.mrf.mxu0
  %v2409 = vpop.f32.mrf.mxu0
  %v2410 = vadd.f32 %v2206, %v2409
  %v2411 = vpop.f32.mrf.mxu0
  %2412 = vmatprep.mubr.bf16.mxu0 0
  %2413 = vmatmul.mubr.bf16.gmra.mxu0 %v2263
  %v2414 = vpop.f32.mrf.mxu0
  %v2415 = vadd.f32 %v2206, %v2414
  %v2416 = vpop.f32.mrf.mxu0
  %v2417 = vpop.f32.mrf.mxu0
  %v2418 = vadd.f32 %v2206, %v2417
  %v2419 = vpop.f32.mrf.mxu0
  %2420 = vmatprep.mubr.bf16.mxu0 0
  %2421 = vmatmul.mubr.bf16.gmra.mxu0 %v2266
  %v2422 = vpop.f32.mrf.mxu0
  %v2423 = vadd.f32 %v2206, %v2422
  %v2424 = vpop.f32.mrf.mxu0
  %v2425 = vpop.f32.mrf.mxu0
  %v2426 = vadd.f32 %v2206, %v2425
  %v2427 = vpop.f32.mrf.mxu0
  %2428 = vdwg.mxu0
  %2461 = vrot.lane.b32.xlu0 %v2303, 1
  %v2462 = vpop.permute.xlu0 %2461
  %2463 = vrot.lane.b32.xlu0 %v2306, 1
  %v2464 = vpop.permute.xlu0 %2463
  %2465 = vrot.lane.b32.xlu0 %v2311, 1
  %v2466 = vpop.permute.xlu0 %2465
  %2467 = vrot.lane.b32.xlu0 %v2314, 1
  %v2468 = vpop.permute.xlu0 %2467
  %2469 = vrot.lane.b32.xlu0 %v2319, 1
  %v2470 = vpop.permute.xlu0 %2469
  %2471 = vrot.lane.b32.xlu0 %v2322, 1
  %v2472 = vpop.permute.xlu0 %2471
  %2473 = vrot.lane.b32.xlu0 %v2327, 1
  %v2474 = vpop.permute.xlu0 %2473
  %2475 = vrot.lane.b32.xlu0 %v2330, 1
  %v2476 = vpop.permute.xlu0 %2475
  %2477 = vrot.lane.b32.xlu0 %v2335, 1
  %v2478 = vpop.permute.xlu0 %2477
  %2479 = vrot.lane.b32.xlu0 %v2338, 1
  %v2480 = vpop.permute.xlu0 %2479
  %2481 = vrot.lane.b32.xlu0 %v2343, 1
  %v2482 = vpop.permute.xlu0 %2481
  %2483 = vrot.lane.b32.xlu0 %v2346, 1
  %v2484 = vpop.permute.xlu0 %2483
  %2485 = vrot.lane.b32.xlu0 %v2351, 1
  %v2486 = vpop.permute.xlu0 %2485
  %2487 = vrot.lane.b32.xlu0 %v2354, 1
  %v2488 = vpop.permute.xlu0 %2487
  %2489 = vrot.lane.b32.xlu0 %v2359, 1
  %v2490 = vpop.permute.xlu0 %2489
  %2491 = vrot.lane.b32.xlu0 %v2362, 1
  %v2492 = vpop.permute.xlu0 %2491
  %2493 = vrot.lane.b32.xlu0 %v2367, 1
  %v2494 = vpop.permute.xlu0 %2493
  %2495 = vrot.lane.b32.xlu0 %v2370, 1
  %v2496 = vpop.permute.xlu0 %2495
  %2497 = vrot.lane.b32.xlu0 %v2375, 1
  %v2498 = vpop.permute.xlu0 %2497
  %2499 = vrot.lane.b32.xlu0 %v2378, 1
  %v2500 = vpop.permute.xlu0 %2499
  %2501 = vrot.lane.b32.xlu0 %v2383, 1
  %v2502 = vpop.permute.xlu0 %2501
  %2503 = vrot.lane.b32.xlu0 %v2386, 1
  %v2504 = vpop.permute.xlu0 %2503
  %2505 = vrot.lane.b32.xlu0 %v2391, 1
  %v2506 = vpop.permute.xlu0 %2505
  %2507 = vrot.lane.b32.xlu0 %v2394, 1
  %v2508 = vpop.permute.xlu0 %2507
  %2509 = vrot.lane.b32.xlu0 %v2399, 1
  %v2510 = vpop.permute.xlu0 %2509
  %2511 = vrot.lane.b32.xlu0 %v2402, 1
  %v2512 = vpop.permute.xlu0 %2511
  %2513 = vrot.lane.b32.xlu0 %v2407, 1
  %v2514 = vpop.permute.xlu0 %2513
  %2515 = vrot.lane.b32.xlu0 %v2410, 1
  %v2516 = vpop.permute.xlu0 %2515
  %2517 = vrot.lane.b32.xlu0 %v2415, 1
  %v2518 = vpop.permute.xlu0 %2517
  %2519 = vrot.lane.b32.xlu0 %v2418, 1
  %v2520 = vpop.permute.xlu0 %2519
  %2521 = vrot.lane.b32.xlu0 %v2423, 1
  %v2522 = vpop.permute.xlu0 %2521
  %2523 = vrot.lane.b32.xlu0 %v2426, 1
  %v2524 = vpop.permute.xlu0 %2523
  %v2557 = vsub.f32 %v2303, %v2462
  %v2558 = vsub.f32 %v2306, %v2464
  %v2559 = vsub.f32 %v2311, %v2466
  %v2560 = vsub.f32 %v2314, %v2468
  %v2561 = vsub.f32 %v2319, %v2470
  %v2562 = vsub.f32 %v2322, %v2472
  %v2563 = vsub.f32 %v2327, %v2474
  %v2564 = vsub.f32 %v2330, %v2476
  %v2565 = vsub.f32 %v2335, %v2478
  %v2566 = vsub.f32 %v2338, %v2480
  %v2567 = vsub.f32 %v2343, %v2482
  %v2568 = vsub.f32 %v2346, %v2484
  %v2569 = vsub.f32 %v2351, %v2486
  %v2570 = vsub.f32 %v2354, %v2488
  %v2571 = vsub.f32 %v2359, %v2490
  %v2572 = vsub.f32 %v2362, %v2492
  %v2573 = vsub.f32 %v2367, %v2494
  %v2574 = vsub.f32 %v2370, %v2496
  %v2575 = vsub.f32 %v2375, %v2498
  %v2576 = vsub.f32 %v2378, %v2500
  %v2577 = vsub.f32 %v2383, %v2502
  %v2578 = vsub.f32 %v2386, %v2504
  %v2579 = vsub.f32 %v2391, %v2506
  %v2580 = vsub.f32 %v2394, %v2508
  %v2581 = vsub.f32 %v2399, %v2510
  %v2582 = vsub.f32 %v2402, %v2512
  %v2583 = vsub.f32 %v2407, %v2514
  %v2584 = vsub.f32 %v2410, %v2516
  %v2585 = vsub.f32 %v2415, %v2518
  %v2586 = vsub.f32 %v2418, %v2520
  %v2587 = vsub.f32 %v2423, %v2522
  %v2588 = vsub.f32 %v2426, %v2524
  %v2589 = vmax.f32 %v2557, -30.0
  %v2590 = vmax.f32 %v2558, -30.0
  %v2591 = vmax.f32 %v2559, -30.0
  %v2592 = vmax.f32 %v2560, -30.0
  %v2593 = vmax.f32 %v2561, -30.0
  %v2594 = vmax.f32 %v2562, -30.0
  %v2595 = vmax.f32 %v2563, -30.0
  %v2596 = vmax.f32 %v2564, -30.0
  %v2597 = vmax.f32 %v2565, -30.0
  %v2598 = vmax.f32 %v2566, -30.0
  %v2599 = vmax.f32 %v2567, -30.0
  %v2600 = vmax.f32 %v2568, -30.0
  %v2601 = vmax.f32 %v2569, -30.0
  %v2602 = vmax.f32 %v2570, -30.0
  %v2603 = vmax.f32 %v2571, -30.0
  %v2604 = vmax.f32 %v2572, -30.0
  %v2605 = vmax.f32 %v2573, -30.0
  %v2606 = vmax.f32 %v2574, -30.0
  %v2607 = vmax.f32 %v2575, -30.0
  %v2608 = vmax.f32 %v2576, -30.0
  %v2609 = vmax.f32 %v2577, -30.0
  %v2610 = vmax.f32 %v2578, -30.0
  %v2611 = vmax.f32 %v2579, -30.0
  %v2612 = vmax.f32 %v2580, -30.0
  %v2613 = vmax.f32 %v2581, -30.0
  %v2614 = vmax.f32 %v2582, -30.0
  %v2615 = vmax.f32 %v2583, -30.0
  %v2616 = vmax.f32 %v2584, -30.0
  %v2617 = vmax.f32 %v2585, -30.0
  %v2618 = vmax.f32 %v2586, -30.0
  %v2619 = vmax.f32 %v2587, -30.0
  %v2620 = vmax.f32 %v2588, -30.0
  %v2621 = vmin.f32 %v2589, 30.0
  %v2622 = vmin.f32 %v2590, 30.0
  %v2623 = vmin.f32 %v2591, 30.0
  %v2624 = vmin.f32 %v2592, 30.0
  %v2625 = vmin.f32 %v2593, 30.0
  %v2626 = vmin.f32 %v2594, 30.0
  %v2627 = vmin.f32 %v2595, 30.0
  %v2628 = vmin.f32 %v2596, 30.0
  %v2629 = vmin.f32 %v2597, 30.0
  %v2630 = vmin.f32 %v2598, 30.0
  %v2631 = vmin.f32 %v2599, 30.0
  %v2632 = vmin.f32 %v2600, 30.0
  %v2633 = vmin.f32 %v2601, 30.0
  %v2634 = vmin.f32 %v2602, 30.0
  %v2635 = vmin.f32 %v2603, 30.0
  %v2636 = vmin.f32 %v2604, 30.0
  %v2637 = vmin.f32 %v2605, 30.0
  %v2638 = vmin.f32 %v2606, 30.0
  %v2639 = vmin.f32 %v2607, 30.0
  %v2640 = vmin.f32 %v2608, 30.0
  %v2641 = vmin.f32 %v2609, 30.0
  %v2642 = vmin.f32 %v2610, 30.0
  %v2643 = vmin.f32 %v2611, 30.0
  %v2644 = vmin.f32 %v2612, 30.0
  %v2645 = vmin.f32 %v2613, 30.0
  %v2646 = vmin.f32 %v2614, 30.0
  %v2647 = vmin.f32 %v2615, 30.0
  %v2648 = vmin.f32 %v2616, 30.0
  %v2649 = vmin.f32 %v2617, 30.0
  %v2650 = vmin.f32 %v2618, 30.0
  %v2651 = vmin.f32 %v2619, 30.0
  %v2652 = vmin.f32 %v2620, 30.0
  %v2653 = vsub.f32 0.0, %v2621
  %v2654 = vsub.f32 0.0, %v2622
  %v2655 = vsub.f32 0.0, %v2623
  %v2656 = vsub.f32 0.0, %v2624
  %v2657 = vsub.f32 0.0, %v2625
  %v2658 = vsub.f32 0.0, %v2626
  %v2659 = vsub.f32 0.0, %v2627
  %v2660 = vsub.f32 0.0, %v2628
  %v2661 = vsub.f32 0.0, %v2629
  %v2662 = vsub.f32 0.0, %v2630
  %v2663 = vsub.f32 0.0, %v2631
  %v2664 = vsub.f32 0.0, %v2632
  %v2665 = vsub.f32 0.0, %v2633
  %v2666 = vsub.f32 0.0, %v2634
  %v2667 = vsub.f32 0.0, %v2635
  %v2668 = vsub.f32 0.0, %v2636
  %v2669 = vsub.f32 0.0, %v2637
  %v2670 = vsub.f32 0.0, %v2638
  %v2671 = vsub.f32 0.0, %v2639
  %v2672 = vsub.f32 0.0, %v2640
  %v2673 = vsub.f32 0.0, %v2641
  %v2674 = vsub.f32 0.0, %v2642
  %v2675 = vsub.f32 0.0, %v2643
  %v2676 = vsub.f32 0.0, %v2644
  %v2677 = vsub.f32 0.0, %v2645
  %v2678 = vsub.f32 0.0, %v2646
  %v2679 = vsub.f32 0.0, %v2647
  %v2680 = vsub.f32 0.0, %v2648
  %v2681 = vsub.f32 0.0, %v2649
  %v2682 = vsub.f32 0.0, %v2650
  %v2683 = vsub.f32 0.0, %v2651
  %v2684 = vsub.f32 0.0, %v2652
  %v2685 = vmul.f32 %v2653, 1.442695
  %v2686 = vpow.pop %v2685
  %v2687 = vmul.f32 %v2654, 1.442695
  %v2688 = vpow.pop %v2687
  %v2689 = vmul.f32 %v2655, 1.442695
  %v2690 = vpow.pop %v2689
  %v2691 = vmul.f32 %v2656, 1.442695
  %v2692 = vpow.pop %v2691
  %v2693 = vmul.f32 %v2657, 1.442695
  %v2694 = vpow.pop %v2693
  %v2695 = vmul.f32 %v2658, 1.442695
  %v2696 = vpow.pop %v2695
  %v2697 = vmul.f32 %v2659, 1.442695
  %v2698 = vpow.pop %v2697
  %v2699 = vmul.f32 %v2660, 1.442695
  %v2700 = vpow.pop %v2699
  %v2701 = vmul.f32 %v2661, 1.442695
  %v2702 = vpow.pop %v2701
  %v2703 = vmul.f32 %v2662, 1.442695
  %v2704 = vpow.pop %v2703
  %v2705 = vmul.f32 %v2663, 1.442695
  %v2706 = vpow.pop %v2705
  %v2707 = vmul.f32 %v2664, 1.442695
  %v2708 = vpow.pop %v2707
  %v2709 = vmul.f32 %v2665, 1.442695
  %v2710 = vpow.pop %v2709
  %v2711 = vmul.f32 %v2666, 1.442695
  %v2712 = vpow.pop %v2711
  %v2713 = vmul.f32 %v2667, 1.442695
  %v2714 = vpow.pop %v2713
  %v2715 = vmul.f32 %v2668, 1.442695
  %v2716 = vpow.pop %v2715
  %v2717 = vmul.f32 %v2669, 1.442695
  %v2718 = vpow.pop %v2717
  %v2719 = vmul.f32 %v2670, 1.442695
  %v2720 = vpow.pop %v2719
  %v2721 = vmul.f32 %v2671, 1.442695
  %v2722 = vpow.pop %v2721
  %v2723 = vmul.f32 %v2672, 1.442695
  %v2724 = vpow.pop %v2723
  %v2725 = vmul.f32 %v2673, 1.442695
  %v2726 = vpow.pop %v2725
  %v2727 = vmul.f32 %v2674, 1.442695
  %v2728 = vpow.pop %v2727
  %v2729 = vmul.f32 %v2675, 1.442695
  %v2730 = vpow.pop %v2729
  %v2731 = vmul.f32 %v2676, 1.442695
  %v2732 = vpow.pop %v2731
  %v2733 = vmul.f32 %v2677, 1.442695
  %v2734 = vpow.pop %v2733
  %v2735 = vmul.f32 %v2678, 1.442695
  %v2736 = vpow.pop %v2735
  %v2737 = vmul.f32 %v2679, 1.442695
  %v2738 = vpow.pop %v2737
  %v2739 = vmul.f32 %v2680, 1.442695
  %v2740 = vpow.pop %v2739
  %v2741 = vmul.f32 %v2681, 1.442695
  %v2742 = vpow.pop %v2741
  %v2743 = vmul.f32 %v2682, 1.442695
  %v2744 = vpow.pop %v2743
  %v2745 = vmul.f32 %v2683, 1.442695
  %v2746 = vpow.pop %v2745
  %v2747 = vmul.f32 %v2684, 1.442695
  %v2748 = vpow.pop %v2747
  %v2749 = vadd.f32 %v2686, 1.0
  %v2750 = vadd.f32 %v2688, 1.0
  %v2751 = vadd.f32 %v2690, 1.0
  %v2752 = vadd.f32 %v2692, 1.0
  %v2753 = vadd.f32 %v2694, 1.0
  %v2754 = vadd.f32 %v2696, 1.0
  %v2755 = vadd.f32 %v2698, 1.0
  %v2756 = vadd.f32 %v2700, 1.0
  %v2757 = vadd.f32 %v2702, 1.0
  %v2758 = vadd.f32 %v2704, 1.0
  %v2759 = vadd.f32 %v2706, 1.0
  %v2760 = vadd.f32 %v2708, 1.0
  %v2761 = vadd.f32 %v2710, 1.0
  %v2762 = vadd.f32 %v2712, 1.0
  %v2763 = vadd.f32 %v2714, 1.0
  %v2764 = vadd.f32 %v2716, 1.0
  %v2765 = vadd.f32 %v2718, 1.0
  %v2766 = vadd.f32 %v2720, 1.0
  %v2767 = vadd.f32 %v2722, 1.0
  %v2768 = vadd.f32 %v2724, 1.0
  %v2769 = vadd.f32 %v2726, 1.0
  %v2770 = vadd.f32 %v2728, 1.0
  %v2771 = vadd.f32 %v2730, 1.0
  %v2772 = vadd.f32 %v2732, 1.0
  %v2773 = vadd.f32 %v2734, 1.0
  %v2774 = vadd.f32 %v2736, 1.0
  %v2775 = vadd.f32 %v2738, 1.0
  %v2776 = vadd.f32 %v2740, 1.0
  %v2777 = vadd.f32 %v2742, 1.0
  %v2778 = vadd.f32 %v2744, 1.0
  %v2779 = vadd.f32 %v2746, 1.0
  %v2780 = vadd.f32 %v2748, 1.0
  %v2781 = vrcp.pop %v2749
  %v2782 = vmul.f32 1.0, %v2781
  %v2783 = vrcp.pop %v2750
  %v2784 = vmul.f32 1.0, %v2783
  %v2785 = vrcp.pop %v2751
  %v2786 = vmul.f32 1.0, %v2785
  %v2787 = vrcp.pop %v2752
  %v2788 = vmul.f32 1.0, %v2787
  %v2789 = vrcp.pop %v2753
  %v2790 = vmul.f32 1.0, %v2789
  %v2791 = vrcp.pop %v2754
  %v2792 = vmul.f32 1.0, %v2791
  %v2793 = vrcp.pop %v2755
  %v2794 = vmul.f32 1.0, %v2793
  %v2795 = vrcp.pop %v2756
  %v2796 = vmul.f32 1.0, %v2795
  %v2797 = vrcp.pop %v2757
  %v2798 = vmul.f32 1.0, %v2797
  %v2799 = vrcp.pop %v2758
  %v2800 = vmul.f32 1.0, %v2799
  %v2801 = vrcp.pop %v2759
  %v2802 = vmul.f32 1.0, %v2801
  %v2803 = vrcp.pop %v2760
  %v2804 = vmul.f32 1.0, %v2803
  %v2805 = vrcp.pop %v2761
  %v2806 = vmul.f32 1.0, %v2805
  %v2807 = vrcp.pop %v2762
  %v2808 = vmul.f32 1.0, %v2807
  %v2809 = vrcp.pop %v2763
  %v2810 = vmul.f32 1.0, %v2809
  %v2811 = vrcp.pop %v2764
  %v2812 = vmul.f32 1.0, %v2811
  %v2813 = vrcp.pop %v2765
  %v2814 = vmul.f32 1.0, %v2813
  %v2815 = vrcp.pop %v2766
  %v2816 = vmul.f32 1.0, %v2815
  %v2817 = vrcp.pop %v2767
  %v2818 = vmul.f32 1.0, %v2817
  %v2819 = vrcp.pop %v2768
  %v2820 = vmul.f32 1.0, %v2819
  %v2821 = vrcp.pop %v2769
  %v2822 = vmul.f32 1.0, %v2821
  %v2823 = vrcp.pop %v2770
  %v2824 = vmul.f32 1.0, %v2823
  %v2825 = vrcp.pop %v2771
  %v2826 = vmul.f32 1.0, %v2825
  %v2827 = vrcp.pop %v2772
  %v2828 = vmul.f32 1.0, %v2827
  %v2829 = vrcp.pop %v2773
  %v2830 = vmul.f32 1.0, %v2829
  %v2831 = vrcp.pop %v2774
  %v2832 = vmul.f32 1.0, %v2831
  %v2833 = vrcp.pop %v2775
  %v2834 = vmul.f32 1.0, %v2833
  %v2835 = vrcp.pop %v2776
  %v2836 = vmul.f32 1.0, %v2835
  %v2837 = vrcp.pop %v2777
  %v2838 = vmul.f32 1.0, %v2837
  %v2839 = vrcp.pop %v2778
  %v2840 = vmul.f32 1.0, %v2839
  %v2841 = vrcp.pop %v2779
  %v2842 = vmul.f32 1.0, %v2841
  %v2843 = vrcp.pop %v2780
  %v2844 = vmul.f32 1.0, %v2843
  %v2845 = vsub.f32 1.0, %v2782
  %v2846 = vsub.f32 1.0, %v2784
  %v2847 = vsub.f32 1.0, %v2786
  %v2848 = vsub.f32 1.0, %v2788
  %v2849 = vsub.f32 1.0, %v2790
  %v2850 = vsub.f32 1.0, %v2792
  %v2851 = vsub.f32 1.0, %v2794
  %v2852 = vsub.f32 1.0, %v2796
  %v2853 = vsub.f32 1.0, %v2798
  %v2854 = vsub.f32 1.0, %v2800
  %v2855 = vsub.f32 1.0, %v2802
  %v2856 = vsub.f32 1.0, %v2804
  %v2857 = vsub.f32 1.0, %v2806
  %v2858 = vsub.f32 1.0, %v2808
  %v2859 = vsub.f32 1.0, %v2810
  %v2860 = vsub.f32 1.0, %v2812
  %v2861 = vsub.f32 1.0, %v2814
  %v2862 = vsub.f32 1.0, %v2816
  %v2863 = vsub.f32 1.0, %v2818
  %v2864 = vsub.f32 1.0, %v2820
  %v2865 = vsub.f32 1.0, %v2822
  %v2866 = vsub.f32 1.0, %v2824
  %v2867 = vsub.f32 1.0, %v2826
  %v2868 = vsub.f32 1.0, %v2828
  %v2869 = vsub.f32 1.0, %v2830
  %v2870 = vsub.f32 1.0, %v2832
  %v2871 = vsub.f32 1.0, %v2834
  %v2872 = vsub.f32 1.0, %v2836
  %v2873 = vsub.f32 1.0, %v2838
  %v2874 = vsub.f32 1.0, %v2840
  %v2875 = vsub.f32 1.0, %v2842
  %v2876 = vsub.f32 1.0, %v2844
  %v2877 = vlaneseq
  %v2878 = vand.u32 %v2877, 127
  %vm2879 = vcmp.eq.s32.totalorder %v2878, 2
  %2881 = vset.pattern.permute.xlu0 1
  %2882 = vperm.xlu0 %2881, %v2845
  %v2883 = vpop.permute.xlu0 %2882
  %2886 = vset.pattern.permute.xlu0 1
  %2887 = vperm.xlu0 %2886, %v2846
  %v2888 = vpop.permute.xlu0 %2887
  %2891 = vset.pattern.permute.xlu0 1
  %2892 = vperm.xlu0 %2891, %v2847
  %v2893 = vpop.permute.xlu0 %2892
  %2896 = vset.pattern.permute.xlu0 1
  %2897 = vperm.xlu0 %2896, %v2848
  %v2898 = vpop.permute.xlu0 %2897
  %2901 = vset.pattern.permute.xlu0 1
  %2902 = vperm.xlu0 %2901, %v2849
  %v2903 = vpop.permute.xlu0 %2902
  %2906 = vset.pattern.permute.xlu0 1
  %2907 = vperm.xlu0 %2906, %v2850
  %v2908 = vpop.permute.xlu0 %2907
  %2911 = vset.pattern.permute.xlu0 1
  %2912 = vperm.xlu0 %2911, %v2851
  %v2913 = vpop.permute.xlu0 %2912
  %2916 = vset.pattern.permute.xlu0 1
  %2917 = vperm.xlu0 %2916, %v2852
  %v2918 = vpop.permute.xlu0 %2917
  %2921 = vset.pattern.permute.xlu0 1
  %2922 = vperm.xlu0 %2921, %v2853
  %v2923 = vpop.permute.xlu0 %2922
  %2926 = vset.pattern.permute.xlu0 1
  %2927 = vperm.xlu0 %2926, %v2854
  %v2928 = vpop.permute.xlu0 %2927
  %2931 = vset.pattern.permute.xlu0 1
  %2932 = vperm.xlu0 %2931, %v2855
  %v2933 = vpop.permute.xlu0 %2932
  %2936 = vset.pattern.permute.xlu0 1
  %2937 = vperm.xlu0 %2936, %v2856
  %v2938 = vpop.permute.xlu0 %2937
  %2941 = vset.pattern.permute.xlu0 1
  %2942 = vperm.xlu0 %2941, %v2857
  %v2943 = vpop.permute.xlu0 %2942
  %2946 = vset.pattern.permute.xlu0 1
  %2947 = vperm.xlu0 %2946, %v2858
  %v2948 = vpop.permute.xlu0 %2947
  %2951 = vset.pattern.permute.xlu0 1
  %2952 = vperm.xlu0 %2951, %v2859
  %v2953 = vpop.permute.xlu0 %2952
  %2956 = vset.pattern.permute.xlu0 1
  %2957 = vperm.xlu0 %2956, %v2860
  %v2958 = vpop.permute.xlu0 %2957
  %2961 = vset.pattern.permute.xlu0 1
  %2962 = vperm.xlu0 %2961, %v2861
  %v2963 = vpop.permute.xlu0 %2962
  %2966 = vset.pattern.permute.xlu0 1
  %2967 = vperm.xlu0 %2966, %v2862
  %v2968 = vpop.permute.xlu0 %2967
  %2971 = vset.pattern.permute.xlu0 1
  %2972 = vperm.xlu0 %2971, %v2863
  %v2973 = vpop.permute.xlu0 %2972
  %2976 = vset.pattern.permute.xlu0 1
  %2977 = vperm.xlu0 %2976, %v2864
  %v2978 = vpop.permute.xlu0 %2977
  %2981 = vset.pattern.permute.xlu0 1
  %2982 = vperm.xlu0 %2981, %v2865
  %v2983 = vpop.permute.xlu0 %2982
  %2986 = vset.pattern.permute.xlu0 1
  %2987 = vperm.xlu0 %2986, %v2866
  %v2988 = vpop.permute.xlu0 %2987
  %2991 = vset.pattern.permute.xlu0 1
  %2992 = vperm.xlu0 %2991, %v2867
  %v2993 = vpop.permute.xlu0 %2992
  %2996 = vset.pattern.permute.xlu0 1
  %2997 = vperm.xlu0 %2996, %v2868
  %v2998 = vpop.permute.xlu0 %2997
  %3001 = vset.pattern.permute.xlu0 1
  %3002 = vperm.xlu0 %3001, %v2869
  %v3003 = vpop.permute.xlu0 %3002
  %3006 = vset.pattern.permute.xlu0 1
  %3007 = vperm.xlu0 %3006, %v2870
  %v3008 = vpop.permute.xlu0 %3007
  %3011 = vset.pattern.permute.xlu0 1
  %3012 = vperm.xlu0 %3011, %v2871
  %v3013 = vpop.permute.xlu0 %3012
  %3016 = vset.pattern.permute.xlu0 1
  %3017 = vperm.xlu0 %3016, %v2872
  %v3018 = vpop.permute.xlu0 %3017
  %3021 = vset.pattern.permute.xlu0 1
  %3022 = vperm.xlu0 %3021, %v2873
  %v3023 = vpop.permute.xlu0 %3022
  %3026 = vset.pattern.permute.xlu0 1
  %3027 = vperm.xlu0 %3026, %v2874
  %v3028 = vpop.permute.xlu0 %3027
  %3031 = vset.pattern.permute.xlu0 1
  %3032 = vperm.xlu0 %3031, %v2875
  %v3033 = vpop.permute.xlu0 %3032
  %3036 = vset.pattern.permute.xlu0 1
  %3037 = vperm.xlu0 %3036, %v2876
  %v3038 = vpop.permute.xlu0 %3037
  %v3040 = vsel %vm2879, %v2883, 0.0
  %v3041 = vsel %vm2879, %v2888, 0.0
  %v3042 = vsel %vm2879, %v2893, 0.0
  %v3043 = vsel %vm2879, %v2898, 0.0
  %v3044 = vsel %vm2879, %v2903, 0.0
  %v3045 = vsel %vm2879, %v2908, 0.0
  %v3046 = vsel %vm2879, %v2913, 0.0
  %v3047 = vsel %vm2879, %v2918, 0.0
  %v3048 = vsel %vm2879, %v2923, 0.0
  %v3049 = vsel %vm2879, %v2928, 0.0
  %v3050 = vsel %vm2879, %v2933, 0.0
  %v3051 = vsel %vm2879, %v2938, 0.0
  %v3052 = vsel %vm2879, %v2943, 0.0
  %v3053 = vsel %vm2879, %v2948, 0.0
  %v3054 = vsel %vm2879, %v2953, 0.0
  %v3055 = vsel %vm2879, %v2958, 0.0
  %v3056 = vsel %vm2879, %v2963, 0.0
  %v3057 = vsel %vm2879, %v2968, 0.0
  %v3058 = vsel %vm2879, %v2973, 0.0
  %v3059 = vsel %vm2879, %v2978, 0.0
  %v3060 = vsel %vm2879, %v2983, 0.0
  %v3061 = vsel %vm2879, %v2988, 0.0
  %v3062 = vsel %vm2879, %v2993, 0.0
  %v3063 = vsel %vm2879, %v2998, 0.0
  %v3064 = vsel %vm2879, %v3003, 0.0
  %v3065 = vsel %vm2879, %v3008, 0.0
  %v3066 = vsel %vm2879, %v3013, 0.0
  %v3067 = vsel %vm2879, %v3018, 0.0
  %v3068 = vsel %vm2879, %v3023, 0.0
  %v3069 = vsel %vm2879, %v3028, 0.0
  %v3070 = vsel %vm2879, %v3033, 0.0
  %v3071 = vsel %vm2879, %v3038, 0.0
  %v3072 = vadd.f32 %v2303, %v3040
  %v3073 = vadd.f32 %v2306, %v3041
  %v3074 = vadd.f32 %v2311, %v3042
  %v3075 = vadd.f32 %v2314, %v3043
  %v3076 = vadd.f32 %v2319, %v3044
  %v3077 = vadd.f32 %v2322, %v3045
  %v3078 = vadd.f32 %v2327, %v3046
  %v3079 = vadd.f32 %v2330, %v3047
  %v3080 = vadd.f32 %v2335, %v3048
  %v3081 = vadd.f32 %v2338, %v3049
  %v3082 = vadd.f32 %v2343, %v3050
  %v3083 = vadd.f32 %v2346, %v3051
  %v3084 = vadd.f32 %v2351, %v3052
  %v3085 = vadd.f32 %v2354, %v3053
  %v3086 = vadd.f32 %v2359, %v3054
  %v3087 = vadd.f32 %v2362, %v3055
  %v3088 = vadd.f32 %v2367, %v3056
  %v3089 = vadd.f32 %v2370, %v3057
  %v3090 = vadd.f32 %v2375, %v3058
  %v3091 = vadd.f32 %v2378, %v3059
  %v3092 = vadd.f32 %v2383, %v3060
  %v3093 = vadd.f32 %v2386, %v3061
  %v3094 = vadd.f32 %v2391, %v3062
  %v3095 = vadd.f32 %v2394, %v3063
  %v3096 = vadd.f32 %v2399, %v3064
  %v3097 = vadd.f32 %v2402, %v3065
  %v3098 = vadd.f32 %v2407, %v3066
  %v3099 = vadd.f32 %v2410, %v3067
  %v3100 = vadd.f32 %v2415, %v3068
  %v3101 = vadd.f32 %v2418, %v3069
  %v3102 = vadd.f32 %v2423, %v3070
  %v3103 = vadd.f32 %v2426, %v3071
  %vm3104 = vcmp.eq.s32.totalorder %v2878, 3
  %3106 = vset.pattern.permute.xlu0 1
  %3107 = vperm.xlu0 %3106, %v2782
  %v3108 = vpop.permute.xlu0 %3107
  %3111 = vset.pattern.permute.xlu0 1
  %3112 = vperm.xlu0 %3111, %v2784
  %v3113 = vpop.permute.xlu0 %3112
  %3116 = vset.pattern.permute.xlu0 1
  %3117 = vperm.xlu0 %3116, %v2786
  %v3118 = vpop.permute.xlu0 %3117
  %3121 = vset.pattern.permute.xlu0 1
  %3122 = vperm.xlu0 %3121, %v2788
  %v3123 = vpop.permute.xlu0 %3122
  %3126 = vset.pattern.permute.xlu0 1
  %3127 = vperm.xlu0 %3126, %v2790
  %v3128 = vpop.permute.xlu0 %3127
  %3131 = vset.pattern.permute.xlu0 1
  %3132 = vperm.xlu0 %3131, %v2792
  %v3133 = vpop.permute.xlu0 %3132
  %3136 = vset.pattern.permute.xlu0 1
  %3137 = vperm.xlu0 %3136, %v2794
  %v3138 = vpop.permute.xlu0 %3137
  %3141 = vset.pattern.permute.xlu0 1
  %3142 = vperm.xlu0 %3141, %v2796
  %v3143 = vpop.permute.xlu0 %3142
  %3146 = vset.pattern.permute.xlu0 1
  %3147 = vperm.xlu0 %3146, %v2798
  %v3148 = vpop.permute.xlu0 %3147
  %3151 = vset.pattern.permute.xlu0 1
  %3152 = vperm.xlu0 %3151, %v2800
  %v3153 = vpop.permute.xlu0 %3152
  %3156 = vset.pattern.permute.xlu0 1
  %3157 = vperm.xlu0 %3156, %v2802
  %v3158 = vpop.permute.xlu0 %3157
  %3161 = vset.pattern.permute.xlu0 1
  %3162 = vperm.xlu0 %3161, %v2804
  %v3163 = vpop.permute.xlu0 %3162
  %3166 = vset.pattern.permute.xlu0 1
  %3167 = vperm.xlu0 %3166, %v2806
  %v3168 = vpop.permute.xlu0 %3167
  %3171 = vset.pattern.permute.xlu0 1
  %3172 = vperm.xlu0 %3171, %v2808
  %v3173 = vpop.permute.xlu0 %3172
  %3176 = vset.pattern.permute.xlu0 1
  %3177 = vperm.xlu0 %3176, %v2810
  %v3178 = vpop.permute.xlu0 %3177
  %3181 = vset.pattern.permute.xlu0 1
  %3182 = vperm.xlu0 %3181, %v2812
  %v3183 = vpop.permute.xlu0 %3182
  %3186 = vset.pattern.permute.xlu0 1
  %3187 = vperm.xlu0 %3186, %v2814
  %v3188 = vpop.permute.xlu0 %3187
  %3191 = vset.pattern.permute.xlu0 1
  %3192 = vperm.xlu0 %3191, %v2816
  %v3193 = vpop.permute.xlu0 %3192
  %3196 = vset.pattern.permute.xlu0 1
  %3197 = vperm.xlu0 %3196, %v2818
  %v3198 = vpop.permute.xlu0 %3197
  %3201 = vset.pattern.permute.xlu0 1
  %3202 = vperm.xlu0 %3201, %v2820
  %v3203 = vpop.permute.xlu0 %3202
  %3206 = vset.pattern.permute.xlu0 1
  %3207 = vperm.xlu0 %3206, %v2822
  %v3208 = vpop.permute.xlu0 %3207
  %3211 = vset.pattern.permute.xlu0 1
  %3212 = vperm.xlu0 %3211, %v2824
  %v3213 = vpop.permute.xlu0 %3212
  %3216 = vset.pattern.permute.xlu0 1
  %3217 = vperm.xlu0 %3216, %v2826
  %v3218 = vpop.permute.xlu0 %3217
  %3221 = vset.pattern.permute.xlu0 1
  %3222 = vperm.xlu0 %3221, %v2828
  %v3223 = vpop.permute.xlu0 %3222
  %3226 = vset.pattern.permute.xlu0 1
  %3227 = vperm.xlu0 %3226, %v2830
  %v3228 = vpop.permute.xlu0 %3227
  %3231 = vset.pattern.permute.xlu0 1
  %3232 = vperm.xlu0 %3231, %v2832
  %v3233 = vpop.permute.xlu0 %3232
  %3236 = vset.pattern.permute.xlu0 1
  %3237 = vperm.xlu0 %3236, %v2834
  %v3238 = vpop.permute.xlu0 %3237
  %3241 = vset.pattern.permute.xlu0 1
  %3242 = vperm.xlu0 %3241, %v2836
  %v3243 = vpop.permute.xlu0 %3242
  %3246 = vset.pattern.permute.xlu0 1
  %3247 = vperm.xlu0 %3246, %v2838
  %v3248 = vpop.permute.xlu0 %3247
  %3251 = vset.pattern.permute.xlu0 1
  %3252 = vperm.xlu0 %3251, %v2840
  %v3253 = vpop.permute.xlu0 %3252
  %3256 = vset.pattern.permute.xlu0 1
  %3257 = vperm.xlu0 %3256, %v2842
  %v3258 = vpop.permute.xlu0 %3257
  %3261 = vset.pattern.permute.xlu0 1
  %3262 = vperm.xlu0 %3261, %v2844
  %v3263 = vpop.permute.xlu0 %3262
  %v3265 = vsel %vm3104, %v3108, 0.0
  %v3266 = vsel %vm3104, %v3113, 0.0
  %v3267 = vsel %vm3104, %v3118, 0.0
  %v3268 = vsel %vm3104, %v3123, 0.0
  %v3269 = vsel %vm3104, %v3128, 0.0
  %v3270 = vsel %vm3104, %v3133, 0.0
  %v3271 = vsel %vm3104, %v3138, 0.0
  %v3272 = vsel %vm3104, %v3143, 0.0
  %v3273 = vsel %vm3104, %v3148, 0.0
  %v3274 = vsel %vm3104, %v3153, 0.0
  %v3275 = vsel %vm3104, %v3158, 0.0
  %v3276 = vsel %vm3104, %v3163, 0.0
  %v3277 = vsel %vm3104, %v3168, 0.0
  %v3278 = vsel %vm3104, %v3173, 0.0
  %v3279 = vsel %vm3104, %v3178, 0.0
  %v3280 = vsel %vm3104, %v3183, 0.0
  %v3281 = vsel %vm3104, %v3188, 0.0
  %v3282 = vsel %vm3104, %v3193, 0.0
  %v3283 = vsel %vm3104, %v3198, 0.0
  %v3284 = vsel %vm3104, %v3203, 0.0
  %v3285 = vsel %vm3104, %v3208, 0.0
  %v3286 = vsel %vm3104, %v3213, 0.0
  %v3287 = vsel %vm3104, %v3218, 0.0
  %v3288 = vsel %vm3104, %v3223, 0.0
  %v3289 = vsel %vm3104, %v3228, 0.0
  %v3290 = vsel %vm3104, %v3233, 0.0
  %v3291 = vsel %vm3104, %v3238, 0.0
  %v3292 = vsel %vm3104, %v3243, 0.0
  %v3293 = vsel %vm3104, %v3248, 0.0
  %v3294 = vsel %vm3104, %v3253, 0.0
  %v3295 = vsel %vm3104, %v3258, 0.0
  %v3296 = vsel %vm3104, %v3263, 0.0
  %v3297 = vadd.f32 %v3072, %v3265
  %v3298 = vadd.f32 %v3073, %v3266
  %v3299 = vadd.f32 %v3074, %v3267
  %v3300 = vadd.f32 %v3075, %v3268
  %v3301 = vadd.f32 %v3076, %v3269
  %v3302 = vadd.f32 %v3077, %v3270
  %v3303 = vadd.f32 %v3078, %v3271
  %v3304 = vadd.f32 %v3079, %v3272
  %v3305 = vadd.f32 %v3080, %v3273
  %v3306 = vadd.f32 %v3081, %v3274
  %v3307 = vadd.f32 %v3082, %v3275
  %v3308 = vadd.f32 %v3083, %v3276
  %v3309 = vadd.f32 %v3084, %v3277
  %v3310 = vadd.f32 %v3085, %v3278
  %v3311 = vadd.f32 %v3086, %v3279
  %v3312 = vadd.f32 %v3087, %v3280
  %v3313 = vadd.f32 %v3088, %v3281
  %v3314 = vadd.f32 %v3089, %v3282
  %v3315 = vadd.f32 %v3090, %v3283
  %v3316 = vadd.f32 %v3091, %v3284
  %v3317 = vadd.f32 %v3092, %v3285
  %v3318 = vadd.f32 %v3093, %v3286
  %v3319 = vadd.f32 %v3094, %v3287
  %v3320 = vadd.f32 %v3095, %v3288
  %v3321 = vadd.f32 %v3096, %v3289
  %v3322 = vadd.f32 %v3097, %v3290
  %v3323 = vadd.f32 %v3098, %v3291
  %v3324 = vadd.f32 %v3099, %v3292
  %v3325 = vadd.f32 %v3100, %v3293
  %v3326 = vadd.f32 %v3101, %v3294
  %v3327 = vadd.f32 %v3102, %v3295
  %v3328 = vadd.f32 %v3103, %v3296
  %3329 = vst [vmem:[%s8] sm:$0xff] %v3297
  %3330 = vst [vmem:[%s8 + $0x8] sm:$0xff] %v3298
  %3331 = vst [vmem:[%s8 + $0x10] sm:$0xff] %v3299
  %3332 = vst [vmem:[%s8 + $0x18] sm:$0xff] %v3300
  %3333 = vst [vmem:[%s8 + $0x20] sm:$0xff] %v3301
  %3334 = vst [vmem:[%s8 + $0x28] sm:$0xff] %v3302
  %3335 = vst [vmem:[%s8 + $0x30] sm:$0xff] %v3303
  %3336 = vst [vmem:[%s8 + $0x38] sm:$0xff] %v3304
  %3337 = vst [vmem:[%s8 + $0x40] sm:$0xff] %v3305
  %3338 = vst [vmem:[%s8 + $0x48] sm:$0xff] %v3306
  %3339 = vst [vmem:[%s8 + $0x50] sm:$0xff] %v3307
  %3340 = vst [vmem:[%s8 + $0x58] sm:$0xff] %v3308
  %3341 = vst [vmem:[%s8 + $0x60] sm:$0xff] %v3309
  %3342 = vst [vmem:[%s8 + $0x68] sm:$0xff] %v3310
  %3343 = vst [vmem:[%s8 + $0x70] sm:$0xff] %v3311
  %3344 = vst [vmem:[%s8 + $0x78] sm:$0xff] %v3312
  %3345 = vst [vmem:[%s8 + $0x80] sm:$0xff] %v3313
  %3346 = vst [vmem:[%s8 + $0x88] sm:$0xff] %v3314
  %3347 = vst [vmem:[%s8 + $0x90] sm:$0xff] %v3315
  %3348 = vst [vmem:[%s8 + $0x98] sm:$0xff] %v3316
  %3349 = vst [vmem:[%s8 + $0xa0] sm:$0xff] %v3317
  %3350 = vst [vmem:[%s8 + $0xa8] sm:$0xff] %v3318
  %3351 = vst [vmem:[%s8 + $0xb0] sm:$0xff] %v3319
  %3352 = vst [vmem:[%s8 + $0xb8] sm:$0xff] %v3320
  %3353 = vst [vmem:[%s8 + $0xc0] sm:$0xff] %v3321
  %3354 = vst [vmem:[%s8 + $0xc8] sm:$0xff] %v3322
  %3355 = vst [vmem:[%s8 + $0xd0] sm:$0xff] %v3323
  %3356 = vst [vmem:[%s8 + $0xd8] sm:$0xff] %v3324
  %3357 = vst [vmem:[%s8 + $0xe0] sm:$0xff] %v3325
  %3358 = vst [vmem:[%s8 + $0xe8] sm:$0xff] %v3326
  %3359 = vst [vmem:[%s8 + $0xf0] sm:$0xff] %v3327
  %3360 = vst [vmem:[%s8 + $0xf8] sm:$0xff] %v3328
  // Predicated region
  $region34: #{forward.1} parent=0 // pred_check
    _
  $region35: #{forward.1} parent=0 // pred_check_branch
    %3362 = sbr.rel (0) target = $region37
  $region36: #{forward.1} parent=0 // pred_region
    _
  $region37: #{forward.1} parent=0 // pred_fallthru
    _
  // Predicated region
  $region38: #{forward.1} parent=0 // pred_check
    _
  $region39: #{forward.1} parent=0 // pred_check_branch
    %3364 = sbr.rel (0) target = $region41
  $region40: #{forward.1} parent=0 // pred_region
    _
  $region41: #{forward.1} parent=0 // pred_fallthru
    _

</llo_original>
